<compile_context>
chip_gen: v5e
topology: v5e:2x2
jax: 0.10.0
libtpu: 0.0.40
codegen_flags: <defaults>
</compile_context>

<pallas_src>
import functools

import jax
import jax.numpy as jnp
from jax import lax
from jax.experimental import pallas as pl
from jax.experimental.pallas import tpu as pltpu

# ----------------------------------------------------------------------------
# parameter bookkeeping
# ----------------------------------------------------------------------------

PARAM_ORDER = (
    # bidirectional cross attention (prenorm=True, talking_heads=True)
    "ln_xg", "ln_xb", "ln_cg", "ln_cb",
    "wqk", "wv", "wcqk", "wcv",
    "wout", "bout", "wcout", "bcout",
    "wth", "wcth",
    # FeedForwardBlock(dim, mult)
    "ffg", "ffb", "ffw1", "ffb1", "ffw2", "ffb2",
    # FeedForwardBlock(context_dim, mult)
    "cffg", "cffb", "cffw1", "cffb1", "cffw2", "cffb2",
)

_PER_HEAD_IN = frozenset({"wqk", "wv", "wcqk", "wcv"})    # (D, H*DH) -> (H, D, DH)
_PER_HEAD_OUT = frozenset({"wout", "wcout"})              # (H*DH, D) -> (H, DH, D)
_BF16_KEYS = frozenset({"ffw1", "ffw2", "cffw1", "cffw2"})
_SMEM_KEYS = frozenset({"wth", "wcth"})                   # HxH talking-heads tables


def init_params(key, dim, context_dim, heads, dim_head, ff_mult):
    """Deterministic synthetic initialization (shapes follow the nn.Module)."""
    inner = heads * dim_head
    fx = dim * ff_mult
    fc = context_dim * ff_mult

    def nrm(k, shape, fan_in):
        return (jax.random.normal(k, shape, jnp.float32) / jnp.sqrt(fan_in)).astype(
            jnp.float32
        )

    keys = jax.random.split(key, 16)
    return {
        "ln_xg": jnp.ones((1, dim), jnp.float32),
        "ln_xb": jnp.zeros((1, dim), jnp.float32),
        "ln_cg": jnp.ones((1, context_dim), jnp.float32),
        "ln_cb": jnp.zeros((1, context_dim), jnp.float32),
        "wqk": nrm(keys[0], (dim, inner), dim),
        "wv": nrm(keys[1], (dim, inner), dim),
        "wcqk": nrm(keys[2], (context_dim, inner), context_dim),
        "wcv": nrm(keys[3], (context_dim, inner), context_dim),
        "wout": nrm(keys[4], (inner, dim), inner),
        "bout": jnp.zeros((1, dim), jnp.float32),
        "wcout": nrm(keys[5], (inner, context_dim), inner),
        "bcout": jnp.zeros((1, context_dim), jnp.float32),
        "wth": nrm(keys[6], (heads, heads), heads),
        "wcth": nrm(keys[7], (heads, heads), heads),
        "ffg": jnp.ones((1, dim), jnp.float32),
        "ffb": jnp.zeros((1, dim), jnp.float32),
        "ffw1": nrm(keys[8], (dim, fx), dim),
        "ffb1": jnp.zeros((1, fx), jnp.float32),
        "ffw2": nrm(keys[9], (fx, dim), fx),
        "ffb2": jnp.zeros((1, dim), jnp.float32),
        "cffg": jnp.ones((1, context_dim), jnp.float32),
        "cffb": jnp.zeros((1, context_dim), jnp.float32),
        "cffw1": nrm(keys[10], (context_dim, fc), context_dim),
        "cffb1": jnp.zeros((1, fc), jnp.float32),
        "cffw2": nrm(keys[11], (fc, context_dim), fc),
        "cffb2": jnp.zeros((1, context_dim), jnp.float32),
    }


# ----------------------------------------------------------------------------
# in-kernel helpers
# ----------------------------------------------------------------------------

def _layernorm(t, g, b, eps=1e-5):
    mu = jnp.mean(t, axis=-1, keepdims=True)
    var = jnp.mean((t - mu) ** 2, axis=-1, keepdims=True)
    return (t - mu) * lax.rsqrt(var + eps) * g + b


def _ff(t, g, b, w1, b1, w2, b2):
    # TODO(synk): PyTorch nn.GELU() is erf-exact; tanh approximation is used for
    # guaranteed Mosaic lowering (~1e-3 relative difference).
    h = jnp.dot(_layernorm(t, g, b).astype(jnp.bfloat16), w1,
                preferred_element_type=jnp.float32) + b1
    h = jax.nn.gelu(h, approximate=True)
    return jnp.dot(h.astype(jnp.bfloat16), w2,
                   preferred_element_type=jnp.float32) + b2


# ----------------------------------------------------------------------------
# the fused kernel (one batch element per grid step)
# ----------------------------------------------------------------------------

def _jcab_kernel(
    x_ref, c_ref,
    ln_xg, ln_xb, ln_cg, ln_cb,
    wqk3, wv3, wcqk3, wcv3,
    wout3, bout, wcout3, bcout,
    wth, wcth,
    ffg, ffb, ffw1, ffb1, ffw2, ffb2,
    cffg, cffb, cffw1, cffb1, cffw2, cffb2,
    xo_ref, co_ref,
    *, heads, dim_head,
):
    f32 = jnp.float32
    bf16 = jnp.bfloat16
    H, DH = heads, dim_head
    # canonical batched matmul forms Mosaic lowers straight to the MXU
    bk = (((2,), (1,)), ((0,), (0,)))   # 'bik,bkd->bid'
    bq = (((2,), (2,)), ((0,), (0,)))   # 'bid,bjd->bij'
    bt = (((1,), (1,)), ((0,), (0,)))   # 'bij,bid->bjd' (contract along i)

    x = x_ref[0].astype(f32)            # (I, D)
    c = c_ref[0].astype(f32)            # (J, C)
    scale = DH ** -0.5

    # ---- prenorm (f32 math) --------------------------------------------------
    xn = _layernorm(x, ln_xg[...], ln_xb[...]).astype(bf16)
    cn = _layernorm(c, ln_cg[...], ln_cb[...]).astype(bf16)

    # ---- per-head projections, produced directly in (H, seq, DH) layout ------
    # batched dot_general against host-reshaped (H, D, DH) weight blocks: no
    # VMEM head-split round-trip, no masked sub-lane stores.
    xb = jnp.broadcast_to(xn, (H,) + xn.shape)          # (H, I, D) bf16
    cb = jnp.broadcast_to(cn, (H,) + cn.shape)          # (H, J, C) bf16
    qh = lax.dot_general(xb, wqk3[...], bk, preferred_element_type=f32)
    vh = lax.dot_general(xb, wv3[...], bk, preferred_element_type=f32)
    kh = lax.dot_general(cb, wcqk3[...], bk, preferred_element_type=f32)
    cvh = lax.dot_general(cb, wcv3[...], bk, preferred_element_type=f32)
    qh = qh.astype(bf16)                                # (H, I, DH)
    vh = vh.astype(bf16)                                # (H, I, DH)
    kh = kh.astype(bf16)                                # (H, J, DH)
    cvh = cvh.astype(bf16)                              # (H, J, DH)

    # ---- single similarity matmul; both softmax directions share it ----------
    sim = lax.dot_general(qh, kh, bq, preferred_element_type=f32) * scale  # (H,I,J)

    # softmax over J (x -> context), per-row maxima
    m_i = jnp.max(sim, axis=2, keepdims=True)
    e_i = jnp.exp(sim - m_i)
    attn = e_i * pl.reciprocal(jnp.sum(e_i, axis=2, keepdims=True), approx=True)
    # softmax over I (context -> x), per-column maxima (separate shift, so the
    # exp cannot be shared without reintroducing the underflow risk)
    m_j = jnp.max(sim, axis=1, keepdims=True)
    e_j = jnp.exp(sim - m_j)
    cattn = e_j * pl.reciprocal(jnp.sum(e_j, axis=1, keepdims=True), approx=True)

    # ---- talking heads: HxH mix across the head axis (scalars from SMEM) -----
    # TODO(synk): at production head counts move this onto the MXU.
    a_mix, ca_mix = [], []
    for g in range(H):
        am = wth[g, 0] * attn[0]
        cm = wcth[g, 0] * cattn[0]
        for h in range(1, H):
            am = am + wth[g, h] * attn[h]
            cm = cm + wcth[g, h] * cattn[h]
        a_mix.append(am)
        ca_mix.append(cm)
    attn_m = jnp.stack(a_mix, axis=0).astype(bf16)      # (H, I, J)
    cattn_m = jnp.stack(ca_mix, axis=0).astype(bf16)    # (H, I, J)

    # ---- attention outputs (batched, MXU) -------------------------------------
    out3 = lax.dot_general(attn_m, cvh, bk, preferred_element_type=f32)   # (H,I,DH)
    # context direction: contract along I directly, no attention-map transpose
    cout3 = lax.dot_general(cattn_m, vh, bt, preferred_element_type=f32)  # (H,J,DH)

    # ---- per-head output projection + head sum --------------------------------
    po = lax.dot_general(out3.astype(bf16), wout3[...], bk,
                         preferred_element_type=f32)                      # (H,I,D)
    pc = lax.dot_general(cout3.astype(bf16), wcout3[...], bk,
                         preferred_element_type=f32)                      # (H,J,C)
    attn_out = jnp.sum(po, axis=0) + bout[...]                            # (I, D)
    cattn_out = jnp.sum(pc, axis=0) + bcout[...]                          # (J, C)

    # ---- residuals + FeedForward blocks ---------------------------------------
    x1 = x + attn_out
    c1 = c + cattn_out
    x2 = x1 + _ff(x1, ffg[...], ffb[...], ffw1[...], ffb1[...], ffw2[...], ffb2[...])
    c2 = c1 + _ff(c1, cffg[...], cffb[...], cffw1[...], cffb1[...], cffw2[...], cffb2[...])

    xo_ref[0] = x2.astype(xo_ref.dtype)
    co_ref[0] = c2.astype(co_ref.dtype)


# ----------------------------------------------------------------------------
# wrapper
# ----------------------------------------------------------------------------

def joint_cross_attention_block(x, context, params, *, heads, dim_head):
    B, I, D = x.shape
    Bc, J, C = context.shape
    assert B == Bc
    E = heads * dim_head

    # prepare weights: matmul weights -> bf16; projection weights -> per-head blocks
    weights = []
    for k in PARAM_ORDER:
        w = params[k]
        if k in _PER_HEAD_IN:       # (D, H*DH) -> (H, D, DH)
            d_in = w.shape[0]
            w = jnp.transpose(w.reshape(d_in, heads, dim_head), (1, 0, 2))
            w = w.astype(jnp.bfloat16)
        elif k in _PER_HEAD_OUT:    # (H*DH, D) -> (H, DH, D)
            w = w.reshape(heads, dim_head, w.shape[-1]).astype(jnp.bfloat16)
        elif k in _BF16_KEYS:
            w = w.astype(jnp.bfloat16)
        weights.append(w)

    in_specs = [
        pl.BlockSpec((1, I, D), lambda b: (b, 0, 0)),
        pl.BlockSpec((1, J, C), lambda b: (b, 0, 0)),
    ]
    for k, w in zip(PARAM_ORDER, weights):
        if k in _SMEM_KEYS:
            in_specs.append(pl.BlockSpec(memory_space=pltpu.MemorySpace.SMEM))
        elif w.ndim == 3:
            in_specs.append(pl.BlockSpec(tuple(w.shape), lambda b: (0, 0, 0)))
        else:
            in_specs.append(pl.BlockSpec(tuple(w.shape), lambda b: (0, 0)))

    out_specs = [
        pl.BlockSpec((1, I, D), lambda b: (b, 0, 0)),
        pl.BlockSpec((1, J, C), lambda b: (b, 0, 0)),
    ]
    out_shape = (
        jax.ShapeDtypeStruct((B, I, D), x.dtype),
        jax.ShapeDtypeStruct((B, J, C), context.dtype),
    )

    # advisory cost estimate so XLA schedules neighbouring ops sensibly.
    dff = params["ffw1"].shape[1]
    cff = params["cffw1"].shape[1]
    macs = (
        I * D * E * 2 + J * C * E * 2            # qk/v/cqk/cv projections
        + heads * I * J * dim_head * 3           # sim, attn@cv, cattn@v
        + heads * heads * I * J * 2              # talking heads (both directions)
        + I * E * D + J * E * C                  # output projections
        + I * D * dff * 2 + J * C * cff * 2      # feed-forwards
    )
    cost = pl.CostEstimate(
        flops=int(2 * B * macs),
        transcendentals=int(B * (2 * heads * I * J + I * dff + J * cff)),
        bytes_accessed=int(
            2 * (x.size + context.size) * 4
            + sum(w.size * w.dtype.itemsize for w in weights)
        ),
    )

    kernel = functools.partial(_jcab_kernel, heads=heads, dim_head=dim_head)
    # VMEM footprint at these shapes is < 2 MiB (no scratch, weights < 200 KiB),
    # well inside the scoped default on v5e/v6e/v7x.
    # TODO(synk): at production dims on v7x (64 MiB/TC) single-buffer the
    # constant weight specs and/or raise vmem_limit_bytes / tile the FF matmuls.
    return pl.pallas_call(
        kernel,
        grid=(B,),
        in_specs=in_specs,
        out_specs=out_specs,
        out_shape=out_shape,
        cost_estimate=cost,
        compiler_params=pltpu.CompilerParams(dimension_semantics=("parallel",)),
    )(x, context, *weights)


# ----------------------------------------------------------------------------
# pure-JAX reference (batched einsums, exact softmax). It mirrors the kernel's
# bf16-at-matmul precision policy so the comparison isolates the attention/FF
# semantics; remaining diffs are the approx reciprocal and accumulation order.
# ----------------------------------------------------------------------------

def _reference(x, c, p, heads, dim_head):
    f32 = jnp.float32
    bf = lambda t: t.astype(jnp.bfloat16)
    wb = lambda k: p[k].astype(jnp.bfloat16)
    B, I, D = x.shape
    J = c.shape[1]
    E = heads * dim_head

    def ln(t, g, b):
        mu = t.mean(-1, keepdims=True)
        var = ((t - mu) ** 2).mean(-1, keepdims=True)
        return (t - mu) * lax.rsqrt(var + 1e-5) * g + b

    xn = ln(x, p["ln_xg"], p["ln_xb"])
    cn = ln(c, p["ln_cg"], p["ln_cb"])

    def split(t):
        return t.reshape(t.shape[0], t.shape[1], heads, dim_head).transpose(0, 2, 1, 3)

    qk = split(jnp.dot(bf(xn), wb("wqk"), preferred_element_type=f32))
    v = split(jnp.dot(bf(xn), wb("wv"), preferred_element_type=f32))
    cqk = split(jnp.dot(bf(cn), wb("wcqk"), preferred_element_type=f32))
    cv = split(jnp.dot(bf(cn), wb("wcv"), preferred_element_type=f32))

    sim = jnp.einsum("bhid,bhjd->bhij", bf(qk), bf(cqk),
                     preferred_element_type=f32) * dim_head ** -0.5
    attn = jax.nn.softmax(sim, axis=-1)
    cattn = jax.nn.softmax(sim, axis=-2)
    attn = jnp.einsum("gh,bhij->bgij", p["wth"], attn)
    cattn = jnp.einsum("gh,bhij->bgij", p["wcth"], cattn)

    out = jnp.einsum("bhij,bhjd->bhid", bf(attn), bf(cv), preferred_element_type=f32)
    cout = jnp.einsum("bhij,bhid->bhjd", bf(cattn), bf(v), preferred_element_type=f32)
    out = out.transpose(0, 2, 1, 3).reshape(B, I, E)
    cout = cout.transpose(0, 2, 1, 3).reshape(B, J, E)
    attn_out = jnp.dot(bf(out), wb("wout"), preferred_element_type=f32) + p["bout"]
    cattn_out = jnp.dot(bf(cout), wb("wcout"), preferred_element_type=f32) + p["bcout"]

    x1 = x + attn_out
    c1 = c + cattn_out

    def ff(t, g, b, w1, b1, w2, b2):
        h = jnp.dot(bf(ln(t, g, b)), bf(w1), preferred_element_type=f32) + b1
        h = jax.nn.gelu(h, approximate=True)
        return jnp.dot(bf(h), bf(w2), preferred_element_type=f32) + b2

    x2 = x1 + ff(x1, p["ffg"], p["ffb"], p["ffw1"], p["ffb1"], p["ffw2"], p["ffb2"])
    c2 = c1 + ff(c1, p["cffg"], p["cffb"], p["cffw1"], p["cffb1"], p["cffw2"], p["cffb2"])
    return x2, c2


# ----------------------------------------------------------------------------
# main
# ----------------------------------------------------------------------------

if __name__ == "__main__":
    B = 2          # batch
    I = 8          # x sequence length
    J = 16         # context sequence length
    DIM = 32       # dim
    CDIM = 32      # context_dim
    HEADS = 4
    DIM_HEAD = 16
    FF_MULT = 8

    root = jax.random.PRNGKey(0)
    kp, kx, kc = jax.random.split(root, 3)

    params = init_params(kp, DIM, CDIM, HEADS, DIM_HEAD, FF_MULT)
    x = jax.random.normal(kx, (B, I, DIM), jnp.float32)
    context = jax.random.normal(kc, (B, J, CDIM), jnp.float32)

    x_out, c_out = joint_cross_attention_block(
        x, context, params, heads=HEADS, dim_head=DIM_HEAD
    )
    jax.block_until_ready((x_out, c_out))

    x_ref, c_ref = _reference(x, context, params, HEADS, DIM_HEAD)
    # tolerance covers bf16 matmul inputs (shared with the reference), the
    # approx-reciprocal softmax normalization and accumulation-order noise.
    assert jnp.allclose(x_out, x_ref, atol=2e-2, rtol=2e-2), "x mismatch vs reference"
    assert jnp.allclose(c_out, c_ref, atol=2e-2, rtol=2e-2), "context mismatch vs reference"

    print("KERNEL_OK")
</pallas_src>

<mosaic_0001>
module attributes {stable_mosaic.version = 11 : i64} {
  func.func @_jcab_kernel(%arg0: i32, %arg1: memref<1x8x32xf32, #tpu.memory_space<vmem>>, %arg2: memref<1x16x32xf32, #tpu.memory_space<vmem>>, %arg3: memref<1x32xf32, #tpu.memory_space<vmem>>, %arg4: memref<1x32xf32, #tpu.memory_space<vmem>>, %arg5: memref<1x32xf32, #tpu.memory_space<vmem>>, %arg6: memref<1x32xf32, #tpu.memory_space<vmem>>, %arg7: memref<4x32x16xbf16, #tpu.memory_space<vmem>>, %arg8: memref<4x32x16xbf16, #tpu.memory_space<vmem>>, %arg9: memref<4x32x16xbf16, #tpu.memory_space<vmem>>, %arg10: memref<4x32x16xbf16, #tpu.memory_space<vmem>>, %arg11: memref<4x16x32xbf16, #tpu.memory_space<vmem>>, %arg12: memref<1x32xf32, #tpu.memory_space<vmem>>, %arg13: memref<4x16x32xbf16, #tpu.memory_space<vmem>>, %arg14: memref<1x32xf32, #tpu.memory_space<vmem>>, %arg15: memref<4x4xf32, #tpu.memory_space<smem>>, %arg16: memref<4x4xf32, #tpu.memory_space<smem>>, %arg17: memref<1x32xf32, #tpu.memory_space<vmem>>, %arg18: memref<1x32xf32, #tpu.memory_space<vmem>>, %arg19: memref<32x256xbf16, #tpu.memory_space<vmem>>, %arg20: memref<1x256xf32, #tpu.memory_space<vmem>>, %arg21: memref<256x32xbf16, #tpu.memory_space<vmem>>, %arg22: memref<1x32xf32, #tpu.memory_space<vmem>>, %arg23: memref<1x32xf32, #tpu.memory_space<vmem>>, %arg24: memref<1x32xf32, #tpu.memory_space<vmem>>, %arg25: memref<32x256xbf16, #tpu.memory_space<vmem>>, %arg26: memref<1x256xf32, #tpu.memory_space<vmem>>, %arg27: memref<256x32xbf16, #tpu.memory_space<vmem>>, %arg28: memref<1x32xf32, #tpu.memory_space<vmem>>, %arg29: memref<1x8x32xf32, #tpu.memory_space<vmem>>, %arg30: memref<1x16x32xf32, #tpu.memory_space<vmem>>) attributes {dimension_semantics = [#tpu.dimension_semantics<parallel>], iteration_bounds = array<i64: 2>, scalar_prefetch = 0 : i64, scratch_operands = 0 : i64, tpu.core_type = #tpu.core_type<tc>, window_params = [{transform_indices = @transform_0, window_bounds = array<i64: 1, 8, 32>}, {transform_indices = @transform_1, window_bounds = array<i64: 1, 16, 32>}, {pipeline_mode = #tpu.pipeline_mode<synchronous>, transform_indices = @transform_2, window_bounds = array<i64: 1, 32>}, {pipeline_mode = #tpu.pipeline_mode<synchronous>, transform_indices = @transform_3, window_bounds = array<i64: 1, 32>}, {pipeline_mode = #tpu.pipeline_mode<synchronous>, transform_indices = @transform_4, window_bounds = array<i64: 1, 32>}, {pipeline_mode = #tpu.pipeline_mode<synchronous>, transform_indices = @transform_5, window_bounds = array<i64: 1, 32>}, {pipeline_mode = #tpu.pipeline_mode<synchronous>, transform_indices = @transform_6, window_bounds = array<i64: 4, 32, 16>}, {pipeline_mode = #tpu.pipeline_mode<synchronous>, transform_indices = @transform_7, window_bounds = array<i64: 4, 32, 16>}, {pipeline_mode = #tpu.pipeline_mode<synchronous>, transform_indices = @transform_8, window_bounds = array<i64: 4, 32, 16>}, {pipeline_mode = #tpu.pipeline_mode<synchronous>, transform_indices = @transform_9, window_bounds = array<i64: 4, 32, 16>}, {pipeline_mode = #tpu.pipeline_mode<synchronous>, transform_indices = @transform_10, window_bounds = array<i64: 4, 16, 32>}, {pipeline_mode = #tpu.pipeline_mode<synchronous>, transform_indices = @transform_11, window_bounds = array<i64: 1, 32>}, {pipeline_mode = #tpu.pipeline_mode<synchronous>, transform_indices = @transform_12, window_bounds = array<i64: 4, 16, 32>}, {pipeline_mode = #tpu.pipeline_mode<synchronous>, transform_indices = @transform_13, window_bounds = array<i64: 1, 32>}, {transform_indices = @transform_14, window_bounds = array<i64: 4, 4>}, {transform_indices = @transform_15, window_bounds = array<i64: 4, 4>}, {pipeline_mode = #tpu.pipeline_mode<synchronous>, transform_indices = @transform_16, window_bounds = array<i64: 1, 32>}, {pipeline_mode = #tpu.pipeline_mode<synchronous>, transform_indices = @transform_17, window_bounds = array<i64: 1, 32>}, {pipeline_mode = #tpu.pipeline_mode<synchronous>, transform_indices = @transform_18, window_bounds = array<i64: 32, 256>}, {pipeline_mode = #tpu.pipeline_mode<synchronous>, transform_indices = @transform_19, window_bounds = array<i64: 1, 256>}, {pipeline_mode = #tpu.pipeline_mode<synchronous>, transform_indices = @transform_20, window_bounds = array<i64: 256, 32>}, {pipeline_mode = #tpu.pipeline_mode<synchronous>, transform_indices = @transform_21, window_bounds = array<i64: 1, 32>}, {pipeline_mode = #tpu.pipeline_mode<synchronous>, transform_indices = @transform_22, window_bounds = array<i64: 1, 32>}, {pipeline_mode = #tpu.pipeline_mode<synchronous>, transform_indices = @transform_23, window_bounds = array<i64: 1, 32>}, {pipeline_mode = #tpu.pipeline_mode<synchronous>, transform_indices = @transform_24, window_bounds = array<i64: 32, 256>}, {pipeline_mode = #tpu.pipeline_mode<synchronous>, transform_indices = @transform_25, window_bounds = array<i64: 1, 256>}, {pipeline_mode = #tpu.pipeline_mode<synchronous>, transform_indices = @transform_26, window_bounds = array<i64: 256, 32>}, {pipeline_mode = #tpu.pipeline_mode<synchronous>, transform_indices = @transform_27, window_bounds = array<i64: 1, 32>}, {transform_indices = @transform_28, window_bounds = array<i64: 1, 8, 32>}, {transform_indices = @transform_29, window_bounds = array<i64: 1, 16, 32>}]} {
    %c0 = arith.constant 0 : index
    %c0_0 = arith.constant 0 : index
    %c0_1 = arith.constant 0 : index
    %0 = vector.load %arg1[%c0, %c0_0, %c0_1] : memref<1x8x32xf32, #tpu.memory_space<vmem>>, vector<1x8x32xf32>
    %1 = vector.shape_cast %0 : vector<1x8x32xf32> to vector<8x32xf32>
    %c0_2 = arith.constant 0 : index
    %c0_3 = arith.constant 0 : index
    %c0_4 = arith.constant 0 : index
    %2 = vector.load %arg2[%c0_2, %c0_3, %c0_4] : memref<1x16x32xf32, #tpu.memory_space<vmem>>, vector<1x16x32xf32>
    %3 = vector.shape_cast %2 : vector<1x16x32xf32> to vector<16x32xf32>
    %c0_5 = arith.constant 0 : index
    %c0_6 = arith.constant 0 : index
    %4 = vector.load %arg3[%c0_5, %c0_6] : memref<1x32xf32, #tpu.memory_space<vmem>>, vector<1x32xf32>
    %c0_7 = arith.constant 0 : index
    %c0_8 = arith.constant 0 : index
    %5 = vector.load %arg4[%c0_7, %c0_8] : memref<1x32xf32, #tpu.memory_space<vmem>>, vector<1x32xf32>
    %cst = arith.constant dense<0.000000e+00> : vector<8xf32>
    %6 = vector.multi_reduction <add>, %1, %cst [1] : vector<8x32xf32> to vector<8xf32>
    %7 = vector.shape_cast %6 : vector<8xf32> to vector<8x1xf32>
    %cst_9 = arith.constant 3.200000e+01 : f32
    %8 = vector.broadcast %cst_9 : f32 to vector<8x1xf32>
    %9 = arith.divf %7, %8 : vector<8x1xf32>
    %10 = vector.broadcast %9 : vector<8x1xf32> to vector<8x32xf32>
    %11 = arith.subf %1, %10 : vector<8x32xf32>
    %12 = arith.mulf %11, %11 : vector<8x32xf32>
    %cst_10 = arith.constant dense<0.000000e+00> : vector<8xf32>
    %13 = vector.multi_reduction <add>, %12, %cst_10 [1] : vector<8x32xf32> to vector<8xf32>
    %14 = vector.shape_cast %13 : vector<8xf32> to vector<8x1xf32>
    %cst_11 = arith.constant 3.200000e+01 : f32
    %15 = vector.broadcast %cst_11 : f32 to vector<8x1xf32>
    %16 = arith.divf %14, %15 : vector<8x1xf32>
    %17 = vector.broadcast %9 : vector<8x1xf32> to vector<8x32xf32>
    %18 = arith.subf %1, %17 : vector<8x32xf32>
    %cst_12 = arith.constant 9.99999974E-6 : f32
    %19 = vector.broadcast %cst_12 : f32 to vector<8x1xf32>
    %20 = arith.addf %16, %19 : vector<8x1xf32>
    %21 = math.rsqrt %20 : vector<8x1xf32>
    %22 = vector.broadcast %21 : vector<8x1xf32> to vector<8x32xf32>
    %23 = arith.mulf %18, %22 : vector<8x32xf32>
    %24 = vector.broadcast %4 : vector<1x32xf32> to vector<8x32xf32>
    %25 = arith.mulf %23, %24 : vector<8x32xf32>
    %26 = vector.broadcast %5 : vector<1x32xf32> to vector<8x32xf32>
    %27 = arith.addf %25, %26 : vector<8x32xf32>
    %28 = arith.truncf %27 : vector<8x32xf32> to vector<8x32xbf16>
    %c0_13 = arith.constant 0 : index
    %c0_14 = arith.constant 0 : index
    %29 = vector.load %arg5[%c0_13, %c0_14] : memref<1x32xf32, #tpu.memory_space<vmem>>, vector<1x32xf32>
    %c0_15 = arith.constant 0 : index
    %c0_16 = arith.constant 0 : index
    %30 = vector.load %arg6[%c0_15, %c0_16] : memref<1x32xf32, #tpu.memory_space<vmem>>, vector<1x32xf32>
    %cst_17 = arith.constant dense<0.000000e+00> : vector<16xf32>
    %31 = vector.multi_reduction <add>, %3, %cst_17 [1] : vector<16x32xf32> to vector<16xf32>
    %32 = vector.shape_cast %31 : vector<16xf32> to vector<16x1xf32>
    %cst_18 = arith.constant 3.200000e+01 : f32
    %33 = vector.broadcast %cst_18 : f32 to vector<16x1xf32>
    %34 = arith.divf %32, %33 : vector<16x1xf32>
    %35 = vector.broadcast %34 : vector<16x1xf32> to vector<16x32xf32>
    %36 = arith.subf %3, %35 : vector<16x32xf32>
    %37 = arith.mulf %36, %36 : vector<16x32xf32>
    %cst_19 = arith.constant dense<0.000000e+00> : vector<16xf32>
    %38 = vector.multi_reduction <add>, %37, %cst_19 [1] : vector<16x32xf32> to vector<16xf32>
    %39 = vector.shape_cast %38 : vector<16xf32> to vector<16x1xf32>
    %cst_20 = arith.constant 3.200000e+01 : f32
    %40 = vector.broadcast %cst_20 : f32 to vector<16x1xf32>
    %41 = arith.divf %39, %40 : vector<16x1xf32>
    %42 = vector.broadcast %34 : vector<16x1xf32> to vector<16x32xf32>
    %43 = arith.subf %3, %42 : vector<16x32xf32>
    %cst_21 = arith.constant 9.99999974E-6 : f32
    %44 = vector.broadcast %cst_21 : f32 to vector<16x1xf32>
    %45 = arith.addf %41, %44 : vector<16x1xf32>
    %46 = math.rsqrt %45 : vector<16x1xf32>
    %47 = vector.broadcast %46 : vector<16x1xf32> to vector<16x32xf32>
    %48 = arith.mulf %43, %47 : vector<16x32xf32>
    %49 = vector.broadcast %29 : vector<1x32xf32> to vector<16x32xf32>
    %50 = arith.mulf %48, %49 : vector<16x32xf32>
    %51 = vector.broadcast %30 : vector<1x32xf32> to vector<16x32xf32>
    %52 = arith.addf %50, %51 : vector<16x32xf32>
    %53 = arith.truncf %52 : vector<16x32xf32> to vector<16x32xbf16>
    %54 = vector.shape_cast %28 : vector<8x32xbf16> to vector<1x8x32xbf16>
    %55 = vector.broadcast %54 : vector<1x8x32xbf16> to vector<4x8x32xbf16>
    %56 = vector.shape_cast %53 : vector<16x32xbf16> to vector<1x16x32xbf16>
    %57 = vector.broadcast %56 : vector<1x16x32xbf16> to vector<4x16x32xbf16>
    %c0_22 = arith.constant 0 : index
    %c0_23 = arith.constant 0 : index
    %c0_24 = arith.constant 0 : index
    %58 = vector.load %arg7[%c0_22, %c0_23, %c0_24] : memref<4x32x16xbf16, #tpu.memory_space<vmem>>, vector<4x32x16xbf16>
    %cst_25 = arith.constant dense<0.000000e+00> : vector<4x8x16xf32>
    %59 = tpu.matmul %55, %58, %cst_25 {dimension_numbers = #tpu.dot_dimension_numbers<[2], [1], [1], [2], [0, 0, 0, 1, 1, 2], [0], [0]>} : vector<4x8x32xbf16>, vector<4x32x16xbf16>, vector<4x8x16xf32> -> vector<4x8x16xf32>
    %c0_26 = arith.constant 0 : index
    %c0_27 = arith.constant 0 : index
    %c0_28 = arith.constant 0 : index
    %60 = vector.load %arg8[%c0_26, %c0_27, %c0_28] : memref<4x32x16xbf16, #tpu.memory_space<vmem>>, vector<4x32x16xbf16>
    %cst_29 = arith.constant dense<0.000000e+00> : vector<4x8x16xf32>
    %61 = tpu.matmul %55, %60, %cst_29 {dimension_numbers = #tpu.dot_dimension_numbers<[2], [1], [1], [2], [0, 0, 0, 1, 1, 2], [0], [0]>} : vector<4x8x32xbf16>, vector<4x32x16xbf16>, vector<4x8x16xf32> -> vector<4x8x16xf32>
    %c0_30 = arith.constant 0 : index
    %c0_31 = arith.constant 0 : index
    %c0_32 = arith.constant 0 : index
    %62 = vector.load %arg9[%c0_30, %c0_31, %c0_32] : memref<4x32x16xbf16, #tpu.memory_space<vmem>>, vector<4x32x16xbf16>
    %cst_33 = arith.constant dense<0.000000e+00> : vector<4x16x16xf32>
    %63 = tpu.matmul %57, %62, %cst_33 {dimension_numbers = #tpu.dot_dimension_numbers<[2], [1], [1], [2], [0, 0, 0, 1, 1, 2], [0], [0]>} : vector<4x16x32xbf16>, vector<4x32x16xbf16>, vector<4x16x16xf32> -> vector<4x16x16xf32>
    %c0_34 = arith.constant 0 : index
    %c0_35 = arith.constant 0 : index
    %c0_36 = arith.constant 0 : index
    %64 = vector.load %arg10[%c0_34, %c0_35, %c0_36] : memref<4x32x16xbf16, #tpu.memory_space<vmem>>, vector<4x32x16xbf16>
    %cst_37 = arith.constant dense<0.000000e+00> : vector<4x16x16xf32>
    %65 = tpu.matmul %57, %64, %cst_37 {dimension_numbers = #tpu.dot_dimension_numbers<[2], [1], [1], [2], [0, 0, 0, 1, 1, 2], [0], [0]>} : vector<4x16x32xbf16>, vector<4x32x16xbf16>, vector<4x16x16xf32> -> vector<4x16x16xf32>
    %66 = arith.truncf %59 : vector<4x8x16xf32> to vector<4x8x16xbf16>
    %67 = arith.truncf %61 : vector<4x8x16xf32> to vector<4x8x16xbf16>
    %68 = arith.truncf %63 : vector<4x16x16xf32> to vector<4x16x16xbf16>
    %69 = arith.truncf %65 : vector<4x16x16xf32> to vector<4x16x16xbf16>
    %cst_38 = arith.constant dense<0.000000e+00> : vector<4x8x16xf32>
    %70 = tpu.matmul %66, %68, %cst_38 {dimension_numbers = #tpu.dot_dimension_numbers<[2], [2], [1], [1], [0, 0, 0, 1, 1, 1], [0], [0]>} : vector<4x8x16xbf16>, vector<4x16x16xbf16>, vector<4x8x16xf32> -> vector<4x8x16xf32>
    %cst_39 = arith.constant 2.500000e-01 : f32
    %71 = vector.broadcast %cst_39 : f32 to vector<4x8x16xf32>
    %72 = arith.mulf %70, %71 : vector<4x8x16xf32>
    %cst_40 = arith.constant dense<0xFF800000> : vector<4x8xf32>
    %73 = vector.multi_reduction <maximumf>, %72, %cst_40 [2] : vector<4x8x16xf32> to vector<4x8xf32>
    %74 = vector.shape_cast %73 : vector<4x8xf32> to vector<4x8x1xf32>
    %75 = vector.broadcast %74 : vector<4x8x1xf32> to vector<4x8x16xf32>
    %76 = arith.subf %72, %75 : vector<4x8x16xf32>
    %77 = math.exp %76 : vector<4x8x16xf32>
    %cst_41 = arith.constant dense<0.000000e+00> : vector<4x8xf32>
    %78 = vector.multi_reduction <add>, %77, %cst_41 [2] : vector<4x8x16xf32> to vector<4x8xf32>
    %79 = vector.shape_cast %78 : vector<4x8xf32> to vector<4x8x1xf32>
    %80 = tpu.reciprocal %79 {approx = true} : vector<4x8x1xf32> -> vector<4x8x1xf32>
    %81 = vector.broadcast %80 : vector<4x8x1xf32> to vector<4x8x16xf32>
    %82 = arith.mulf %77, %81 : vector<4x8x16xf32>
    %cst_42 = arith.constant dense<0xFF800000> : vector<4x16xf32>
    %83 = vector.multi_reduction <maximumf>, %72, %cst_42 [1] : vector<4x8x16xf32> to vector<4x16xf32>
    %84 = vector.shape_cast %83 : vector<4x16xf32> to vector<4x1x16xf32>
    %85 = vector.broadcast %84 : vector<4x1x16xf32> to vector<4x8x16xf32>
    %86 = arith.subf %72, %85 : vector<4x8x16xf32>
    %87 = math.exp %86 : vector<4x8x16xf32>
    %cst_43 = arith.constant dense<0.000000e+00> : vector<4x16xf32>
    %88 = vector.multi_reduction <add>, %87, %cst_43 [1] : vector<4x8x16xf32> to vector<4x16xf32>
    %89 = vector.shape_cast %88 : vector<4x16xf32> to vector<4x1x16xf32>
    %90 = tpu.reciprocal %89 {approx = true} : vector<4x1x16xf32> -> vector<4x1x16xf32>
    %91 = vector.broadcast %90 : vector<4x1x16xf32> to vector<4x8x16xf32>
    %92 = arith.mulf %87, %91 : vector<4x8x16xf32>
    %c0_44 = arith.constant 0 : index
    %c0_45 = arith.constant 0 : index
    %93 = memref.load %arg15[%c0_44, %c0_45] : memref<4x4xf32, #tpu.memory_space<smem>>
    %94 = vector.extract_strided_slice %82 {offsets = [0, 0, 0], sizes = [1, 8, 16], strides = [1, 1, 1]} : vector<4x8x16xf32> to vector<1x8x16xf32>
    %95 = vector.shape_cast %94 : vector<1x8x16xf32> to vector<8x16xf32>
    %96 = vector.broadcast %93 : f32 to vector<8x16xf32>
    %97 = arith.mulf %96, %95 : vector<8x16xf32>
    %c0_46 = arith.constant 0 : index
    %c0_47 = arith.constant 0 : index
    %98 = memref.load %arg16[%c0_46, %c0_47] : memref<4x4xf32, #tpu.memory_space<smem>>
    %99 = vector.extract_strided_slice %92 {offsets = [0, 0, 0], sizes = [1, 8, 16], strides = [1, 1, 1]} : vector<4x8x16xf32> to vector<1x8x16xf32>
    %100 = vector.shape_cast %99 : vector<1x8x16xf32> to vector<8x16xf32>
    %101 = vector.broadcast %98 : f32 to vector<8x16xf32>
    %102 = arith.mulf %101, %100 : vector<8x16xf32>
    %c0_48 = arith.constant 0 : index
    %c1 = arith.constant 1 : index
    %103 = memref.load %arg15[%c0_48, %c1] : memref<4x4xf32, #tpu.memory_space<smem>>
    %104 = vector.extract_strided_slice %82 {offsets = [1, 0, 0], sizes = [1, 8, 16], strides = [1, 1, 1]} : vector<4x8x16xf32> to vector<1x8x16xf32>
    %105 = vector.shape_cast %104 : vector<1x8x16xf32> to vector<8x16xf32>
    %106 = vector.broadcast %103 : f32 to vector<8x16xf32>
    %107 = arith.mulf %106, %105 : vector<8x16xf32>
    %108 = arith.addf %97, %107 : vector<8x16xf32>
    %c0_49 = arith.constant 0 : index
    %c1_50 = arith.constant 1 : index
    %109 = memref.load %arg16[%c0_49, %c1_50] : memref<4x4xf32, #tpu.memory_space<smem>>
    %110 = vector.extract_strided_slice %92 {offsets = [1, 0, 0], sizes = [1, 8, 16], strides = [1, 1, 1]} : vector<4x8x16xf32> to vector<1x8x16xf32>
    %111 = vector.shape_cast %110 : vector<1x8x16xf32> to vector<8x16xf32>
    %112 = vector.broadcast %109 : f32 to vector<8x16xf32>
    %113 = arith.mulf %112, %111 : vector<8x16xf32>
    %114 = arith.addf %102, %113 : vector<8x16xf32>
    %c0_51 = arith.constant 0 : index
    %c2 = arith.constant 2 : index
    %115 = memref.load %arg15[%c0_51, %c2] : memref<4x4xf32, #tpu.memory_space<smem>>
    %116 = vector.extract_strided_slice %82 {offsets = [2, 0, 0], sizes = [1, 8, 16], strides = [1, 1, 1]} : vector<4x8x16xf32> to vector<1x8x16xf32>
    %117 = vector.shape_cast %116 : vector<1x8x16xf32> to vector<8x16xf32>
    %118 = vector.broadcast %115 : f32 to vector<8x16xf32>
    %119 = arith.mulf %118, %117 : vector<8x16xf32>
    %120 = arith.addf %108, %119 : vector<8x16xf32>
    %c0_52 = arith.constant 0 : index
    %c2_53 = arith.constant 2 : index
    %121 = memref.load %arg16[%c0_52, %c2_53] : memref<4x4xf32, #tpu.memory_space<smem>>
    %122 = vector.extract_strided_slice %92 {offsets = [2, 0, 0], sizes = [1, 8, 16], strides = [1, 1, 1]} : vector<4x8x16xf32> to vector<1x8x16xf32>
    %123 = vector.shape_cast %122 : vector<1x8x16xf32> to vector<8x16xf32>
    %124 = vector.broadcast %121 : f32 to vector<8x16xf32>
    %125 = arith.mulf %124, %123 : vector<8x16xf32>
    %126 = arith.addf %114, %125 : vector<8x16xf32>
    %c0_54 = arith.constant 0 : index
    %c3 = arith.constant 3 : index
    %127 = memref.load %arg15[%c0_54, %c3] : memref<4x4xf32, #tpu.memory_space<smem>>
    %128 = vector.extract_strided_slice %82 {offsets = [3, 0, 0], sizes = [1, 8, 16], strides = [1, 1, 1]} : vector<4x8x16xf32> to vector<1x8x16xf32>
    %129 = vector.shape_cast %128 : vector<1x8x16xf32> to vector<8x16xf32>
    %130 = vector.broadcast %127 : f32 to vector<8x16xf32>
    %131 = arith.mulf %130, %129 : vector<8x16xf32>
    %132 = arith.addf %120, %131 : vector<8x16xf32>
    %c0_55 = arith.constant 0 : index
    %c3_56 = arith.constant 3 : index
    %133 = memref.load %arg16[%c0_55, %c3_56] : memref<4x4xf32, #tpu.memory_space<smem>>
    %134 = vector.extract_strided_slice %92 {offsets = [3, 0, 0], sizes = [1, 8, 16], strides = [1, 1, 1]} : vector<4x8x16xf32> to vector<1x8x16xf32>
    %135 = vector.shape_cast %134 : vector<1x8x16xf32> to vector<8x16xf32>
    %136 = vector.broadcast %133 : f32 to vector<8x16xf32>
    %137 = arith.mulf %136, %135 : vector<8x16xf32>
    %138 = arith.addf %126, %137 : vector<8x16xf32>
    %c1_57 = arith.constant 1 : index
    %c0_58 = arith.constant 0 : index
    %139 = memref.load %arg15[%c1_57, %c0_58] : memref<4x4xf32, #tpu.memory_space<smem>>
    %140 = vector.extract_strided_slice %82 {offsets = [0, 0, 0], sizes = [1, 8, 16], strides = [1, 1, 1]} : vector<4x8x16xf32> to vector<1x8x16xf32>
    %141 = vector.shape_cast %140 : vector<1x8x16xf32> to vector<8x16xf32>
    %142 = vector.broadcast %139 : f32 to vector<8x16xf32>
    %143 = arith.mulf %142, %141 : vector<8x16xf32>
    %c1_59 = arith.constant 1 : index
    %c0_60 = arith.constant 0 : index
    %144 = memref.load %arg16[%c1_59, %c0_60] : memref<4x4xf32, #tpu.memory_space<smem>>
    %145 = vector.extract_strided_slice %92 {offsets = [0, 0, 0], sizes = [1, 8, 16], strides = [1, 1, 1]} : vector<4x8x16xf32> to vector<1x8x16xf32>
    %146 = vector.shape_cast %145 : vector<1x8x16xf32> to vector<8x16xf32>
    %147 = vector.broadcast %144 : f32 to vector<8x16xf32>
    %148 = arith.mulf %147, %146 : vector<8x16xf32>
    %c1_61 = arith.constant 1 : index
    %c1_62 = arith.constant 1 : index
    %149 = memref.load %arg15[%c1_61, %c1_62] : memref<4x4xf32, #tpu.memory_space<smem>>
    %150 = vector.extract_strided_slice %82 {offsets = [1, 0, 0], sizes = [1, 8, 16], strides = [1, 1, 1]} : vector<4x8x16xf32> to vector<1x8x16xf32>
    %151 = vector.shape_cast %150 : vector<1x8x16xf32> to vector<8x16xf32>
    %152 = vector.broadcast %149 : f32 to vector<8x16xf32>
    %153 = arith.mulf %152, %151 : vector<8x16xf32>
    %154 = arith.addf %143, %153 : vector<8x16xf32>
    %c1_63 = arith.constant 1 : index
    %c1_64 = arith.constant 1 : index
    %155 = memref.load %arg16[%c1_63, %c1_64] : memref<4x4xf32, #tpu.memory_space<smem>>
    %156 = vector.extract_strided_slice %92 {offsets = [1, 0, 0], sizes = [1, 8, 16], strides = [1, 1, 1]} : vector<4x8x16xf32> to vector<1x8x16xf32>
    %157 = vector.shape_cast %156 : vector<1x8x16xf32> to vector<8x16xf32>
    %158 = vector.broadcast %155 : f32 to vector<8x16xf32>
    %159 = arith.mulf %158, %157 : vector<8x16xf32>
    %160 = arith.addf %148, %159 : vector<8x16xf32>
    %c1_65 = arith.constant 1 : index
    %c2_66 = arith.constant 2 : index
    %161 = memref.load %arg15[%c1_65, %c2_66] : memref<4x4xf32, #tpu.memory_space<smem>>
    %162 = vector.extract_strided_slice %82 {offsets = [2, 0, 0], sizes = [1, 8, 16], strides = [1, 1, 1]} : vector<4x8x16xf32> to vector<1x8x16xf32>
    %163 = vector.shape_cast %162 : vector<1x8x16xf32> to vector<8x16xf32>
    %164 = vector.broadcast %161 : f32 to vector<8x16xf32>
    %165 = arith.mulf %164, %163 : vector<8x16xf32>
    %166 = arith.addf %154, %165 : vector<8x16xf32>
    %c1_67 = arith.constant 1 : index
    %c2_68 = arith.constant 2 : index
    %167 = memref.load %arg16[%c1_67, %c2_68] : memref<4x4xf32, #tpu.memory_space<smem>>
    %168 = vector.extract_strided_slice %92 {offsets = [2, 0, 0], sizes = [1, 8, 16], strides = [1, 1, 1]} : vector<4x8x16xf32> to vector<1x8x16xf32>
    %169 = vector.shape_cast %168 : vector<1x8x16xf32> to vector<8x16xf32>
    %170 = vector.broadcast %167 : f32 to vector<8x16xf32>
    %171 = arith.mulf %170, %169 : vector<8x16xf32>
    %172 = arith.addf %160, %171 : vector<8x16xf32>
    %c1_69 = arith.constant 1 : index
    %c3_70 = arith.constant 3 : index
    %173 = memref.load %arg15[%c1_69, %c3_70] : memref<4x4xf32, #tpu.memory_space<smem>>
    %174 = vector.extract_strided_slice %82 {offsets = [3, 0, 0], sizes = [1, 8, 16], strides = [1, 1, 1]} : vector<4x8x16xf32> to vector<1x8x16xf32>
    %175 = vector.shape_cast %174 : vector<1x8x16xf32> to vector<8x16xf32>
    %176 = vector.broadcast %173 : f32 to vector<8x16xf32>
    %177 = arith.mulf %176, %175 : vector<8x16xf32>
    %178 = arith.addf %166, %177 : vector<8x16xf32>
    %c1_71 = arith.constant 1 : index
    %c3_72 = arith.constant 3 : index
    %179 = memref.load %arg16[%c1_71, %c3_72] : memref<4x4xf32, #tpu.memory_space<smem>>
    %180 = vector.extract_strided_slice %92 {offsets = [3, 0, 0], sizes = [1, 8, 16], strides = [1, 1, 1]} : vector<4x8x16xf32> to vector<1x8x16xf32>
    %181 = vector.shape_cast %180 : vector<1x8x16xf32> to vector<8x16xf32>
    %182 = vector.broadcast %179 : f32 to vector<8x16xf32>
    %183 = arith.mulf %182, %181 : vector<8x16xf32>
    %184 = arith.addf %172, %183 : vector<8x16xf32>
    %c2_73 = arith.constant 2 : index
    %c0_74 = arith.constant 0 : index
    %185 = memref.load %arg15[%c2_73, %c0_74] : memref<4x4xf32, #tpu.memory_space<smem>>
    %186 = vector.extract_strided_slice %82 {offsets = [0, 0, 0], sizes = [1, 8, 16], strides = [1, 1, 1]} : vector<4x8x16xf32> to vector<1x8x16xf32>
    %187 = vector.shape_cast %186 : vector<1x8x16xf32> to vector<8x16xf32>
    %188 = vector.broadcast %185 : f32 to vector<8x16xf32>
    %189 = arith.mulf %188, %187 : vector<8x16xf32>
    %c2_75 = arith.constant 2 : index
    %c0_76 = arith.constant 0 : index
    %190 = memref.load %arg16[%c2_75, %c0_76] : memref<4x4xf32, #tpu.memory_space<smem>>
    %191 = vector.extract_strided_slice %92 {offsets = [0, 0, 0], sizes = [1, 8, 16], strides = [1, 1, 1]} : vector<4x8x16xf32> to vector<1x8x16xf32>
    %192 = vector.shape_cast %191 : vector<1x8x16xf32> to vector<8x16xf32>
    %193 = vector.broadcast %190 : f32 to vector<8x16xf32>
    %194 = arith.mulf %193, %192 : vector<8x16xf32>
    %c2_77 = arith.constant 2 : index
    %c1_78 = arith.constant 1 : index
    %195 = memref.load %arg15[%c2_77, %c1_78] : memref<4x4xf32, #tpu.memory_space<smem>>
    %196 = vector.extract_strided_slice %82 {offsets = [1, 0, 0], sizes = [1, 8, 16], strides = [1, 1, 1]} : vector<4x8x16xf32> to vector<1x8x16xf32>
    %197 = vector.shape_cast %196 : vector<1x8x16xf32> to vector<8x16xf32>
    %198 = vector.broadcast %195 : f32 to vector<8x16xf32>
    %199 = arith.mulf %198, %197 : vector<8x16xf32>
    %200 = arith.addf %189, %199 : vector<8x16xf32>
    %c2_79 = arith.constant 2 : index
    %c1_80 = arith.constant 1 : index
    %201 = memref.load %arg16[%c2_79, %c1_80] : memref<4x4xf32, #tpu.memory_space<smem>>
    %202 = vector.extract_strided_slice %92 {offsets = [1, 0, 0], sizes = [1, 8, 16], strides = [1, 1, 1]} : vector<4x8x16xf32> to vector<1x8x16xf32>
    %203 = vector.shape_cast %202 : vector<1x8x16xf32> to vector<8x16xf32>
    %204 = vector.broadcast %201 : f32 to vector<8x16xf32>
    %205 = arith.mulf %204, %203 : vector<8x16xf32>
    %206 = arith.addf %194, %205 : vector<8x16xf32>
    %c2_81 = arith.constant 2 : index
    %c2_82 = arith.constant 2 : index
    %207 = memref.load %arg15[%c2_81, %c2_82] : memref<4x4xf32, #tpu.memory_space<smem>>
    %208 = vector.extract_strided_slice %82 {offsets = [2, 0, 0], sizes = [1, 8, 16], strides = [1, 1, 1]} : vector<4x8x16xf32> to vector<1x8x16xf32>
    %209 = vector.shape_cast %208 : vector<1x8x16xf32> to vector<8x16xf32>
    %210 = vector.broadcast %207 : f32 to vector<8x16xf32>
    %211 = arith.mulf %210, %209 : vector<8x16xf32>
    %212 = arith.addf %200, %211 : vector<8x16xf32>
    %c2_83 = arith.constant 2 : index
    %c2_84 = arith.constant 2 : index
    %213 = memref.load %arg16[%c2_83, %c2_84] : memref<4x4xf32, #tpu.memory_space<smem>>
    %214 = vector.extract_strided_slice %92 {offsets = [2, 0, 0], sizes = [1, 8, 16], strides = [1, 1, 1]} : vector<4x8x16xf32> to vector<1x8x16xf32>
    %215 = vector.shape_cast %214 : vector<1x8x16xf32> to vector<8x16xf32>
    %216 = vector.broadcast %213 : f32 to vector<8x16xf32>
    %217 = arith.mulf %216, %215 : vector<8x16xf32>
    %218 = arith.addf %206, %217 : vector<8x16xf32>
    %c2_85 = arith.constant 2 : index
    %c3_86 = arith.constant 3 : index
    %219 = memref.load %arg15[%c2_85, %c3_86] : memref<4x4xf32, #tpu.memory_space<smem>>
    %220 = vector.extract_strided_slice %82 {offsets = [3, 0, 0], sizes = [1, 8, 16], strides = [1, 1, 1]} : vector<4x8x16xf32> to vector<1x8x16xf32>
    %221 = vector.shape_cast %220 : vector<1x8x16xf32> to vector<8x16xf32>
    %222 = vector.broadcast %219 : f32 to vector<8x16xf32>
    %223 = arith.mulf %222, %221 : vector<8x16xf32>
    %224 = arith.addf %212, %223 : vector<8x16xf32>
    %c2_87 = arith.constant 2 : index
    %c3_88 = arith.constant 3 : index
    %225 = memref.load %arg16[%c2_87, %c3_88] : memref<4x4xf32, #tpu.memory_space<smem>>
    %226 = vector.extract_strided_slice %92 {offsets = [3, 0, 0], sizes = [1, 8, 16], strides = [1, 1, 1]} : vector<4x8x16xf32> to vector<1x8x16xf32>
    %227 = vector.shape_cast %226 : vector<1x8x16xf32> to vector<8x16xf32>
    %228 = vector.broadcast %225 : f32 to vector<8x16xf32>
    %229 = arith.mulf %228, %227 : vector<8x16xf32>
    %230 = arith.addf %218, %229 : vector<8x16xf32>
    %c3_89 = arith.constant 3 : index
    %c0_90 = arith.constant 0 : index
    %231 = memref.load %arg15[%c3_89, %c0_90] : memref<4x4xf32, #tpu.memory_space<smem>>
    %232 = vector.extract_strided_slice %82 {offsets = [0, 0, 0], sizes = [1, 8, 16], strides = [1, 1, 1]} : vector<4x8x16xf32> to vector<1x8x16xf32>
    %233 = vector.shape_cast %232 : vector<1x8x16xf32> to vector<8x16xf32>
    %234 = vector.broadcast %231 : f32 to vector<8x16xf32>
    %235 = arith.mulf %234, %233 : vector<8x16xf32>
    %c3_91 = arith.constant 3 : index
    %c0_92 = arith.constant 0 : index
    %236 = memref.load %arg16[%c3_91, %c0_92] : memref<4x4xf32, #tpu.memory_space<smem>>
    %237 = vector.extract_strided_slice %92 {offsets = [0, 0, 0], sizes = [1, 8, 16], strides = [1, 1, 1]} : vector<4x8x16xf32> to vector<1x8x16xf32>
    %238 = vector.shape_cast %237 : vector<1x8x16xf32> to vector<8x16xf32>
    %239 = vector.broadcast %236 : f32 to vector<8x16xf32>
    %240 = arith.mulf %239, %238 : vector<8x16xf32>
    %c3_93 = arith.constant 3 : index
    %c1_94 = arith.constant 1 : index
    %241 = memref.load %arg15[%c3_93, %c1_94] : memref<4x4xf32, #tpu.memory_space<smem>>
    %242 = vector.extract_strided_slice %82 {offsets = [1, 0, 0], sizes = [1, 8, 16], strides = [1, 1, 1]} : vector<4x8x16xf32> to vector<1x8x16xf32>
    %243 = vector.shape_cast %242 : vector<1x8x16xf32> to vector<8x16xf32>
    %244 = vector.broadcast %241 : f32 to vector<8x16xf32>
    %245 = arith.mulf %244, %243 : vector<8x16xf32>
    %246 = arith.addf %235, %245 : vector<8x16xf32>
    %c3_95 = arith.constant 3 : index
    %c1_96 = arith.constant 1 : index
    %247 = memref.load %arg16[%c3_95, %c1_96] : memref<4x4xf32, #tpu.memory_space<smem>>
    %248 = vector.extract_strided_slice %92 {offsets = [1, 0, 0], sizes = [1, 8, 16], strides = [1, 1, 1]} : vector<4x8x16xf32> to vector<1x8x16xf32>
    %249 = vector.shape_cast %248 : vector<1x8x16xf32> to vector<8x16xf32>
    %250 = vector.broadcast %247 : f32 to vector<8x16xf32>
    %251 = arith.mulf %250, %249 : vector<8x16xf32>
    %252 = arith.addf %240, %251 : vector<8x16xf32>
    %c3_97 = arith.constant 3 : index
    %c2_98 = arith.constant 2 : index
    %253 = memref.load %arg15[%c3_97, %c2_98] : memref<4x4xf32, #tpu.memory_space<smem>>
    %254 = vector.extract_strided_slice %82 {offsets = [2, 0, 0], sizes = [1, 8, 16], strides = [1, 1, 1]} : vector<4x8x16xf32> to vector<1x8x16xf32>
    %255 = vector.shape_cast %254 : vector<1x8x16xf32> to vector<8x16xf32>
    %256 = vector.broadcast %253 : f32 to vector<8x16xf32>
    %257 = arith.mulf %256, %255 : vector<8x16xf32>
    %258 = arith.addf %246, %257 : vector<8x16xf32>
    %c3_99 = arith.constant 3 : index
    %c2_100 = arith.constant 2 : index
    %259 = memref.load %arg16[%c3_99, %c2_100] : memref<4x4xf32, #tpu.memory_space<smem>>
    %260 = vector.extract_strided_slice %92 {offsets = [2, 0, 0], sizes = [1, 8, 16], strides = [1, 1, 1]} : vector<4x8x16xf32> to vector<1x8x16xf32>
    %261 = vector.shape_cast %260 : vector<1x8x16xf32> to vector<8x16xf32>
    %262 = vector.broadcast %259 : f32 to vector<8x16xf32>
    %263 = arith.mulf %262, %261 : vector<8x16xf32>
    %264 = arith.addf %252, %263 : vector<8x16xf32>
    %c3_101 = arith.constant 3 : index
    %c3_102 = arith.constant 3 : index
    %265 = memref.load %arg15[%c3_101, %c3_102] : memref<4x4xf32, #tpu.memory_space<smem>>
    %266 = vector.extract_strided_slice %82 {offsets = [3, 0, 0], sizes = [1, 8, 16], strides = [1, 1, 1]} : vector<4x8x16xf32> to vector<1x8x16xf32>
    %267 = vector.shape_cast %266 : vector<1x8x16xf32> to vector<8x16xf32>
    %268 = vector.broadcast %265 : f32 to vector<8x16xf32>
    %269 = arith.mulf %268, %267 : vector<8x16xf32>
    %270 = arith.addf %258, %269 : vector<8x16xf32>
    %c3_103 = arith.constant 3 : index
    %c3_104 = arith.constant 3 : index
    %271 = memref.load %arg16[%c3_103, %c3_104] : memref<4x4xf32, #tpu.memory_space<smem>>
    %272 = vector.extract_strided_slice %92 {offsets = [3, 0, 0], sizes = [1, 8, 16], strides = [1, 1, 1]} : vector<4x8x16xf32> to vector<1x8x16xf32>
    %273 = vector.shape_cast %272 : vector<1x8x16xf32> to vector<8x16xf32>
    %274 = vector.broadcast %271 : f32 to vector<8x16xf32>
    %275 = arith.mulf %274, %273 : vector<8x16xf32>
    %276 = arith.addf %264, %275 : vector<8x16xf32>
    %277 = vector.shape_cast %132 : vector<8x16xf32> to vector<1x8x16xf32>
    %278 = vector.shape_cast %178 : vector<8x16xf32> to vector<1x8x16xf32>
    %279 = vector.shape_cast %224 : vector<8x16xf32> to vector<1x8x16xf32>
    %280 = vector.shape_cast %270 : vector<8x16xf32> to vector<1x8x16xf32>
    %281 = tpu.concatenate %277, %278, %279, %280 in 0 : vector<1x8x16xf32>, vector<1x8x16xf32>, vector<1x8x16xf32>, vector<1x8x16xf32> -> vector<4x8x16xf32>
    %282 = arith.truncf %281 : vector<4x8x16xf32> to vector<4x8x16xbf16>
    %283 = vector.shape_cast %138 : vector<8x16xf32> to vector<1x8x16xf32>
    %284 = vector.shape_cast %184 : vector<8x16xf32> to vector<1x8x16xf32>
    %285 = vector.shape_cast %230 : vector<8x16xf32> to vector<1x8x16xf32>
    %286 = vector.shape_cast %276 : vector<8x16xf32> to vector<1x8x16xf32>
    %287 = tpu.concatenate %283, %284, %285, %286 in 0 : vector<1x8x16xf32>, vector<1x8x16xf32>, vector<1x8x16xf32>, vector<1x8x16xf32> -> vector<4x8x16xf32>
    %288 = arith.truncf %287 : vector<4x8x16xf32> to vector<4x8x16xbf16>
    %cst_105 = arith.constant dense<0.000000e+00> : vector<4x8x16xf32>
    %289 = tpu.matmul %282, %69, %cst_105 {dimension_numbers = #tpu.dot_dimension_numbers<[2], [1], [1], [2], [0, 0, 0, 1, 1, 2], [0], [0]>} : vector<4x8x16xbf16>, vector<4x16x16xbf16>, vector<4x8x16xf32> -> vector<4x8x16xf32>
    %cst_106 = arith.constant dense<0.000000e+00> : vector<4x16x16xf32>
    %290 = tpu.matmul %288, %67, %cst_106 {dimension_numbers = #tpu.dot_dimension_numbers<[1], [1], [2], [2], [0, 0, 0, 2, 1, 2], [0], [0]>} : vector<4x8x16xbf16>, vector<4x8x16xbf16>, vector<4x16x16xf32> -> vector<4x16x16xf32>
    %291 = arith.truncf %289 : vector<4x8x16xf32> to vector<4x8x16xbf16>
    %c0_107 = arith.constant 0 : index
    %c0_108 = arith.constant 0 : index
    %c0_109 = arith.constant 0 : index
    %292 = vector.load %arg11[%c0_107, %c0_108, %c0_109] : memref<4x16x32xbf16, #tpu.memory_space<vmem>>, vector<4x16x32xbf16>
    %cst_110 = arith.constant dense<0.000000e+00> : vector<4x8x32xf32>
    %293 = tpu.matmul %291, %292, %cst_110 {dimension_numbers = #tpu.dot_dimension_numbers<[2], [1], [1], [2], [0, 0, 0, 1, 1, 2], [0], [0]>} : vector<4x8x16xbf16>, vector<4x16x32xbf16>, vector<4x8x32xf32> -> vector<4x8x32xf32>
    %294 = arith.truncf %290 : vector<4x16x16xf32> to vector<4x16x16xbf16>
    %c0_111 = arith.constant 0 : index
    %c0_112 = arith.constant 0 : index
    %c0_113 = arith.constant 0 : index
    %295 = vector.load %arg13[%c0_111, %c0_112, %c0_113] : memref<4x16x32xbf16, #tpu.memory_space<vmem>>, vector<4x16x32xbf16>
    %cst_114 = arith.constant dense<0.000000e+00> : vector<4x16x32xf32>
    %296 = tpu.matmul %294, %295, %cst_114 {dimension_numbers = #tpu.dot_dimension_numbers<[2], [1], [1], [2], [0, 0, 0, 1, 1, 2], [0], [0]>} : vector<4x16x16xbf16>, vector<4x16x32xbf16>, vector<4x16x32xf32> -> vector<4x16x32xf32>
    %cst_115 = arith.constant dense<0.000000e+00> : vector<8x32xf32>
    %297 = vector.multi_reduction <add>, %293, %cst_115 [0] : vector<4x8x32xf32> to vector<8x32xf32>
    %c0_116 = arith.constant 0 : index
    %c0_117 = arith.constant 0 : index
    %298 = vector.load %arg12[%c0_116, %c0_117] : memref<1x32xf32, #tpu.memory_space<vmem>>, vector<1x32xf32>
    %299 = vector.broadcast %298 : vector<1x32xf32> to vector<8x32xf32>
    %300 = arith.addf %297, %299 : vector<8x32xf32>
    %cst_118 = arith.constant dense<0.000000e+00> : vector<16x32xf32>
    %301 = vector.multi_reduction <add>, %296, %cst_118 [0] : vector<4x16x32xf32> to vector<16x32xf32>
    %c0_119 = arith.constant 0 : index
    %c0_120 = arith.constant 0 : index
    %302 = vector.load %arg14[%c0_119, %c0_120] : memref<1x32xf32, #tpu.memory_space<vmem>>, vector<1x32xf32>
    %303 = vector.broadcast %302 : vector<1x32xf32> to vector<16x32xf32>
    %304 = arith.addf %301, %303 : vector<16x32xf32>
    %305 = arith.addf %1, %300 : vector<8x32xf32>
    %306 = arith.addf %3, %304 : vector<16x32xf32>
    %c0_121 = arith.constant 0 : index
    %c0_122 = arith.constant 0 : index
    %307 = vector.load %arg17[%c0_121, %c0_122] : memref<1x32xf32, #tpu.memory_space<vmem>>, vector<1x32xf32>
    %c0_123 = arith.constant 0 : index
    %c0_124 = arith.constant 0 : index
    %308 = vector.load %arg18[%c0_123, %c0_124] : memref<1x32xf32, #tpu.memory_space<vmem>>, vector<1x32xf32>
    %c0_125 = arith.constant 0 : index
    %c0_126 = arith.constant 0 : index
    %309 = vector.load %arg19[%c0_125, %c0_126] : memref<32x256xbf16, #tpu.memory_space<vmem>>, vector<32x256xbf16>
    %c0_127 = arith.constant 0 : index
    %c0_128 = arith.constant 0 : index
    %310 = vector.load %arg20[%c0_127, %c0_128] : memref<1x256xf32, #tpu.memory_space<vmem>>, vector<1x256xf32>
    %c0_129 = arith.constant 0 : index
    %c0_130 = arith.constant 0 : index
    %311 = vector.load %arg21[%c0_129, %c0_130] : memref<256x32xbf16, #tpu.memory_space<vmem>>, vector<256x32xbf16>
    %c0_131 = arith.constant 0 : index
    %c0_132 = arith.constant 0 : index
    %312 = vector.load %arg22[%c0_131, %c0_132] : memref<1x32xf32, #tpu.memory_space<vmem>>, vector<1x32xf32>
    %cst_133 = arith.constant dense<0.000000e+00> : vector<8xf32>
    %313 = vector.multi_reduction <add>, %305, %cst_133 [1] : vector<8x32xf32> to vector<8xf32>
    %314 = vector.shape_cast %313 : vector<8xf32> to vector<8x1xf32>
    %cst_134 = arith.constant 3.200000e+01 : f32
    %315 = vector.broadcast %cst_134 : f32 to vector<8x1xf32>
    %316 = arith.divf %314, %315 : vector<8x1xf32>
    %317 = vector.broadcast %316 : vector<8x1xf32> to vector<8x32xf32>
    %318 = arith.subf %305, %317 : vector<8x32xf32>
    %319 = arith.mulf %318, %318 : vector<8x32xf32>
    %cst_135 = arith.constant dense<0.000000e+00> : vector<8xf32>
    %320 = vector.multi_reduction <add>, %319, %cst_135 [1] : vector<8x32xf32> to vector<8xf32>
    %321 = vector.shape_cast %320 : vector<8xf32> to vector<8x1xf32>
    %cst_136 = arith.constant 3.200000e+01 : f32
    %322 = vector.broadcast %cst_136 : f32 to vector<8x1xf32>
    %323 = arith.divf %321, %322 : vector<8x1xf32>
    %324 = vector.broadcast %316 : vector<8x1xf32> to vector<8x32xf32>
    %325 = arith.subf %305, %324 : vector<8x32xf32>
    %cst_137 = arith.constant 9.99999974E-6 : f32
    %326 = vector.broadcast %cst_137 : f32 to vector<8x1xf32>
    %327 = arith.addf %323, %326 : vector<8x1xf32>
    %328 = math.rsqrt %327 : vector<8x1xf32>
    %329 = vector.broadcast %328 : vector<8x1xf32> to vector<8x32xf32>
    %330 = arith.mulf %325, %329 : vector<8x32xf32>
    %331 = vector.broadcast %307 : vector<1x32xf32> to vector<8x32xf32>
    %332 = arith.mulf %330, %331 : vector<8x32xf32>
    %333 = vector.broadcast %308 : vector<1x32xf32> to vector<8x32xf32>
    %334 = arith.addf %332, %333 : vector<8x32xf32>
    %335 = arith.truncf %334 : vector<8x32xf32> to vector<8x32xbf16>
    %cst_138 = arith.constant dense<0.000000e+00> : vector<8x256xf32>
    %336 = tpu.matmul %335, %309, %cst_138 {dimension_numbers = #tpu.dot_dimension_numbers<[1], [0], [0], [1], [0, 0, 1, 1], [], []>} : vector<8x32xbf16>, vector<32x256xbf16>, vector<8x256xf32> -> vector<8x256xf32>
    %337 = vector.broadcast %310 : vector<1x256xf32> to vector<8x256xf32>
    %338 = arith.addf %336, %337 : vector<8x256xf32>
    %339 = arith.mulf %338, %338 : vector<8x256xf32>
    %340 = arith.mulf %338, %339 : vector<8x256xf32>
    %cst_139 = arith.constant 4.471500e-02 : f32
    %341 = vector.broadcast %cst_139 : f32 to vector<8x256xf32>
    %342 = arith.mulf %341, %340 : vector<8x256xf32>
    %343 = arith.addf %338, %342 : vector<8x256xf32>
    %cst_140 = arith.constant 0.797884583 : f32
    %344 = vector.broadcast %cst_140 : f32 to vector<8x256xf32>
    %345 = arith.mulf %344, %343 : vector<8x256xf32>
    %346 = math.tanh %345 : vector<8x256xf32>
    %cst_141 = arith.constant 1.000000e+00 : f32
    %347 = vector.broadcast %cst_141 : f32 to vector<8x256xf32>
    %348 = arith.addf %347, %346 : vector<8x256xf32>
    %cst_142 = arith.constant 5.000000e-01 : f32
    %349 = vector.broadcast %cst_142 : f32 to vector<8x256xf32>
    %350 = arith.mulf %349, %348 : vector<8x256xf32>
    %351 = arith.mulf %338, %350 : vector<8x256xf32>
    %352 = arith.truncf %351 : vector<8x256xf32> to vector<8x256xbf16>
    %cst_143 = arith.constant dense<0.000000e+00> : vector<8x32xf32>
    %353 = tpu.matmul %352, %311, %cst_143 {dimension_numbers = #tpu.dot_dimension_numbers<[1], [0], [0], [1], [0, 0, 1, 1], [], []>} : vector<8x256xbf16>, vector<256x32xbf16>, vector<8x32xf32> -> vector<8x32xf32>
    %354 = vector.broadcast %312 : vector<1x32xf32> to vector<8x32xf32>
    %355 = arith.addf %353, %354 : vector<8x32xf32>
    %356 = arith.addf %305, %355 : vector<8x32xf32>
    %c0_144 = arith.constant 0 : index
    %c0_145 = arith.constant 0 : index
    %357 = vector.load %arg23[%c0_144, %c0_145] : memref<1x32xf32, #tpu.memory_space<vmem>>, vector<1x32xf32>
    %c0_146 = arith.constant 0 : index
    %c0_147 = arith.constant 0 : index
    %358 = vector.load %arg24[%c0_146, %c0_147] : memref<1x32xf32, #tpu.memory_space<vmem>>, vector<1x32xf32>
    %c0_148 = arith.constant 0 : index
    %c0_149 = arith.constant 0 : index
    %359 = vector.load %arg25[%c0_148, %c0_149] : memref<32x256xbf16, #tpu.memory_space<vmem>>, vector<32x256xbf16>
    %c0_150 = arith.constant 0 : index
    %c0_151 = arith.constant 0 : index
    %360 = vector.load %arg26[%c0_150, %c0_151] : memref<1x256xf32, #tpu.memory_space<vmem>>, vector<1x256xf32>
    %c0_152 = arith.constant 0 : index
    %c0_153 = arith.constant 0 : index
    %361 = vector.load %arg27[%c0_152, %c0_153] : memref<256x32xbf16, #tpu.memory_space<vmem>>, vector<256x32xbf16>
    %c0_154 = arith.constant 0 : index
    %c0_155 = arith.constant 0 : index
    %362 = vector.load %arg28[%c0_154, %c0_155] : memref<1x32xf32, #tpu.memory_space<vmem>>, vector<1x32xf32>
    %cst_156 = arith.constant dense<0.000000e+00> : vector<16xf32>
    %363 = vector.multi_reduction <add>, %306, %cst_156 [1] : vector<16x32xf32> to vector<16xf32>
    %364 = vector.shape_cast %363 : vector<16xf32> to vector<16x1xf32>
    %cst_157 = arith.constant 3.200000e+01 : f32
    %365 = vector.broadcast %cst_157 : f32 to vector<16x1xf32>
    %366 = arith.divf %364, %365 : vector<16x1xf32>
    %367 = vector.broadcast %366 : vector<16x1xf32> to vector<16x32xf32>
    %368 = arith.subf %306, %367 : vector<16x32xf32>
    %369 = arith.mulf %368, %368 : vector<16x32xf32>
    %cst_158 = arith.constant dense<0.000000e+00> : vector<16xf32>
    %370 = vector.multi_reduction <add>, %369, %cst_158 [1] : vector<16x32xf32> to vector<16xf32>
    %371 = vector.shape_cast %370 : vector<16xf32> to vector<16x1xf32>
    %cst_159 = arith.constant 3.200000e+01 : f32
    %372 = vector.broadcast %cst_159 : f32 to vector<16x1xf32>
    %373 = arith.divf %371, %372 : vector<16x1xf32>
    %374 = vector.broadcast %366 : vector<16x1xf32> to vector<16x32xf32>
    %375 = arith.subf %306, %374 : vector<16x32xf32>
    %cst_160 = arith.constant 9.99999974E-6 : f32
    %376 = vector.broadcast %cst_160 : f32 to vector<16x1xf32>
    %377 = arith.addf %373, %376 : vector<16x1xf32>
    %378 = math.rsqrt %377 : vector<16x1xf32>
    %379 = vector.broadcast %378 : vector<16x1xf32> to vector<16x32xf32>
    %380 = arith.mulf %375, %379 : vector<16x32xf32>
    %381 = vector.broadcast %357 : vector<1x32xf32> to vector<16x32xf32>
    %382 = arith.mulf %380, %381 : vector<16x32xf32>
    %383 = vector.broadcast %358 : vector<1x32xf32> to vector<16x32xf32>
    %384 = arith.addf %382, %383 : vector<16x32xf32>
    %385 = arith.truncf %384 : vector<16x32xf32> to vector<16x32xbf16>
    %cst_161 = arith.constant dense<0.000000e+00> : vector<16x256xf32>
    %386 = tpu.matmul %385, %359, %cst_161 {dimension_numbers = #tpu.dot_dimension_numbers<[1], [0], [0], [1], [0, 0, 1, 1], [], []>} : vector<16x32xbf16>, vector<32x256xbf16>, vector<16x256xf32> -> vector<16x256xf32>
    %387 = vector.broadcast %360 : vector<1x256xf32> to vector<16x256xf32>
    %388 = arith.addf %386, %387 : vector<16x256xf32>
    %389 = arith.mulf %388, %388 : vector<16x256xf32>
    %390 = arith.mulf %388, %389 : vector<16x256xf32>
    %cst_162 = arith.constant 4.471500e-02 : f32
    %391 = vector.broadcast %cst_162 : f32 to vector<16x256xf32>
    %392 = arith.mulf %391, %390 : vector<16x256xf32>
    %393 = arith.addf %388, %392 : vector<16x256xf32>
    %cst_163 = arith.constant 0.797884583 : f32
    %394 = vector.broadcast %cst_163 : f32 to vector<16x256xf32>
    %395 = arith.mulf %394, %393 : vector<16x256xf32>
    %396 = math.tanh %395 : vector<16x256xf32>
    %cst_164 = arith.constant 1.000000e+00 : f32
    %397 = vector.broadcast %cst_164 : f32 to vector<16x256xf32>
    %398 = arith.addf %397, %396 : vector<16x256xf32>
    %cst_165 = arith.constant 5.000000e-01 : f32
    %399 = vector.broadcast %cst_165 : f32 to vector<16x256xf32>
    %400 = arith.mulf %399, %398 : vector<16x256xf32>
    %401 = arith.mulf %388, %400 : vector<16x256xf32>
    %402 = arith.truncf %401 : vector<16x256xf32> to vector<16x256xbf16>
    %cst_166 = arith.constant dense<0.000000e+00> : vector<16x32xf32>
    %403 = tpu.matmul %402, %361, %cst_166 {dimension_numbers = #tpu.dot_dimension_numbers<[1], [0], [0], [1], [0, 0, 1, 1], [], []>} : vector<16x256xbf16>, vector<256x32xbf16>, vector<16x32xf32> -> vector<16x32xf32>
    %404 = vector.broadcast %362 : vector<1x32xf32> to vector<16x32xf32>
    %405 = arith.addf %403, %404 : vector<16x32xf32>
    %406 = arith.addf %306, %405 : vector<16x32xf32>
    %c0_167 = arith.constant 0 : index
    %c0_168 = arith.constant 0 : index
    %c0_169 = arith.constant 0 : index
    %407 = vector.load %arg29[%c0_167, %c0_168, %c0_169] : memref<1x8x32xf32, #tpu.memory_space<vmem>>, vector<1x8x32xf32>
    %408 = vector.shape_cast %407 : vector<1x8x32xf32> to vector<8x32xf32>
    %409 = vector.shape_cast %356 : vector<8x32xf32> to vector<1x8x32xf32>
    tpu.vector_store %arg29[%c0_167, %c0_168, %c0_169], %409 {strides = array<i32>} : memref<1x8x32xf32, #tpu.memory_space<vmem>>, vector<1x8x32xf32>,
    %c0_170 = arith.constant 0 : index
    %c0_171 = arith.constant 0 : index
    %c0_172 = arith.constant 0 : index
    %410 = vector.load %arg30[%c0_170, %c0_171, %c0_172] : memref<1x16x32xf32, #tpu.memory_space<vmem>>, vector<1x16x32xf32>
    %411 = vector.shape_cast %410 : vector<1x16x32xf32> to vector<16x32xf32>
    %412 = vector.shape_cast %406 : vector<16x32xf32> to vector<1x16x32xf32>
    tpu.vector_store %arg30[%c0_170, %c0_171, %c0_172], %412 {strides = array<i32>} : memref<1x16x32xf32, #tpu.memory_space<vmem>>, vector<1x16x32xf32>,
    return
  }
  func.func @transform_0(%arg0: i32) -> (i32, i32, i32) {
    %c0_i32 = arith.constant 0 : i32
    %c0_i32_0 = arith.constant 0 : i32
    %c0_i32_1 = arith.constant 0 : i32
    return %arg0, %c0_i32, %c0_i32_0 : i32, i32, i32
  }
  func.func @transform_1(%arg0: i32) -> (i32, i32, i32) {
    %c0_i32 = arith.constant 0 : i32
    %c0_i32_0 = arith.constant 0 : i32
    %c0_i32_1 = arith.constant 0 : i32
    return %arg0, %c0_i32, %c0_i32_0 : i32, i32, i32
  }
  func.func @transform_2(%arg0: i32) -> (i32, i32) {
    %c0_i32 = arith.constant 0 : i32
    %c0_i32_0 = arith.constant 0 : i32
    %c0_i32_1 = arith.constant 0 : i32
    return %c0_i32, %c0_i32_0 : i32, i32
  }
  func.func @transform_3(%arg0: i32) -> (i32, i32) {
    %c0_i32 = arith.constant 0 : i32
    %c0_i32_0 = arith.constant 0 : i32
    %c0_i32_1 = arith.constant 0 : i32
    return %c0_i32, %c0_i32_0 : i32, i32
  }
  func.func @transform_4(%arg0: i32) -> (i32, i32) {
    %c0_i32 = arith.constant 0 : i32
    %c0_i32_0 = arith.constant 0 : i32
    %c0_i32_1 = arith.constant 0 : i32
    return %c0_i32, %c0_i32_0 : i32, i32
  }
  func.func @transform_5(%arg0: i32) -> (i32, i32) {
    %c0_i32 = arith.constant 0 : i32
    %c0_i32_0 = arith.constant 0 : i32
    %c0_i32_1 = arith.constant 0 : i32
    return %c0_i32, %c0_i32_0 : i32, i32
  }
  func.func @transform_6(%arg0: i32) -> (i32, i32, i32) {
    %c0_i32 = arith.constant 0 : i32
    %c0_i32_0 = arith.constant 0 : i32
    %c0_i32_1 = arith.constant 0 : i32
    %c0_i32_2 = arith.constant 0 : i32
    return %c0_i32, %c0_i32_0, %c0_i32_1 : i32, i32, i32
  }
  func.func @transform_7(%arg0: i32) -> (i32, i32, i32) {
    %c0_i32 = arith.constant 0 : i32
    %c0_i32_0 = arith.constant 0 : i32
    %c0_i32_1 = arith.constant 0 : i32
    %c0_i32_2 = arith.constant 0 : i32
    return %c0_i32, %c0_i32_0, %c0_i32_1 : i32, i32, i32
  }
  func.func @transform_8(%arg0: i32) -> (i32, i32, i32) {
    %c0_i32 = arith.constant 0 : i32
    %c0_i32_0 = arith.constant 0 : i32
    %c0_i32_1 = arith.constant 0 : i32
    %c0_i32_2 = arith.constant 0 : i32
    return %c0_i32, %c0_i32_0, %c0_i32_1 : i32, i32, i32
  }
  func.func @transform_9(%arg0: i32) -> (i32, i32, i32) {
    %c0_i32 = arith.constant 0 : i32
    %c0_i32_0 = arith.constant 0 : i32
    %c0_i32_1 = arith.constant 0 : i32
    %c0_i32_2 = arith.constant 0 : i32
    return %c0_i32, %c0_i32_0, %c0_i32_1 : i32, i32, i32
  }
  func.func @transform_10(%arg0: i32) -> (i32, i32, i32) {
    %c0_i32 = arith.constant 0 : i32
    %c0_i32_0 = arith.constant 0 : i32
    %c0_i32_1 = arith.constant 0 : i32
    %c0_i32_2 = arith.constant 0 : i32
    return %c0_i32, %c0_i32_0, %c0_i32_1 : i32, i32, i32
  }
  func.func @transform_11(%arg0: i32) -> (i32, i32) {
    %c0_i32 = arith.constant 0 : i32
    %c0_i32_0 = arith.constant 0 : i32
    %c0_i32_1 = arith.constant 0 : i32
    return %c0_i32, %c0_i32_0 : i32, i32
  }
  func.func @transform_12(%arg0: i32) -> (i32, i32, i32) {
    %c0_i32 = arith.constant 0 : i32
    %c0_i32_0 = arith.constant 0 : i32
    %c0_i32_1 = arith.constant 0 : i32
    %c0_i32_2 = arith.constant 0 : i32
    return %c0_i32, %c0_i32_0, %c0_i32_1 : i32, i32, i32
  }
  func.func @transform_13(%arg0: i32) -> (i32, i32) {
    %c0_i32 = arith.constant 0 : i32
    %c0_i32_0 = arith.constant 0 : i32
    %c0_i32_1 = arith.constant 0 : i32
    return %c0_i32, %c0_i32_0 : i32, i32
  }
  func.func @transform_14(%arg0: i32) -> (i32, i32) {
    %c0_i32 = arith.constant 0 : i32
    %c0_i32_0 = arith.constant 0 : i32
    %c0_i32_1 = arith.constant 0 : i32
    return %c0_i32, %c0_i32_0 : i32, i32
  }
  func.func @transform_15(%arg0: i32) -> (i32, i32) {
    %c0_i32 = arith.constant 0 : i32
    %c0_i32_0 = arith.constant 0 : i32
    %c0_i32_1 = arith.constant 0 : i32
    return %c0_i32, %c0_i32_0 : i32, i32
  }
  func.func @transform_16(%arg0: i32) -> (i32, i32) {
    %c0_i32 = arith.constant 0 : i32
    %c0_i32_0 = arith.constant 0 : i32
    %c0_i32_1 = arith.constant 0 : i32
    return %c0_i32, %c0_i32_0 : i32, i32
  }
  func.func @transform_17(%arg0: i32) -> (i32, i32) {
    %c0_i32 = arith.constant 0 : i32
    %c0_i32_0 = arith.constant 0 : i32
    %c0_i32_1 = arith.constant 0 : i32
    return %c0_i32, %c0_i32_0 : i32, i32
  }
  func.func @transform_18(%arg0: i32) -> (i32, i32) {
    %c0_i32 = arith.constant 0 : i32
    %c0_i32_0 = arith.constant 0 : i32
    %c0_i32_1 = arith.constant 0 : i32
    return %c0_i32, %c0_i32_0 : i32, i32
  }
  func.func @transform_19(%arg0: i32) -> (i32, i32) {
    %c0_i32 = arith.constant 0 : i32
    %c0_i32_0 = arith.constant 0 : i32
    %c0_i32_1 = arith.constant 0 : i32
    return %c0_i32, %c0_i32_0 : i32, i32
  }
  func.func @transform_20(%arg0: i32) -> (i32, i32) {
    %c0_i32 = arith.constant 0 : i32
    %c0_i32_0 = arith.constant 0 : i32
    %c0_i32_1 = arith.constant 0 : i32
    return %c0_i32, %c0_i32_0 : i32, i32
  }
  func.func @transform_21(%arg0: i32) -> (i32, i32) {
    %c0_i32 = arith.constant 0 : i32
    %c0_i32_0 = arith.constant 0 : i32
    %c0_i32_1 = arith.constant 0 : i32
    return %c0_i32, %c0_i32_0 : i32, i32
  }
  func.func @transform_22(%arg0: i32) -> (i32, i32) {
    %c0_i32 = arith.constant 0 : i32
    %c0_i32_0 = arith.constant 0 : i32
    %c0_i32_1 = arith.constant 0 : i32
    return %c0_i32, %c0_i32_0 : i32, i32
  }
  func.func @transform_23(%arg0: i32) -> (i32, i32) {
    %c0_i32 = arith.constant 0 : i32
    %c0_i32_0 = arith.constant 0 : i32
    %c0_i32_1 = arith.constant 0 : i32
    return %c0_i32, %c0_i32_0 : i32, i32
  }
  func.func @transform_24(%arg0: i32) -> (i32, i32) {
    %c0_i32 = arith.constant 0 : i32
    %c0_i32_0 = arith.constant 0 : i32
    %c0_i32_1 = arith.constant 0 : i32
    return %c0_i32, %c0_i32_0 : i32, i32
  }
  func.func @transform_25(%arg0: i32) -> (i32, i32) {
    %c0_i32 = arith.constant 0 : i32
    %c0_i32_0 = arith.constant 0 : i32
    %c0_i32_1 = arith.constant 0 : i32
    return %c0_i32, %c0_i32_0 : i32, i32
  }
  func.func @transform_26(%arg0: i32) -> (i32, i32) {
    %c0_i32 = arith.constant 0 : i32
    %c0_i32_0 = arith.constant 0 : i32
    %c0_i32_1 = arith.constant 0 : i32
    return %c0_i32, %c0_i32_0 : i32, i32
  }
  func.func @transform_27(%arg0: i32) -> (i32, i32) {
    %c0_i32 = arith.constant 0 : i32
    %c0_i32_0 = arith.constant 0 : i32
    %c0_i32_1 = arith.constant 0 : i32
    return %c0_i32, %c0_i32_0 : i32, i32
  }
  func.func @transform_28(%arg0: i32) -> (i32, i32, i32) {
    %c0_i32 = arith.constant 0 : i32
    %c0_i32_0 = arith.constant 0 : i32
    %c0_i32_1 = arith.constant 0 : i32
    return %arg0, %c0_i32, %c0_i32_0 : i32, i32, i32
  }
  func.func @transform_29(%arg0: i32) -> (i32, i32, i32) {
    %c0_i32 = arith.constant 0 : i32
    %c0_i32_0 = arith.constant 0 : i32
    %c0_i32_1 = arith.constant 0 : i32
    return %arg0, %c0_i32, %c0_i32_0 : i32, i32, i32
  }
}

</mosaic_0001>

<llo_original>
// kernel: tpu_custom_call.1
$region0: #{tpu_custom_call.1}
  #allocation0 [shape = 'u32[]', space=smem, size = 0x4, offset = 0x4, fixed_abs, tag = 'smem constant byte address 0x4 - core index']
  #allocation1 [shape = 'u32[72,128]{1,0:T(1,128)}', space=vmem, size = 0x9000, scoped, tag = 'internal scratch']
  %s0 = inlined_call_operand.smem [shape: u32[30], index: -1, kind: input, shape index: {}]
  %s1 = sld [smem:[%s0]]
  %s2 = scalar_lea.smem %s0, 1
  %s3 = sld [smem:[%s2]]
  %s4 = scalar_lea.smem %s0, 2
  %s5 = sld [smem:[%s4]]
  %s6 = scalar_lea.smem %s0, 3
  %s7 = sld [smem:[%s6]]
  %s8 = scalar_lea.smem %s0, 4
  %s9 = sld [smem:[%s8]]
  %s10 = scalar_lea.smem %s0, 5
  %s11 = sld [smem:[%s10]]
  %s12 = scalar_lea.smem %s0, 6
  %s13 = sld [smem:[%s12]]
  %s14 = scalar_lea.smem %s0, 7
  %s15 = sld [smem:[%s14]]
  %s16 = scalar_lea.smem %s0, 8
  %s17 = sld [smem:[%s16]]
  %s18 = scalar_lea.smem %s0, 9
  %s19 = sld [smem:[%s18]]
  %s20 = scalar_lea.smem %s0, 10
  %s21 = sld [smem:[%s20]]
  %s22 = scalar_lea.smem %s0, 11
  %s23 = sld [smem:[%s22]]
  %s24 = scalar_lea.smem %s0, 12
  %s25 = sld [smem:[%s24]]
  %s26 = scalar_lea.smem %s0, 13
  %s27 = sld [smem:[%s26]]
  %s28 = scalar_lea.smem %s0, 14
  %s29 = sld [smem:[%s28]]
  %s30 = scalar_lea.smem %s0, 15
  %s31 = sld [smem:[%s30]]
  %s32 = scalar_lea.smem %s0, 16
  %s33 = sld [smem:[%s32]]
  %s34 = scalar_lea.smem %s0, 17
  %s35 = sld [smem:[%s34]]
  %s36 = scalar_lea.smem %s0, 18
  %s37 = sld [smem:[%s36]]
  %s38 = scalar_lea.smem %s0, 19
  %s39 = sld [smem:[%s38]]
  %s40 = scalar_lea.smem %s0, 20
  %s41 = sld [smem:[%s40]]
  %s42 = scalar_lea.smem %s0, 21
  %s43 = sld [smem:[%s42]]
  %s44 = scalar_lea.smem %s0, 22
  %s45 = sld [smem:[%s44]]
  %s46 = scalar_lea.smem %s0, 23
  %s47 = sld [smem:[%s46]]
  %s48 = scalar_lea.smem %s0, 24
  %s49 = sld [smem:[%s48]]
  %s50 = scalar_lea.smem %s0, 25
  %s51 = sld [smem:[%s50]]
  %s52 = scalar_lea.smem %s0, 26
  %s53 = sld [smem:[%s52]]
  %s54 = scalar_lea.smem %s0, 27
  %s55 = sld [smem:[%s54]]
  %s56 = scalar_lea.smem %s0, 28
  %s57 = sld [smem:[%s56]]
  %s58 = scalar_lea.smem %s0, 29
  %s59 = sld [smem:[%s58]]
  %60 = xla_tuple %s57, %s59
  %s61 = sld [smem:[#allocation0]]
  $region161: #{tpu_custom_call.1} parent=0
    _
  %s63 = ssub.s32 1, %s61
  %s64 = scalar_select 0, %s63, %s61
  $region1: #{tpu_custom_call.1} parent=0
    #allocation2 [shape = 'u8[2048]{0}', space=smem, size = 0x800, scoped, tag = 'input window, operand 14, single buffered']
    #allocation3 [shape = 's32[2]{0}', space=sflag, size = 0x8, scoped, tag = 'scoped memory for tpu_custom_call.1']
    #allocation4 [shape = 's32[2]{0}', space=sflag, size = 0x8, scoped, tag = 'scoped memory for tpu_custom_call.1']
    #allocation5 [shape = 'u8[2048]{0}', space=smem, size = 0x800, scoped, tag = 'input window, operand 15, single buffered']
    #allocation6 [shape = 's32[1]{0}', space=sflag, size = 0x4, scoped, tag = 'scoped memory for tpu_custom_call.1']
    #allocation7 [shape = 'u8[8192]{0}', space=vmem, size = 0x2000, scoped, tag = 'output window, operand 0']
    #allocation8 [shape = 'u8[16384]{0}', space=vmem, size = 0x4000, scoped, tag = 'output window, operand 1']
    #allocation9 [shape = 's32[2]{0}', space=sflag, size = 0x8, scoped, tag = 'scoped memory for tpu_custom_call.1']
    %65 = vsyncpa [#allocation4], 0
    %66 = vsyncpa [#allocation6], 0
    %67 = vsyncpa [#allocation3], 0
    %s68 = scalar_lea.sflag [#allocation3], 1
    %69 = vsyncpa %s68, 0
    %70 = vsyncpa [#allocation9], 0
    %s71 = scalar_lea.sflag [#allocation9], 1
    %72 = vsyncpa %s71, 0
    loop: start=0, step=1, limit=4
    $region2: #{tpu_custom_call.1} parent=1 // loop_pre_header
      _
    $region3: #{tpu_custom_call.1} parent=1 // loop_header
      %s74 = sphi 0, %s78
      %p75 = scmp.ge.s32.totalorder %s74, 4
      %s84 = sphi 0, %s86
      %s87 = sphi 0, %s84
      %s88 = sphi 0, %s87
      %s104 = sphi 0, %s88
      %s110 = sphi 0, %s112
      %s113 = sphi 0, %s110
      %s114 = sphi 0, %s113
      %s130 = sphi 0, %s114
      %s134 = sphi 0, %s134
      %s136 = sphi 0, %s134
      %s137 = sphi 0, %s136
      %s151 = sphi 0, %s137
      %s155 = sphi 0, %s155
      %s157 = sphi 0, %s155
      %s158 = sphi 0, %s157
      %s172 = sphi 0, %s158
      %s176 = sphi 0, %s176
      %s178 = sphi 0, %s176
      %s179 = sphi 0, %s178
      %s193 = sphi 0, %s179
      %s197 = sphi 0, %s197
      %s199 = sphi 0, %s197
      %s200 = sphi 0, %s199
      %s214 = sphi 0, %s200
      %s218 = sphi 0, %s218
      %s220 = sphi 0, %s218
      %s221 = sphi 0, %s220
      %s235 = sphi 0, %s221
      %s239 = sphi 0, %s239
      %s241 = sphi 0, %s239
      %s242 = sphi 0, %s241
      %s256 = sphi 0, %s242
      %s260 = sphi 0, %s260
      %s262 = sphi 0, %s260
      %s263 = sphi 0, %s262
      %s277 = sphi 0, %s263
      %s281 = sphi 0, %s281
      %s283 = sphi 0, %s281
      %s284 = sphi 0, %s283
      %s298 = sphi 0, %s284
      %s302 = sphi 0, %s302
      %s304 = sphi 0, %s302
      %s305 = sphi 0, %s304
      %s319 = sphi 0, %s305
      %s323 = sphi 0, %s323
      %s325 = sphi 0, %s323
      %s326 = sphi 0, %s325
      %s340 = sphi 0, %s326
      %s344 = sphi 0, %s344
      %s346 = sphi 0, %s344
      %s347 = sphi 0, %s346
      %s361 = sphi 0, %s347
      %s365 = sphi 0, %s365
      %s367 = sphi 0, %s365
      %s368 = sphi 0, %s367
      %s382 = sphi 0, %s368
      %s386 = sphi 0, %s386
      %s388 = sphi 0, %s386
      %s389 = sphi 0, %s388
      %s403 = sphi 0, %s389
      %s407 = sphi 0, %s407
      %s409 = sphi 0, %s407
      %s410 = sphi 0, %s409
      %s424 = sphi 0, %s410
      %s428 = sphi 0, %s428
      %s430 = sphi 0, %s428
      %s431 = sphi 0, %s430
      %s445 = sphi 0, %s431
      %s449 = sphi 0, %s449
      %s451 = sphi 0, %s449
      %s452 = sphi 0, %s451
      %s466 = sphi 0, %s452
      %s470 = sphi 0, %s470
      %s472 = sphi 0, %s470
      %s473 = sphi 0, %s472
      %s487 = sphi 0, %s473
      %s491 = sphi 0, %s491
      %s493 = sphi 0, %s491
      %s494 = sphi 0, %s493
      %s508 = sphi 0, %s494
      %s512 = sphi 0, %s512
      %s514 = sphi 0, %s512
      %s515 = sphi 0, %s514
      %s529 = sphi 0, %s515
      %s533 = sphi 0, %s533
      %s535 = sphi 0, %s533
      %s536 = sphi 0, %s535
      %s550 = sphi 0, %s536
      %s554 = sphi 0, %s554
      %s556 = sphi 0, %s554
      %s557 = sphi 0, %s556
      %s571 = sphi 0, %s557
      %s575 = sphi 0, %s575
      %s577 = sphi 0, %s575
      %s578 = sphi 0, %s577
      %s592 = sphi 0, %s578
      %s596 = sphi 0, %s596
      %s598 = sphi 0, %s596
      %s599 = sphi 0, %s598
      %s613 = sphi 0, %s599
      %s617 = sphi 0, %s617
      %s619 = sphi 0, %s617
      %s620 = sphi 0, %s619
      %s634 = sphi 0, %s620
      %s638 = sphi 0, %s638
      %s640 = sphi 0, %s638
      %s641 = sphi 0, %s640
      %s655 = sphi 0, %s641
      %s659 = sphi 0, %s659
      %s661 = sphi 0, %s659
      %s662 = sphi 0, %s661
      %s676 = sphi 0, %s662
      %s682 = sphi 0, %s684
      %s685 = sphi 0, %s682
      %s686 = sphi 0, %s685
      %s702 = sphi 0, %s686
      %s708 = sphi 0, %s710
      %s711 = sphi 0, %s708
      %s712 = sphi 0, %s711
      %s728 = sphi 0, %s712
    $region4: #{tpu_custom_call.1} parent=1 // loop_header_branch
      %77 = sbr.rel (%p75) target = $region8
    $region5: #{tpu_custom_call.1} parent=1 // loop_body
      %s79 = ssub.s32 %s74, 1
      %s80 = ssub.s32 %s74, 2
      %s81 = sadd.s32 %s74, 1
      %s82 = ssub.s32 %s74, %s81
      %p83 = scmp.eq.s32.totalorder %s82, 0
      %s85 = sadd.s32 %s84, 1
      %s86 = scalar_select %p83, %s84, %s85
      %p89 = pneg %p83
      %p90 = scmp.eq.s32.totalorder %s74, 1
      %p91 = por %p89, %p90
      %p92 = scmp.ne.s32.totalorder %s84, %s87
      %p93 = scmp.eq.s32.totalorder %s74, 0
      %p94 = por %p92, %p93
      %p95 = scmp.ne.s32.totalorder %s84, %s87
      %p96 = scmp.eq.s32.totalorder %s79, 1
      %p97 = por %p95, %p96
      %p98 = scmp.ne.s32.totalorder %s87, %s88
      %p99 = scmp.eq.s32.totalorder %s79, 0
      %p100 = por %p98, %p99
      %p101 = scmp.ne.s32.totalorder %s87, %s88
      %p102 = scmp.eq.s32.totalorder %s80, 1
      %p103 = por %p101, %p102
      %p105 = scmp.ne.s32.totalorder %s88, %s104
      %p106 = scmp.eq.s32.totalorder %s80, 0
      %p107 = por %p105, %p106
      %s108 = ssub.s32 %s74, %s81
      %p109 = scmp.eq.s32.totalorder %s108, 0
      %s111 = sadd.s32 %s110, 1
      %s112 = scalar_select %p109, %s110, %s111
      %p115 = pneg %p109
      %p116 = scmp.eq.s32.totalorder %s74, 1
      %p117 = por %p115, %p116
      %p118 = scmp.ne.s32.totalorder %s110, %s113
      %p119 = scmp.eq.s32.totalorder %s74, 0
      %p120 = por %p118, %p119
      %p121 = scmp.ne.s32.totalorder %s110, %s113
      %p122 = scmp.eq.s32.totalorder %s79, 1
      %p123 = por %p121, %p122
      %p124 = scmp.ne.s32.totalorder %s113, %s114
      %p125 = scmp.eq.s32.totalorder %s79, 0
      %p126 = por %p124, %p125
      %p127 = scmp.ne.s32.totalorder %s113, %s114
      %p128 = scmp.eq.s32.totalorder %s80, 1
      %p129 = por %p127, %p128
      %p131 = scmp.ne.s32.totalorder %s114, %s130
      %p132 = scmp.eq.s32.totalorder %s80, 0
      %p133 = por %p131, %p132
      %s135 = sadd.s32 %s134, 1
      %p138 = scmp.eq.s32.totalorder %s74, 1
      %p139 = scmp.ne.s32.totalorder %s134, %s136
      %p140 = scmp.eq.s32.totalorder %s74, 0
      %p141 = por %p139, %p140
      %p142 = scmp.ne.s32.totalorder %s134, %s136
      %p143 = scmp.eq.s32.totalorder %s79, 1
      %p144 = por %p142, %p143
      %p145 = scmp.ne.s32.totalorder %s136, %s137
      %p146 = scmp.eq.s32.totalorder %s79, 0
      %p147 = por %p145, %p146
      %p148 = scmp.ne.s32.totalorder %s136, %s137
      %p149 = scmp.eq.s32.totalorder %s80, 1
      %p150 = por %p148, %p149
      %p152 = scmp.ne.s32.totalorder %s137, %s151
      %p153 = scmp.eq.s32.totalorder %s80, 0
      %p154 = por %p152, %p153
      %s156 = sadd.s32 %s155, 1
      %p159 = scmp.eq.s32.totalorder %s74, 1
      %p160 = scmp.ne.s32.totalorder %s155, %s157
      %p161 = scmp.eq.s32.totalorder %s74, 0
      %p162 = por %p160, %p161
      %p163 = scmp.ne.s32.totalorder %s155, %s157
      %p164 = scmp.eq.s32.totalorder %s79, 1
      %p165 = por %p163, %p164
      %p166 = scmp.ne.s32.totalorder %s157, %s158
      %p167 = scmp.eq.s32.totalorder %s79, 0
      %p168 = por %p166, %p167
      %p169 = scmp.ne.s32.totalorder %s157, %s158
      %p170 = scmp.eq.s32.totalorder %s80, 1
      %p171 = por %p169, %p170
      %p173 = scmp.ne.s32.totalorder %s158, %s172
      %p174 = scmp.eq.s32.totalorder %s80, 0
      %p175 = por %p173, %p174
      %s177 = sadd.s32 %s176, 1
      %p180 = scmp.eq.s32.totalorder %s74, 1
      %p181 = scmp.ne.s32.totalorder %s176, %s178
      %p182 = scmp.eq.s32.totalorder %s74, 0
      %p183 = por %p181, %p182
      %p184 = scmp.ne.s32.totalorder %s176, %s178
      %p185 = scmp.eq.s32.totalorder %s79, 1
      %p186 = por %p184, %p185
      %p187 = scmp.ne.s32.totalorder %s178, %s179
      %p188 = scmp.eq.s32.totalorder %s79, 0
      %p189 = por %p187, %p188
      %p190 = scmp.ne.s32.totalorder %s178, %s179
      %p191 = scmp.eq.s32.totalorder %s80, 1
      %p192 = por %p190, %p191
      %p194 = scmp.ne.s32.totalorder %s179, %s193
      %p195 = scmp.eq.s32.totalorder %s80, 0
      %p196 = por %p194, %p195
      %s198 = sadd.s32 %s197, 1
      %p201 = scmp.eq.s32.totalorder %s74, 1
      %p202 = scmp.ne.s32.totalorder %s197, %s199
      %p203 = scmp.eq.s32.totalorder %s74, 0
      %p204 = por %p202, %p203
      %p205 = scmp.ne.s32.totalorder %s197, %s199
      %p206 = scmp.eq.s32.totalorder %s79, 1
      %p207 = por %p205, %p206
      %p208 = scmp.ne.s32.totalorder %s199, %s200
      %p209 = scmp.eq.s32.totalorder %s79, 0
      %p210 = por %p208, %p209
      %p211 = scmp.ne.s32.totalorder %s199, %s200
      %p212 = scmp.eq.s32.totalorder %s80, 1
      %p213 = por %p211, %p212
      %p215 = scmp.ne.s32.totalorder %s200, %s214
      %p216 = scmp.eq.s32.totalorder %s80, 0
      %p217 = por %p215, %p216
      %s219 = sadd.s32 %s218, 1
      %p222 = scmp.eq.s32.totalorder %s74, 1
      %p223 = scmp.ne.s32.totalorder %s218, %s220
      %p224 = scmp.eq.s32.totalorder %s74, 0
      %p225 = por %p223, %p224
      %p226 = scmp.ne.s32.totalorder %s218, %s220
      %p227 = scmp.eq.s32.totalorder %s79, 1
      %p228 = por %p226, %p227
      %p229 = scmp.ne.s32.totalorder %s220, %s221
      %p230 = scmp.eq.s32.totalorder %s79, 0
      %p231 = por %p229, %p230
      %p232 = scmp.ne.s32.totalorder %s220, %s221
      %p233 = scmp.eq.s32.totalorder %s80, 1
      %p234 = por %p232, %p233
      %p236 = scmp.ne.s32.totalorder %s221, %s235
      %p237 = scmp.eq.s32.totalorder %s80, 0
      %p238 = por %p236, %p237
      %s240 = sadd.s32 %s239, 1
      %p243 = scmp.eq.s32.totalorder %s74, 1
      %p244 = scmp.ne.s32.totalorder %s239, %s241
      %p245 = scmp.eq.s32.totalorder %s74, 0
      %p246 = por %p244, %p245
      %p247 = scmp.ne.s32.totalorder %s239, %s241
      %p248 = scmp.eq.s32.totalorder %s79, 1
      %p249 = por %p247, %p248
      %p250 = scmp.ne.s32.totalorder %s241, %s242
      %p251 = scmp.eq.s32.totalorder %s79, 0
      %p252 = por %p250, %p251
      %p253 = scmp.ne.s32.totalorder %s241, %s242
      %p254 = scmp.eq.s32.totalorder %s80, 1
      %p255 = por %p253, %p254
      %p257 = scmp.ne.s32.totalorder %s242, %s256
      %p258 = scmp.eq.s32.totalorder %s80, 0
      %p259 = por %p257, %p258
      %s261 = sadd.s32 %s260, 1
      %p264 = scmp.eq.s32.totalorder %s74, 1
      %p265 = scmp.ne.s32.totalorder %s260, %s262
      %p266 = scmp.eq.s32.totalorder %s74, 0
      %p267 = por %p265, %p266
      %p268 = scmp.ne.s32.totalorder %s260, %s262
      %p269 = scmp.eq.s32.totalorder %s79, 1
      %p270 = por %p268, %p269
      %p271 = scmp.ne.s32.totalorder %s262, %s263
      %p272 = scmp.eq.s32.totalorder %s79, 0
      %p273 = por %p271, %p272
      %p274 = scmp.ne.s32.totalorder %s262, %s263
      %p275 = scmp.eq.s32.totalorder %s80, 1
      %p276 = por %p274, %p275
      %p278 = scmp.ne.s32.totalorder %s263, %s277
      %p279 = scmp.eq.s32.totalorder %s80, 0
      %p280 = por %p278, %p279
      %s282 = sadd.s32 %s281, 1
      %p285 = scmp.eq.s32.totalorder %s74, 1
      %p286 = scmp.ne.s32.totalorder %s281, %s283
      %p287 = scmp.eq.s32.totalorder %s74, 0
      %p288 = por %p286, %p287
      %p289 = scmp.ne.s32.totalorder %s281, %s283
      %p290 = scmp.eq.s32.totalorder %s79, 1
      %p291 = por %p289, %p290
      %p292 = scmp.ne.s32.totalorder %s283, %s284
      %p293 = scmp.eq.s32.totalorder %s79, 0
      %p294 = por %p292, %p293
      %p295 = scmp.ne.s32.totalorder %s283, %s284
      %p296 = scmp.eq.s32.totalorder %s80, 1
      %p297 = por %p295, %p296
      %p299 = scmp.ne.s32.totalorder %s284, %s298
      %p300 = scmp.eq.s32.totalorder %s80, 0
      %p301 = por %p299, %p300
      %s303 = sadd.s32 %s302, 1
      %p306 = scmp.eq.s32.totalorder %s74, 1
      %p307 = scmp.ne.s32.totalorder %s302, %s304
      %p308 = scmp.eq.s32.totalorder %s74, 0
      %p309 = por %p307, %p308
      %p310 = scmp.ne.s32.totalorder %s302, %s304
      %p311 = scmp.eq.s32.totalorder %s79, 1
      %p312 = por %p310, %p311
      %p313 = scmp.ne.s32.totalorder %s304, %s305
      %p314 = scmp.eq.s32.totalorder %s79, 0
      %p315 = por %p313, %p314
      %p316 = scmp.ne.s32.totalorder %s304, %s305
      %p317 = scmp.eq.s32.totalorder %s80, 1
      %p318 = por %p316, %p317
      %p320 = scmp.ne.s32.totalorder %s305, %s319
      %p321 = scmp.eq.s32.totalorder %s80, 0
      %p322 = por %p320, %p321
      %s324 = sadd.s32 %s323, 1
      %p327 = scmp.eq.s32.totalorder %s74, 1
      %p328 = scmp.ne.s32.totalorder %s323, %s325
      %p329 = scmp.eq.s32.totalorder %s74, 0
      %p330 = por %p328, %p329
      %p331 = scmp.ne.s32.totalorder %s323, %s325
      %p332 = scmp.eq.s32.totalorder %s79, 1
      %p333 = por %p331, %p332
      %p334 = scmp.ne.s32.totalorder %s325, %s326
      %p335 = scmp.eq.s32.totalorder %s79, 0
      %p336 = por %p334, %p335
      %p337 = scmp.ne.s32.totalorder %s325, %s326
      %p338 = scmp.eq.s32.totalorder %s80, 1
      %p339 = por %p337, %p338
      %p341 = scmp.ne.s32.totalorder %s326, %s340
      %p342 = scmp.eq.s32.totalorder %s80, 0
      %p343 = por %p341, %p342
      %s345 = sadd.s32 %s344, 1
      %p348 = scmp.eq.s32.totalorder %s74, 1
      %p349 = scmp.ne.s32.totalorder %s344, %s346
      %p350 = scmp.eq.s32.totalorder %s74, 0
      %p351 = por %p349, %p350
      %p352 = scmp.ne.s32.totalorder %s344, %s346
      %p353 = scmp.eq.s32.totalorder %s79, 1
      %p354 = por %p352, %p353
      %p355 = scmp.ne.s32.totalorder %s346, %s347
      %p356 = scmp.eq.s32.totalorder %s79, 0
      %p357 = por %p355, %p356
      %p358 = scmp.ne.s32.totalorder %s346, %s347
      %p359 = scmp.eq.s32.totalorder %s80, 1
      %p360 = por %p358, %p359
      %p362 = scmp.ne.s32.totalorder %s347, %s361
      %p363 = scmp.eq.s32.totalorder %s80, 0
      %p364 = por %p362, %p363
      %s366 = sadd.s32 %s365, 1
      %p369 = scmp.eq.s32.totalorder %s74, 1
      %p370 = scmp.ne.s32.totalorder %s365, %s367
      %p371 = scmp.eq.s32.totalorder %s74, 0
      %p372 = por %p370, %p371
      %p373 = scmp.ne.s32.totalorder %s365, %s367
      %p374 = scmp.eq.s32.totalorder %s79, 1
      %p375 = por %p373, %p374
      %p376 = scmp.ne.s32.totalorder %s367, %s368
      %p377 = scmp.eq.s32.totalorder %s79, 0
      %p378 = por %p376, %p377
      %p379 = scmp.ne.s32.totalorder %s367, %s368
      %p380 = scmp.eq.s32.totalorder %s80, 1
      %p381 = por %p379, %p380
      %p383 = scmp.ne.s32.totalorder %s368, %s382
      %p384 = scmp.eq.s32.totalorder %s80, 0
      %p385 = por %p383, %p384
      %s387 = sadd.s32 %s386, 1
      %p390 = scmp.eq.s32.totalorder %s74, 1
      %p391 = scmp.ne.s32.totalorder %s386, %s388
      %p392 = scmp.eq.s32.totalorder %s74, 0
      %p393 = por %p391, %p392
      %p394 = scmp.ne.s32.totalorder %s386, %s388
      %p395 = scmp.eq.s32.totalorder %s79, 1
      %p396 = por %p394, %p395
      %p397 = scmp.ne.s32.totalorder %s388, %s389
      %p398 = scmp.eq.s32.totalorder %s79, 0
      %p399 = por %p397, %p398
      %p400 = scmp.ne.s32.totalorder %s388, %s389
      %p401 = scmp.eq.s32.totalorder %s80, 1
      %p402 = por %p400, %p401
      %p404 = scmp.ne.s32.totalorder %s389, %s403
      %p405 = scmp.eq.s32.totalorder %s80, 0
      %p406 = por %p404, %p405
      %s408 = sadd.s32 %s407, 1
      %p411 = scmp.eq.s32.totalorder %s74, 1
      %p412 = scmp.ne.s32.totalorder %s407, %s409
      %p413 = scmp.eq.s32.totalorder %s74, 0
      %p414 = por %p412, %p413
      %p415 = scmp.ne.s32.totalorder %s407, %s409
      %p416 = scmp.eq.s32.totalorder %s79, 1
      %p417 = por %p415, %p416
      %p418 = scmp.ne.s32.totalorder %s409, %s410
      %p419 = scmp.eq.s32.totalorder %s79, 0
      %p420 = por %p418, %p419
      %p421 = scmp.ne.s32.totalorder %s409, %s410
      %p422 = scmp.eq.s32.totalorder %s80, 1
      %p423 = por %p421, %p422
      %p425 = scmp.ne.s32.totalorder %s410, %s424
      %p426 = scmp.eq.s32.totalorder %s80, 0
      %p427 = por %p425, %p426
      %s429 = sadd.s32 %s428, 1
      %p432 = scmp.eq.s32.totalorder %s74, 1
      %p433 = scmp.ne.s32.totalorder %s428, %s430
      %p434 = scmp.eq.s32.totalorder %s74, 0
      %p435 = por %p433, %p434
      %p436 = scmp.ne.s32.totalorder %s428, %s430
      %p437 = scmp.eq.s32.totalorder %s79, 1
      %p438 = por %p436, %p437
      %p439 = scmp.ne.s32.totalorder %s430, %s431
      %p440 = scmp.eq.s32.totalorder %s79, 0
      %p441 = por %p439, %p440
      %p442 = scmp.ne.s32.totalorder %s430, %s431
      %p443 = scmp.eq.s32.totalorder %s80, 1
      %p444 = por %p442, %p443
      %p446 = scmp.ne.s32.totalorder %s431, %s445
      %p447 = scmp.eq.s32.totalorder %s80, 0
      %p448 = por %p446, %p447
      %s450 = sadd.s32 %s449, 1
      %p453 = scmp.eq.s32.totalorder %s74, 1
      %p454 = scmp.ne.s32.totalorder %s449, %s451
      %p455 = scmp.eq.s32.totalorder %s74, 0
      %p456 = por %p454, %p455
      %p457 = scmp.ne.s32.totalorder %s449, %s451
      %p458 = scmp.eq.s32.totalorder %s79, 1
      %p459 = por %p457, %p458
      %p460 = scmp.ne.s32.totalorder %s451, %s452
      %p461 = scmp.eq.s32.totalorder %s79, 0
      %p462 = por %p460, %p461
      %p463 = scmp.ne.s32.totalorder %s451, %s452
      %p464 = scmp.eq.s32.totalorder %s80, 1
      %p465 = por %p463, %p464
      %p467 = scmp.ne.s32.totalorder %s452, %s466
      %p468 = scmp.eq.s32.totalorder %s80, 0
      %p469 = por %p467, %p468
      %s471 = sadd.s32 %s470, 1
      %p474 = scmp.eq.s32.totalorder %s74, 1
      %p475 = scmp.ne.s32.totalorder %s470, %s472
      %p476 = scmp.eq.s32.totalorder %s74, 0
      %p477 = por %p475, %p476
      %p478 = scmp.ne.s32.totalorder %s470, %s472
      %p479 = scmp.eq.s32.totalorder %s79, 1
      %p480 = por %p478, %p479
      %p481 = scmp.ne.s32.totalorder %s472, %s473
      %p482 = scmp.eq.s32.totalorder %s79, 0
      %p483 = por %p481, %p482
      %p484 = scmp.ne.s32.totalorder %s472, %s473
      %p485 = scmp.eq.s32.totalorder %s80, 1
      %p486 = por %p484, %p485
      %p488 = scmp.ne.s32.totalorder %s473, %s487
      %p489 = scmp.eq.s32.totalorder %s80, 0
      %p490 = por %p488, %p489
      %s492 = sadd.s32 %s491, 1
      %p495 = scmp.eq.s32.totalorder %s74, 1
      %p496 = scmp.ne.s32.totalorder %s491, %s493
      %p497 = scmp.eq.s32.totalorder %s74, 0
      %p498 = por %p496, %p497
      %p499 = scmp.ne.s32.totalorder %s491, %s493
      %p500 = scmp.eq.s32.totalorder %s79, 1
      %p501 = por %p499, %p500
      %p502 = scmp.ne.s32.totalorder %s493, %s494
      %p503 = scmp.eq.s32.totalorder %s79, 0
      %p504 = por %p502, %p503
      %p505 = scmp.ne.s32.totalorder %s493, %s494
      %p506 = scmp.eq.s32.totalorder %s80, 1
      %p507 = por %p505, %p506
      %p509 = scmp.ne.s32.totalorder %s494, %s508
      %p510 = scmp.eq.s32.totalorder %s80, 0
      %p511 = por %p509, %p510
      %s513 = sadd.s32 %s512, 1
      %p516 = scmp.eq.s32.totalorder %s74, 1
      %p517 = scmp.ne.s32.totalorder %s512, %s514
      %p518 = scmp.eq.s32.totalorder %s74, 0
      %p519 = por %p517, %p518
      %p520 = scmp.ne.s32.totalorder %s512, %s514
      %p521 = scmp.eq.s32.totalorder %s79, 1
      %p522 = por %p520, %p521
      %p523 = scmp.ne.s32.totalorder %s514, %s515
      %p524 = scmp.eq.s32.totalorder %s79, 0
      %p525 = por %p523, %p524
      %p526 = scmp.ne.s32.totalorder %s514, %s515
      %p527 = scmp.eq.s32.totalorder %s80, 1
      %p528 = por %p526, %p527
      %p530 = scmp.ne.s32.totalorder %s515, %s529
      %p531 = scmp.eq.s32.totalorder %s80, 0
      %p532 = por %p530, %p531
      %s534 = sadd.s32 %s533, 1
      %p537 = scmp.eq.s32.totalorder %s74, 1
      %p538 = scmp.ne.s32.totalorder %s533, %s535
      %p539 = scmp.eq.s32.totalorder %s74, 0
      %p540 = por %p538, %p539
      %p541 = scmp.ne.s32.totalorder %s533, %s535
      %p542 = scmp.eq.s32.totalorder %s79, 1
      %p543 = por %p541, %p542
      %p544 = scmp.ne.s32.totalorder %s535, %s536
      %p545 = scmp.eq.s32.totalorder %s79, 0
      %p546 = por %p544, %p545
      %p547 = scmp.ne.s32.totalorder %s535, %s536
      %p548 = scmp.eq.s32.totalorder %s80, 1
      %p549 = por %p547, %p548
      %p551 = scmp.ne.s32.totalorder %s536, %s550
      %p552 = scmp.eq.s32.totalorder %s80, 0
      %p553 = por %p551, %p552
      %s555 = sadd.s32 %s554, 1
      %p558 = scmp.eq.s32.totalorder %s74, 1
      %p559 = scmp.ne.s32.totalorder %s554, %s556
      %p560 = scmp.eq.s32.totalorder %s74, 0
      %p561 = por %p559, %p560
      %p562 = scmp.ne.s32.totalorder %s554, %s556
      %p563 = scmp.eq.s32.totalorder %s79, 1
      %p564 = por %p562, %p563
      %p565 = scmp.ne.s32.totalorder %s556, %s557
      %p566 = scmp.eq.s32.totalorder %s79, 0
      %p567 = por %p565, %p566
      %p568 = scmp.ne.s32.totalorder %s556, %s557
      %p569 = scmp.eq.s32.totalorder %s80, 1
      %p570 = por %p568, %p569
      %p572 = scmp.ne.s32.totalorder %s557, %s571
      %p573 = scmp.eq.s32.totalorder %s80, 0
      %p574 = por %p572, %p573
      %s576 = sadd.s32 %s575, 1
      %p579 = scmp.eq.s32.totalorder %s74, 1
      %p580 = scmp.ne.s32.totalorder %s575, %s577
      %p581 = scmp.eq.s32.totalorder %s74, 0
      %p582 = por %p580, %p581
      %p583 = scmp.ne.s32.totalorder %s575, %s577
      %p584 = scmp.eq.s32.totalorder %s79, 1
      %p585 = por %p583, %p584
      %p586 = scmp.ne.s32.totalorder %s577, %s578
      %p587 = scmp.eq.s32.totalorder %s79, 0
      %p588 = por %p586, %p587
      %p589 = scmp.ne.s32.totalorder %s577, %s578
      %p590 = scmp.eq.s32.totalorder %s80, 1
      %p591 = por %p589, %p590
      %p593 = scmp.ne.s32.totalorder %s578, %s592
      %p594 = scmp.eq.s32.totalorder %s80, 0
      %p595 = por %p593, %p594
      %s597 = sadd.s32 %s596, 1
      %p600 = scmp.eq.s32.totalorder %s74, 1
      %p601 = scmp.ne.s32.totalorder %s596, %s598
      %p602 = scmp.eq.s32.totalorder %s74, 0
      %p603 = por %p601, %p602
      %p604 = scmp.ne.s32.totalorder %s596, %s598
      %p605 = scmp.eq.s32.totalorder %s79, 1
      %p606 = por %p604, %p605
      %p607 = scmp.ne.s32.totalorder %s598, %s599
      %p608 = scmp.eq.s32.totalorder %s79, 0
      %p609 = por %p607, %p608
      %p610 = scmp.ne.s32.totalorder %s598, %s599
      %p611 = scmp.eq.s32.totalorder %s80, 1
      %p612 = por %p610, %p611
      %p614 = scmp.ne.s32.totalorder %s599, %s613
      %p615 = scmp.eq.s32.totalorder %s80, 0
      %p616 = por %p614, %p615
      %s618 = sadd.s32 %s617, 1
      %p621 = scmp.eq.s32.totalorder %s74, 1
      %p622 = scmp.ne.s32.totalorder %s617, %s619
      %p623 = scmp.eq.s32.totalorder %s74, 0
      %p624 = por %p622, %p623
      %p625 = scmp.ne.s32.totalorder %s617, %s619
      %p626 = scmp.eq.s32.totalorder %s79, 1
      %p627 = por %p625, %p626
      %p628 = scmp.ne.s32.totalorder %s619, %s620
      %p629 = scmp.eq.s32.totalorder %s79, 0
      %p630 = por %p628, %p629
      %p631 = scmp.ne.s32.totalorder %s619, %s620
      %p632 = scmp.eq.s32.totalorder %s80, 1
      %p633 = por %p631, %p632
      %p635 = scmp.ne.s32.totalorder %s620, %s634
      %p636 = scmp.eq.s32.totalorder %s80, 0
      %p637 = por %p635, %p636
      %s639 = sadd.s32 %s638, 1
      %p642 = scmp.eq.s32.totalorder %s74, 1
      %p643 = scmp.ne.s32.totalorder %s638, %s640
      %p644 = scmp.eq.s32.totalorder %s74, 0
      %p645 = por %p643, %p644
      %p646 = scmp.ne.s32.totalorder %s638, %s640
      %p647 = scmp.eq.s32.totalorder %s79, 1
      %p648 = por %p646, %p647
      %p649 = scmp.ne.s32.totalorder %s640, %s641
      %p650 = scmp.eq.s32.totalorder %s79, 0
      %p651 = por %p649, %p650
      %p652 = scmp.ne.s32.totalorder %s640, %s641
      %p653 = scmp.eq.s32.totalorder %s80, 1
      %p654 = por %p652, %p653
      %p656 = scmp.ne.s32.totalorder %s641, %s655
      %p657 = scmp.eq.s32.totalorder %s80, 0
      %p658 = por %p656, %p657
      %s660 = sadd.s32 %s659, 1
      %p663 = scmp.eq.s32.totalorder %s74, 1
      %p664 = scmp.ne.s32.totalorder %s659, %s661
      %p665 = scmp.eq.s32.totalorder %s74, 0
      %p666 = por %p664, %p665
      %p667 = scmp.ne.s32.totalorder %s659, %s661
      %p668 = scmp.eq.s32.totalorder %s79, 1
      %p669 = por %p667, %p668
      %p670 = scmp.ne.s32.totalorder %s661, %s662
      %p671 = scmp.eq.s32.totalorder %s79, 0
      %p672 = por %p670, %p671
      %p673 = scmp.ne.s32.totalorder %s661, %s662
      %p674 = scmp.eq.s32.totalorder %s80, 1
      %p675 = por %p673, %p674
      %p677 = scmp.ne.s32.totalorder %s662, %s676
      %p678 = scmp.eq.s32.totalorder %s80, 0
      %p679 = por %p677, %p678
      %s680 = ssub.s32 %s74, %s81
      %p681 = scmp.eq.s32.totalorder %s680, 0
      %s683 = sadd.s32 %s682, 1
      %s684 = scalar_select %p681, %s682, %s683
      %p687 = pneg %p681
      %p688 = scmp.eq.s32.totalorder %s74, 1
      %p689 = por %p687, %p688
      %p690 = scmp.ne.s32.totalorder %s682, %s685
      %p691 = scmp.eq.s32.totalorder %s74, 0
      %p692 = por %p690, %p691
      %p693 = scmp.ne.s32.totalorder %s682, %s685
      %p694 = scmp.eq.s32.totalorder %s79, 1
      %p695 = por %p693, %p694
      %p696 = scmp.ne.s32.totalorder %s685, %s686
      %p697 = scmp.eq.s32.totalorder %s79, 0
      %p698 = por %p696, %p697
      %p699 = scmp.ne.s32.totalorder %s685, %s686
      %p700 = scmp.eq.s32.totalorder %s80, 1
      %p701 = por %p699, %p700
      %p703 = scmp.ne.s32.totalorder %s686, %s702
      %p704 = scmp.eq.s32.totalorder %s80, 0
      %p705 = por %p703, %p704
      %s706 = ssub.s32 %s74, %s81
      %p707 = scmp.eq.s32.totalorder %s706, 0
      %s709 = sadd.s32 %s708, 1
      %s710 = scalar_select %p707, %s708, %s709
      %p713 = pneg %p707
      %p714 = scmp.eq.s32.totalorder %s74, 1
      %p715 = por %p713, %p714
      %p716 = scmp.ne.s32.totalorder %s708, %s711
      %p717 = scmp.eq.s32.totalorder %s74, 0
      %p718 = por %p716, %p717
      %p719 = scmp.ne.s32.totalorder %s708, %s711
      %p720 = scmp.eq.s32.totalorder %s79, 1
      %p721 = por %p719, %p720
      %p722 = scmp.ne.s32.totalorder %s711, %s712
      %p723 = scmp.eq.s32.totalorder %s79, 0
      %p724 = por %p722, %p723
      %p725 = scmp.ne.s32.totalorder %s711, %s712
      %p726 = scmp.eq.s32.totalorder %s80, 1
      %p727 = por %p725, %p726
      %p729 = scmp.ne.s32.totalorder %s712, %s728
      %p730 = scmp.eq.s32.totalorder %s80, 0
      %p731 = por %p729, %p730
      %p732 = scmp.le.s32.totalorder 1, %s74
      %p733 = scmp.lt.s32.totalorder %s74, 3
      %p734 = pnand %p732, %p733
      %p735 = pneg %p734
      // Predicated region
      $region9: #{tpu_custom_call.1} parent=5 // pred_check
        _
      $region10: #{tpu_custom_call.1} parent=5 // pred_check_branch
        %737 = sbr.rel (%p734) target = $region12
      $region11: #{tpu_custom_call.1} parent=5 // pred_region
        %s738 = ssub.s32 %s74, 1
        // Predicated region
        $region13: #{tpu_custom_call.1} parent=11 // pred_check
          %p739 = pneg %p147
        $region14: #{tpu_custom_call.1} parent=11 // pred_check_branch
          %741 = sbr.rel (%p739) target = $region16
        $region15: #{tpu_custom_call.1} parent=11 // pred_region
          _
        $region16: #{tpu_custom_call.1} parent=11 // pred_fallthru
          _
        // Predicated region
        $region17: #{tpu_custom_call.1} parent=11 // pred_check
          %p742 = pneg %p168
        $region18: #{tpu_custom_call.1} parent=11 // pred_check_branch
          %744 = sbr.rel (%p742) target = $region20
        $region19: #{tpu_custom_call.1} parent=11 // pred_region
          _
        $region20: #{tpu_custom_call.1} parent=11 // pred_fallthru
          _
        // Predicated region
        $region21: #{tpu_custom_call.1} parent=11 // pred_check
          %p745 = pneg %p189
        $region22: #{tpu_custom_call.1} parent=11 // pred_check_branch
          %747 = sbr.rel (%p745) target = $region24
        $region23: #{tpu_custom_call.1} parent=11 // pred_region
          _
        $region24: #{tpu_custom_call.1} parent=11 // pred_fallthru
          _
        // Predicated region
        $region25: #{tpu_custom_call.1} parent=11 // pred_check
          %p748 = pneg %p210
        $region26: #{tpu_custom_call.1} parent=11 // pred_check_branch
          %750 = sbr.rel (%p748) target = $region28
        $region27: #{tpu_custom_call.1} parent=11 // pred_region
          _
        $region28: #{tpu_custom_call.1} parent=11 // pred_fallthru
          _
        // Predicated region
        $region29: #{tpu_custom_call.1} parent=11 // pred_check
          %p751 = pneg %p231
        $region30: #{tpu_custom_call.1} parent=11 // pred_check_branch
          %753 = sbr.rel (%p751) target = $region32
        $region31: #{tpu_custom_call.1} parent=11 // pred_region
          _
        $region32: #{tpu_custom_call.1} parent=11 // pred_fallthru
          _
        // Predicated region
        $region33: #{tpu_custom_call.1} parent=11 // pred_check
          %p754 = pneg %p252
        $region34: #{tpu_custom_call.1} parent=11 // pred_check_branch
          %756 = sbr.rel (%p754) target = $region36
        $region35: #{tpu_custom_call.1} parent=11 // pred_region
          _
        $region36: #{tpu_custom_call.1} parent=11 // pred_fallthru
          _
        // Predicated region
        $region37: #{tpu_custom_call.1} parent=11 // pred_check
          %p757 = pneg %p273
        $region38: #{tpu_custom_call.1} parent=11 // pred_check_branch
          %759 = sbr.rel (%p757) target = $region40
        $region39: #{tpu_custom_call.1} parent=11 // pred_region
          _
        $region40: #{tpu_custom_call.1} parent=11 // pred_fallthru
          _
        // Predicated region
        $region41: #{tpu_custom_call.1} parent=11 // pred_check
          %p760 = pneg %p294
        $region42: #{tpu_custom_call.1} parent=11 // pred_check_branch
          %762 = sbr.rel (%p760) target = $region44
        $region43: #{tpu_custom_call.1} parent=11 // pred_region
          _
        $region44: #{tpu_custom_call.1} parent=11 // pred_fallthru
          _
        // Predicated region
        $region45: #{tpu_custom_call.1} parent=11 // pred_check
          %p763 = pneg %p315
        $region46: #{tpu_custom_call.1} parent=11 // pred_check_branch
          %765 = sbr.rel (%p763) target = $region48
        $region47: #{tpu_custom_call.1} parent=11 // pred_region
          _
        $region48: #{tpu_custom_call.1} parent=11 // pred_fallthru
          _
        // Predicated region
        $region49: #{tpu_custom_call.1} parent=11 // pred_check
          %p766 = pneg %p336
        $region50: #{tpu_custom_call.1} parent=11 // pred_check_branch
          %768 = sbr.rel (%p766) target = $region52
        $region51: #{tpu_custom_call.1} parent=11 // pred_region
          _
        $region52: #{tpu_custom_call.1} parent=11 // pred_fallthru
          _
        // Predicated region
        $region53: #{tpu_custom_call.1} parent=11 // pred_check
          %p769 = pneg %p357
        $region54: #{tpu_custom_call.1} parent=11 // pred_check_branch
          %771 = sbr.rel (%p769) target = $region56
        $region55: #{tpu_custom_call.1} parent=11 // pred_region
          _
        $region56: #{tpu_custom_call.1} parent=11 // pred_fallthru
          _
        // Predicated region
        $region57: #{tpu_custom_call.1} parent=11 // pred_check
          %p772 = pneg %p378
        $region58: #{tpu_custom_call.1} parent=11 // pred_check_branch
          %774 = sbr.rel (%p772) target = $region60
        $region59: #{tpu_custom_call.1} parent=11 // pred_region
          _
        $region60: #{tpu_custom_call.1} parent=11 // pred_fallthru
          _
        // Predicated region
        $region61: #{tpu_custom_call.1} parent=11 // pred_check
          %p775 = pneg %p399
        $region62: #{tpu_custom_call.1} parent=11 // pred_check_branch
          %777 = sbr.rel (%p775) target = $region64
        $region63: #{tpu_custom_call.1} parent=11 // pred_region
          %779 = vsyncadd [#allocation4], 0
          %s781 = sshll.u32 %s29, 4
          %s782 = int_to_ptr.vmem [resolvable:$true] %s781
          %784 = dma.vmem_to_smem %s782, 64, [#allocation2], [#allocation4]
        $region64: #{tpu_custom_call.1} parent=11 // pred_fallthru
          _
        // Predicated region
        $region65: #{tpu_custom_call.1} parent=11 // pred_check
          %p785 = pneg %p420
        $region66: #{tpu_custom_call.1} parent=11 // pred_check_branch
          %787 = sbr.rel (%p785) target = $region68
        $region67: #{tpu_custom_call.1} parent=11 // pred_region
          %789 = vsyncadd [#allocation6], 0
          %s791 = sshll.u32 %s31, 4
          %s792 = int_to_ptr.vmem [resolvable:$true] %s791
          %794 = dma.vmem_to_smem %s792, 64, [#allocation5], [#allocation6]
        $region68: #{tpu_custom_call.1} parent=11 // pred_fallthru
          _
        // Predicated region
        $region69: #{tpu_custom_call.1} parent=11 // pred_check
          %p795 = pneg %p441
        $region70: #{tpu_custom_call.1} parent=11 // pred_check_branch
          %797 = sbr.rel (%p795) target = $region72
        $region71: #{tpu_custom_call.1} parent=11 // pred_region
          _
        $region72: #{tpu_custom_call.1} parent=11 // pred_fallthru
          _
        // Predicated region
        $region73: #{tpu_custom_call.1} parent=11 // pred_check
          %p798 = pneg %p462
        $region74: #{tpu_custom_call.1} parent=11 // pred_check_branch
          %800 = sbr.rel (%p798) target = $region76
        $region75: #{tpu_custom_call.1} parent=11 // pred_region
          _
        $region76: #{tpu_custom_call.1} parent=11 // pred_fallthru
          _
        // Predicated region
        $region77: #{tpu_custom_call.1} parent=11 // pred_check
          %p801 = pneg %p483
        $region78: #{tpu_custom_call.1} parent=11 // pred_check_branch
          %803 = sbr.rel (%p801) target = $region80
        $region79: #{tpu_custom_call.1} parent=11 // pred_region
          _
        $region80: #{tpu_custom_call.1} parent=11 // pred_fallthru
          _
        // Predicated region
        $region81: #{tpu_custom_call.1} parent=11 // pred_check
          %p804 = pneg %p504
        $region82: #{tpu_custom_call.1} parent=11 // pred_check_branch
          %806 = sbr.rel (%p804) target = $region84
        $region83: #{tpu_custom_call.1} parent=11 // pred_region
          _
        $region84: #{tpu_custom_call.1} parent=11 // pred_fallthru
          _
        // Predicated region
        $region85: #{tpu_custom_call.1} parent=11 // pred_check
          %p807 = pneg %p525
        $region86: #{tpu_custom_call.1} parent=11 // pred_check_branch
          %809 = sbr.rel (%p807) target = $region88
        $region87: #{tpu_custom_call.1} parent=11 // pred_region
          _
        $region88: #{tpu_custom_call.1} parent=11 // pred_fallthru
          _
        // Predicated region
        $region89: #{tpu_custom_call.1} parent=11 // pred_check
          %p810 = pneg %p546
        $region90: #{tpu_custom_call.1} parent=11 // pred_check_branch
          %812 = sbr.rel (%p810) target = $region92
        $region91: #{tpu_custom_call.1} parent=11 // pred_region
          _
        $region92: #{tpu_custom_call.1} parent=11 // pred_fallthru
          _
        // Predicated region
        $region93: #{tpu_custom_call.1} parent=11 // pred_check
          %p813 = pneg %p567
        $region94: #{tpu_custom_call.1} parent=11 // pred_check_branch
          %815 = sbr.rel (%p813) target = $region96
        $region95: #{tpu_custom_call.1} parent=11 // pred_region
          _
        $region96: #{tpu_custom_call.1} parent=11 // pred_fallthru
          _
        // Predicated region
        $region97: #{tpu_custom_call.1} parent=11 // pred_check
          %p816 = pneg %p588
        $region98: #{tpu_custom_call.1} parent=11 // pred_check_branch
          %818 = sbr.rel (%p816) target = $region100
        $region99: #{tpu_custom_call.1} parent=11 // pred_region
          _
        $region100: #{tpu_custom_call.1} parent=11 // pred_fallthru
          _
        // Predicated region
        $region101: #{tpu_custom_call.1} parent=11 // pred_check
          %p819 = pneg %p609
        $region102: #{tpu_custom_call.1} parent=11 // pred_check_branch
          %821 = sbr.rel (%p819) target = $region104
        $region103: #{tpu_custom_call.1} parent=11 // pred_region
          _
        $region104: #{tpu_custom_call.1} parent=11 // pred_fallthru
          _
        // Predicated region
        $region105: #{tpu_custom_call.1} parent=11 // pred_check
          %p822 = pneg %p630
        $region106: #{tpu_custom_call.1} parent=11 // pred_check_branch
          %824 = sbr.rel (%p822) target = $region108
        $region107: #{tpu_custom_call.1} parent=11 // pred_region
          _
        $region108: #{tpu_custom_call.1} parent=11 // pred_fallthru
          _
        // Predicated region
        $region109: #{tpu_custom_call.1} parent=11 // pred_check
          %p825 = pneg %p651
        $region110: #{tpu_custom_call.1} parent=11 // pred_check_branch
          %827 = sbr.rel (%p825) target = $region112
        $region111: #{tpu_custom_call.1} parent=11 // pred_region
          _
        $region112: #{tpu_custom_call.1} parent=11 // pred_fallthru
          _
        // Predicated region
        $region113: #{tpu_custom_call.1} parent=11 // pred_check
          %p828 = pneg %p672
        $region114: #{tpu_custom_call.1} parent=11 // pred_check_branch
          %830 = sbr.rel (%p828) target = $region116
        $region115: #{tpu_custom_call.1} parent=11 // pred_region
          _
        $region116: #{tpu_custom_call.1} parent=11 // pred_fallthru
          _
      $region12: #{tpu_custom_call.1} parent=5 // pred_fallthru
        _
      %p831 = scmp.lt.s32.totalorder %s74, 2
      // Predicated region
      $region117: #{tpu_custom_call.1} parent=5 // pred_check
        %p832 = pneg %p831
      $region118: #{tpu_custom_call.1} parent=5 // pred_check_branch
        %834 = sbr.rel (%p832) target = $region120
      $region119: #{tpu_custom_call.1} parent=5 // pred_region
        // Predicated region
        $region121: #{tpu_custom_call.1} parent=119 // pred_check
          %p835 = pneg %p94
        $region122: #{tpu_custom_call.1} parent=119 // pred_check_branch
          %837 = sbr.rel (%p835) target = $region124
        $region123: #{tpu_custom_call.1} parent=119 // pred_region
          %p838 = scmp.lt.s32.totalorder %s74, 1
          %s839 = scalar_select %p838, %s74, 1
          %s840 = smul.addr %s839, 8
          %s841 = scalar_lea.vmem %s1, %s840
        $region124: #{tpu_custom_call.1} parent=119 // pred_fallthru
          _
        // Predicated region
        $region125: #{tpu_custom_call.1} parent=119 // pred_check
          %p842 = pneg %p120
        $region126: #{tpu_custom_call.1} parent=119 // pred_check_branch
          %844 = sbr.rel (%p842) target = $region128
        $region127: #{tpu_custom_call.1} parent=119 // pred_region
          %p845 = scmp.lt.s32.totalorder %s74, 1
          %s846 = scalar_select %p845, %s74, 1
          %s847 = smul.addr %s846, 2
          %s848 = smul.addr %s847, 8
          %s849 = scalar_lea.vmem %s3, %s848
        $region128: #{tpu_custom_call.1} parent=119 // pred_fallthru
          _
      $region120: #{tpu_custom_call.1} parent=5 // pred_fallthru
        _
      %p850 = scmp.le.s32.totalorder 1, %s74
      %p851 = scmp.lt.s32.totalorder %s74, 3
      %p852 = pnand %p850, %p851
      %p853 = pneg %p852
      // Predicated region
      $region129: #{tpu_custom_call.1} parent=5 // pred_check
        _
      $region130: #{tpu_custom_call.1} parent=5 // pred_check_branch
        %855 = sbr.rel (%p852) target = $region132
      $region131: #{tpu_custom_call.1} parent=5 // pred_region
        %s856 = ssub.s32 %s74, 1
        // Predicated region
        $region133: #{tpu_custom_call.1} parent=131 // pred_check
          %p857 = pneg %p399
        $region134: #{tpu_custom_call.1} parent=131 // pred_check_branch
          %859 = sbr.rel (%p857) target = $region136
        $region135: #{tpu_custom_call.1} parent=131 // pred_region
          %861 = dma.done [#allocation4], 64
        $region136: #{tpu_custom_call.1} parent=131 // pred_fallthru
          _
        // Predicated region
        $region137: #{tpu_custom_call.1} parent=131 // pred_check
          %p862 = pneg %p420
        $region138: #{tpu_custom_call.1} parent=131 // pred_check_branch
          %864 = sbr.rel (%p862) target = $region140
        $region139: #{tpu_custom_call.1} parent=131 // pred_region
          %866 = dma.done [#allocation6], 64
        $region140: #{tpu_custom_call.1} parent=131 // pred_fallthru
          _
        %867 = sfence
        %p868 = scmp.lt.s32.totalorder %s79, 1
        %s869 = scalar_select %p868, %s79, 1
        %s870 = smul.addr %s869, 8
        %s871 = scalar_lea.vmem %s1, %s870
        %p872 = pneg %p100
        %p873 = pneg %p97
        %p874 = scmp.lt.s32.totalorder %s79, 1
        %s875 = scalar_select %p874, %s79, 1
        %s876 = smul.addr %s875, 2
        %s877 = smul.addr %s876, 8
        %s878 = scalar_lea.vmem %s3, %s877
        %p879 = pneg %p126
        %p880 = pneg %p123
        %p881 = pneg %p147
        %p882 = pneg %p144
        %p883 = pneg %p168
        %p884 = pneg %p165
        %p885 = pneg %p189
        %p886 = pneg %p186
        %p887 = pneg %p210
        %p888 = pneg %p207
        %p889 = pneg %p231
        %p890 = pneg %p228
        %p891 = pneg %p252
        %p892 = pneg %p249
        %p893 = pneg %p273
        %p894 = pneg %p270
        %p895 = pneg %p294
        %p896 = pneg %p291
        %p897 = pneg %p315
        %p898 = pneg %p312
        %p899 = pneg %p336
        %p900 = pneg %p333
        %p901 = pneg %p357
        %p902 = pneg %p354
        %p903 = pneg %p378
        %p904 = pneg %p375
        %p905 = pneg %p399
        %p906 = pneg %p396
        %p907 = pneg %p420
        %p908 = pneg %p417
        %p909 = pneg %p441
        %p910 = pneg %p438
        %p911 = pneg %p462
        %p912 = pneg %p459
        %p913 = pneg %p483
        %p914 = pneg %p480
        %p915 = pneg %p504
        %p916 = pneg %p501
        %p917 = pneg %p525
        %p918 = pneg %p522
        %p919 = pneg %p546
        %p920 = pneg %p543
        %p921 = pneg %p567
        %p922 = pneg %p564
        %p923 = pneg %p588
        %p924 = pneg %p585
        %p925 = pneg %p609
        %p926 = pneg %p606
        %p927 = pneg %p630
        %p928 = pneg %p627
        %p929 = pneg %p651
        %p930 = pneg %p648
        %p931 = pneg %p672
        %p932 = pneg %p669
        %p933 = pneg %p698
        %p934 = pneg %p695
        %s935 = sand.u32 %s685, 1
        %s936 = scalar_lea.sflag [#allocation3], %s935
        %s937 = sand.u32 %s685, 1
        %s938 = smul.addr %s937, 8
        %s939 = scalar_lea.vmem [#allocation7], %s938
        %p940 = pneg %p724
        %p941 = pneg %p721
        %s942 = sand.u32 %s711, 1
        %s943 = scalar_lea.sflag [#allocation9], %s942
        %s944 = sand.u32 %s711, 1
        %s945 = smul.addr %s944, 16
        %s946 = scalar_lea.vmem [#allocation8], %s945
        %p947 = scmp.lt.s32.totalorder %s79, 1
        %s948 = scalar_select %p947, %s79, 1
        %s949 = smul.addr %s948, 8
        %s950 = scalar_lea.vmem %s1, %s949
        %p951 = scmp.lt.s32.totalorder %s79, 1
        %s952 = scalar_select %p951, %s79, 1
        %s953 = smul.addr %s952, 2
        %s954 = smul.addr %s953, 8
        %s955 = scalar_lea.vmem %s3, %s954
        %v957 = vld [vmem:[%s950] sm:$0xff]
        %v958 = vld [vmem:[%s955] sm:$0xff]
        %v959 = vld [vmem:[%s955 + $0x8] sm:$0xff]
        %v960 = vld [vmem:[%s5] sm:$0x1]
        %v961 = vld [vmem:[%s7] sm:$0x1]
        %vm962 = vcmask 261120
        %v963 = vsel %vm962, %v957, 0.0
        %964 = vadd.xlane.f32.xlu0 %v963
        %v965 = vpop.xlane.xlu0 %964
        %v966 = vrcp.pop 32.0
        %v967 = vmul.f32 32.0, %v966
        %v968 = vsub.f32 1.0, %v967
        %v969 = vmul.f32 %v966, %v968
        %v970 = vadd.f32 %v966, %v969
        %vm971 = vweird.f32 %v966
        %v972 = vsel %vm971, %v966, %v970
        %v973 = vmul.f32 %v965, %v972
        %v974 = vsub.f32 %v957, %v973
        %v975 = vmul.f32 %v974, %v974
        %v976 = vsel %vm962, %v975, 0.0
        %977 = vadd.xlane.f32.xlu0 %v976
        %v978 = vpop.xlane.xlu0 %977
        %v979 = vmul.f32 %v978, %v972
        %v980 = vadd.f32 %v979, 1e-05
        %v981 = vrsqrt.pop %v980
        %v982 = vmul.f32 %v981, %v980
        %v983 = vmul.f32 %v982, %v981
        %v984 = vmul.f32 0.5, %v983
        %v985 = vsub.f32 1.5, %v984
        %v986 = vmul.f32 %v981, %v985
        %vm987 = vweird.f32 %v980
        %vm988 = vweird.f32 %v981
        %vm989 = vmor %vm987, %vm988
        %v990 = vsel %vm989, %v981, %v986
        %v991 = vmul.f32 %v974, %v990
        %v993 = vperm.slane %v960, 0
        %v995 = vmul.f32 %v991, %v993
        %v997 = vperm.slane %v961, 0
        %v999 = vadd.f32 %v995, %v997
        %v1000 = vpack.c.bf16 %v999, %v999
        %v1001 = vld [vmem:[%s9] sm:$0x1]
        %v1002 = vld [vmem:[%s11] sm:$0x1]
        %v1003 = vsel %vm962, %v958, 0.0
        %1004 = vadd.xlane.f32.xlu0 %v1003
        %v1005 = vpop.xlane.xlu0 %1004
        %v1006 = vsel %vm962, %v959, 0.0
        %1007 = vadd.xlane.f32.xlu0 %v1006
        %v1008 = vpop.xlane.xlu0 %1007
        %v1009 = vmul.f32 %v1005, %v972
        %v1010 = vmul.f32 %v1008, %v972
        %v1011 = vsub.f32 %v958, %v1009
        %v1012 = vsub.f32 %v959, %v1010
        %v1013 = vmul.f32 %v1011, %v1011
        %v1014 = vmul.f32 %v1012, %v1012
        %v1015 = vsel %vm962, %v1013, 0.0
        %1016 = vadd.xlane.f32.xlu0 %v1015
        %v1017 = vpop.xlane.xlu0 %1016
        %v1018 = vsel %vm962, %v1014, 0.0
        %1019 = vadd.xlane.f32.xlu0 %v1018
        %v1020 = vpop.xlane.xlu0 %1019
        %v1021 = vmul.f32 %v1017, %v972
        %v1022 = vmul.f32 %v1020, %v972
        %v1023 = vadd.f32 %v1021, 1e-05
        %v1024 = vadd.f32 %v1022, 1e-05
        %v1025 = vrsqrt.pop %v1023
        %v1026 = vmul.f32 %v1025, %v1023
        %v1027 = vmul.f32 %v1026, %v1025
        %v1028 = vmul.f32 0.5, %v1027
        %v1029 = vsub.f32 1.5, %v1028
        %v1030 = vmul.f32 %v1025, %v1029
        %vm1031 = vweird.f32 %v1023
        %vm1032 = vweird.f32 %v1025
        %vm1033 = vmor %vm1031, %vm1032
        %v1034 = vsel %vm1033, %v1025, %v1030
        %v1035 = vrsqrt.pop %v1024
        %v1036 = vmul.f32 %v1035, %v1024
        %v1037 = vmul.f32 %v1036, %v1035
        %v1038 = vmul.f32 0.5, %v1037
        %v1039 = vsub.f32 1.5, %v1038
        %v1040 = vmul.f32 %v1035, %v1039
        %vm1041 = vweird.f32 %v1024
        %vm1042 = vweird.f32 %v1035
        %vm1043 = vmor %vm1041, %vm1042
        %v1044 = vsel %vm1043, %v1035, %v1040
        %v1045 = vmul.f32 %v1011, %v1034
        %v1046 = vmul.f32 %v1012, %v1044
        %v1048 = vperm.slane %v1001, 0
        %v1050 = vmul.f32 %v1045, %v1048
        %v1051 = vmul.f32 %v1046, %v1048
        %v1053 = vperm.slane %v1002, 0
        %v1055 = vadd.f32 %v1050, %v1053
        %v1056 = vadd.f32 %v1051, %v1053
        %v1057 = vpack.c.bf16 %v1055, %v1055
        %v1058 = vpack.c.bf16 %v1056, %v1056
        %v1059 = vld [vmem:[%s13] sm:$0xf]
        %v1060 = vld [vmem:[%s13 + $0x4] sm:$0xf]
        %v1061 = vld [vmem:[%s13 + $0x8] sm:$0xf]
        %v1062 = vld [vmem:[%s13 + $0xc] sm:$0xf]
        %v1063 = vld [vmem:[%s13 + $0x10] sm:$0xf]
        %v1064 = vld [vmem:[%s13 + $0x14] sm:$0xf]
        %v1065 = vld [vmem:[%s13 + $0x18] sm:$0xf]
        %v1066 = vld [vmem:[%s13 + $0x1c] sm:$0xf]
        %v1067 = vld [vmem:[%s13 + $0x20] sm:$0xf]
        %v1068 = vld [vmem:[%s13 + $0x24] sm:$0xf]
        %v1069 = vld [vmem:[%s13 + $0x28] sm:$0xf]
        %v1070 = vld [vmem:[%s13 + $0x2c] sm:$0xf]
        %v1071 = vld [vmem:[%s13 + $0x30] sm:$0xf]
        %v1072 = vld [vmem:[%s13 + $0x34] sm:$0xf]
        %v1073 = vld [vmem:[%s13 + $0x38] sm:$0xf]
        %v1074 = vld [vmem:[%s13 + $0x3c] sm:$0xf]
        %v1079 = vunpack.c.l.b16 %v1059
        %v1080 = vunpack.c.l.b16 %v1060
        %v1081 = vunpack.c.l.b16 %v1061
        %v1082 = vunpack.c.l.b16 %v1062
        %v1083 = vpack.c.b16 %v1080, %v1079
        %v1084 = vpack.c.b16 %v1082, %v1081
        %v1088 = vsel %vm962, %v1000, 0
        %1090 = vmatpush.bf16.msra.mxu0 0
        %1091 = vmatpush.bf16.msra.mxu0 0
        %1092 = vmatpush.bf16.msra.mxu0 0
        %1093 = vmatpush.bf16.msra.mxu0 0
        %1094 = vmatpush.bf16.msra.mxu0 0
        %1095 = vmatpush.bf16.msra.mxu0 0
        %1096 = vmatpush.bf16.msra.mxu0 %v1084
        %1097 = vmatpush.bf16.msra.mxu0 %v1083
        %1098 = vmatmul.bf16.gmra.mxu0 %v1088
        %v1099 = vpop.f32.mrf.mxu0
        %v1100 = vadd.f32 0.0, %v1099
        %v1101 = vpop.f32.mrf.mxu0
        %1102 = vdwg.mxu0
        %v1107 = vunpack.c.l.b16 %v1063
        %v1108 = vunpack.c.l.b16 %v1064
        %v1109 = vunpack.c.l.b16 %v1065
        %v1110 = vunpack.c.l.b16 %v1066
        %v1111 = vpack.c.b16 %v1108, %v1107
        %v1112 = vpack.c.b16 %v1110, %v1109
        %1115 = vmatpush.bf16.msra.mxu0 0
        %1116 = vmatpush.bf16.msra.mxu0 0
        %1117 = vmatpush.bf16.msra.mxu0 0
        %1118 = vmatpush.bf16.msra.mxu0 0
        %1119 = vmatpush.bf16.msra.mxu0 0
        %1120 = vmatpush.bf16.msra.mxu0 0
        %1121 = vmatpush.bf16.msra.mxu0 %v1112
        %1122 = vmatpush.bf16.msra.mxu0 %v1111
        %1123 = vmatmul.bf16.gmra.mxu0 %v1088
        %v1124 = vpop.f32.mrf.mxu0
        %v1125 = vadd.f32 0.0, %v1124
        %v1126 = vpop.f32.mrf.mxu0
        %1127 = vdwg.mxu0
        %v1132 = vunpack.c.l.b16 %v1067
        %v1133 = vunpack.c.l.b16 %v1068
        %v1134 = vunpack.c.l.b16 %v1069
        %v1135 = vunpack.c.l.b16 %v1070
        %v1136 = vpack.c.b16 %v1133, %v1132
        %v1137 = vpack.c.b16 %v1135, %v1134
        %1140 = vmatpush.bf16.msra.mxu0 0
        %1141 = vmatpush.bf16.msra.mxu0 0
        %1142 = vmatpush.bf16.msra.mxu0 0
        %1143 = vmatpush.bf16.msra.mxu0 0
        %1144 = vmatpush.bf16.msra.mxu0 0
        %1145 = vmatpush.bf16.msra.mxu0 0
        %1146 = vmatpush.bf16.msra.mxu0 %v1137
        %1147 = vmatpush.bf16.msra.mxu0 %v1136
        %1148 = vmatmul.bf16.gmra.mxu0 %v1088
        %v1149 = vpop.f32.mrf.mxu0
        %v1150 = vadd.f32 0.0, %v1149
        %v1151 = vpop.f32.mrf.mxu0
        %1152 = vdwg.mxu0
        %v1157 = vunpack.c.l.b16 %v1071
        %v1158 = vunpack.c.l.b16 %v1072
        %v1159 = vunpack.c.l.b16 %v1073
        %v1160 = vunpack.c.l.b16 %v1074
        %v1161 = vpack.c.b16 %v1158, %v1157
        %v1162 = vpack.c.b16 %v1160, %v1159
        %1165 = vmatpush.bf16.msra.mxu0 0
        %1166 = vmatpush.bf16.msra.mxu0 0
        %1167 = vmatpush.bf16.msra.mxu0 0
        %1168 = vmatpush.bf16.msra.mxu0 0
        %1169 = vmatpush.bf16.msra.mxu0 0
        %1170 = vmatpush.bf16.msra.mxu0 0
        %1171 = vmatpush.bf16.msra.mxu0 %v1162
        %1172 = vmatpush.bf16.msra.mxu0 %v1161
        %1173 = vmatmul.bf16.gmra.mxu0 %v1088
        %v1174 = vpop.f32.mrf.mxu0
        %v1175 = vadd.f32 0.0, %v1174
        %v1176 = vpop.f32.mrf.mxu0
        %1177 = vdwg.mxu0
        %v1178 = vld [vmem:[%s15] sm:$0xf]
        %v1179 = vld [vmem:[%s15 + $0x4] sm:$0xf]
        %v1180 = vld [vmem:[%s15 + $0x8] sm:$0xf]
        %v1181 = vld [vmem:[%s15 + $0xc] sm:$0xf]
        %v1182 = vld [vmem:[%s15 + $0x10] sm:$0xf]
        %v1183 = vld [vmem:[%s15 + $0x14] sm:$0xf]
        %v1184 = vld [vmem:[%s15 + $0x18] sm:$0xf]
        %v1185 = vld [vmem:[%s15 + $0x1c] sm:$0xf]
        %v1186 = vld [vmem:[%s15 + $0x20] sm:$0xf]
        %v1187 = vld [vmem:[%s15 + $0x24] sm:$0xf]
        %v1188 = vld [vmem:[%s15 + $0x28] sm:$0xf]
        %v1189 = vld [vmem:[%s15 + $0x2c] sm:$0xf]
        %v1190 = vld [vmem:[%s15 + $0x30] sm:$0xf]
        %v1191 = vld [vmem:[%s15 + $0x34] sm:$0xf]
        %v1192 = vld [vmem:[%s15 + $0x38] sm:$0xf]
        %v1193 = vld [vmem:[%s15 + $0x3c] sm:$0xf]
        %v1198 = vunpack.c.l.b16 %v1178
        %v1199 = vunpack.c.l.b16 %v1179
        %v1200 = vunpack.c.l.b16 %v1180
        %v1201 = vunpack.c.l.b16 %v1181
        %v1202 = vpack.c.b16 %v1199, %v1198
        %v1203 = vpack.c.b16 %v1201, %v1200
        %1206 = vmatpush.bf16.msra.mxu0 0
        %1207 = vmatpush.bf16.msra.mxu0 0
        %1208 = vmatpush.bf16.msra.mxu0 0
        %1209 = vmatpush.bf16.msra.mxu0 0
        %1210 = vmatpush.bf16.msra.mxu0 0
        %1211 = vmatpush.bf16.msra.mxu0 0
        %1212 = vmatpush.bf16.msra.mxu0 %v1203
        %1213 = vmatpush.bf16.msra.mxu0 %v1202
        %1214 = vmatmul.bf16.gmra.mxu0 %v1088
        %v1215 = vpop.f32.mrf.mxu0
        %v1216 = vadd.f32 0.0, %v1215
        %v1217 = vpop.f32.mrf.mxu0
        %1218 = vdwg.mxu0
        %v1223 = vunpack.c.l.b16 %v1182
        %v1224 = vunpack.c.l.b16 %v1183
        %v1225 = vunpack.c.l.b16 %v1184
        %v1226 = vunpack.c.l.b16 %v1185
        %v1227 = vpack.c.b16 %v1224, %v1223
        %v1228 = vpack.c.b16 %v1226, %v1225
        %1231 = vmatpush.bf16.msra.mxu0 0
        %1232 = vmatpush.bf16.msra.mxu0 0
        %1233 = vmatpush.bf16.msra.mxu0 0
        %1234 = vmatpush.bf16.msra.mxu0 0
        %1235 = vmatpush.bf16.msra.mxu0 0
        %1236 = vmatpush.bf16.msra.mxu0 0
        %1237 = vmatpush.bf16.msra.mxu0 %v1228
        %1238 = vmatpush.bf16.msra.mxu0 %v1227
        %1239 = vmatmul.bf16.gmra.mxu0 %v1088
        %v1240 = vpop.f32.mrf.mxu0
        %v1241 = vadd.f32 0.0, %v1240
        %v1242 = vpop.f32.mrf.mxu0
        %1243 = vdwg.mxu0
        %v1248 = vunpack.c.l.b16 %v1186
        %v1249 = vunpack.c.l.b16 %v1187
        %v1250 = vunpack.c.l.b16 %v1188
        %v1251 = vunpack.c.l.b16 %v1189
        %v1252 = vpack.c.b16 %v1249, %v1248
        %v1253 = vpack.c.b16 %v1251, %v1250
        %1256 = vmatpush.bf16.msra.mxu0 0
        %1257 = vmatpush.bf16.msra.mxu0 0
        %1258 = vmatpush.bf16.msra.mxu0 0
        %1259 = vmatpush.bf16.msra.mxu0 0
        %1260 = vmatpush.bf16.msra.mxu0 0
        %1261 = vmatpush.bf16.msra.mxu0 0
        %1262 = vmatpush.bf16.msra.mxu0 %v1253
        %1263 = vmatpush.bf16.msra.mxu0 %v1252
        %1264 = vmatmul.bf16.gmra.mxu0 %v1088
        %v1265 = vpop.f32.mrf.mxu0
        %v1266 = vadd.f32 0.0, %v1265
        %v1267 = vpop.f32.mrf.mxu0
        %1268 = vdwg.mxu0
        %v1273 = vunpack.c.l.b16 %v1190
        %v1274 = vunpack.c.l.b16 %v1191
        %v1275 = vunpack.c.l.b16 %v1192
        %v1276 = vunpack.c.l.b16 %v1193
        %v1277 = vpack.c.b16 %v1274, %v1273
        %v1278 = vpack.c.b16 %v1276, %v1275
        %1281 = vmatpush.bf16.msra.mxu0 0
        %1282 = vmatpush.bf16.msra.mxu0 0
        %1283 = vmatpush.bf16.msra.mxu0 0
        %1284 = vmatpush.bf16.msra.mxu0 0
        %1285 = vmatpush.bf16.msra.mxu0 0
        %1286 = vmatpush.bf16.msra.mxu0 0
        %1287 = vmatpush.bf16.msra.mxu0 %v1278
        %1288 = vmatpush.bf16.msra.mxu0 %v1277
        %1289 = vmatmul.bf16.gmra.mxu0 %v1088
        %v1290 = vpop.f32.mrf.mxu0
        %v1291 = vadd.f32 0.0, %v1290
        %v1292 = vpop.f32.mrf.mxu0
        %1293 = vdwg.mxu0
        %v1294 = vld [vmem:[%s17] sm:$0xf]
        %v1295 = vld [vmem:[%s17 + $0x4] sm:$0xf]
        %v1296 = vld [vmem:[%s17 + $0x8] sm:$0xf]
        %v1297 = vld [vmem:[%s17 + $0xc] sm:$0xf]
        %v1298 = vld [vmem:[%s17 + $0x10] sm:$0xf]
        %v1299 = vld [vmem:[%s17 + $0x14] sm:$0xf]
        %v1300 = vld [vmem:[%s17 + $0x18] sm:$0xf]
        %v1301 = vld [vmem:[%s17 + $0x1c] sm:$0xf]
        %v1302 = vld [vmem:[%s17 + $0x20] sm:$0xf]
        %v1303 = vld [vmem:[%s17 + $0x24] sm:$0xf]
        %v1304 = vld [vmem:[%s17 + $0x28] sm:$0xf]
        %v1305 = vld [vmem:[%s17 + $0x2c] sm:$0xf]
        %v1306 = vld [vmem:[%s17 + $0x30] sm:$0xf]
        %v1307 = vld [vmem:[%s17 + $0x34] sm:$0xf]
        %v1308 = vld [vmem:[%s17 + $0x38] sm:$0xf]
        %v1309 = vld [vmem:[%s17 + $0x3c] sm:$0xf]
        %v1312 = vunpack.c.l.b16 %v1057
        %v1313 = vunpack.c.l.b16 %v1058
        %v1314 = vpack.c.b16 %v1313, %v1312
        %v1319 = vunpack.c.l.b16 %v1294
        %v1320 = vunpack.c.l.b16 %v1295
        %v1321 = vunpack.c.l.b16 %v1296
        %v1322 = vunpack.c.l.b16 %v1297
        %v1323 = vpack.c.b16 %v1320, %v1319
        %v1324 = vpack.c.b16 %v1322, %v1321
        %v1328 = vsel %vm962, %v1314, 0
        %1330 = vmatpush.bf16.msra.mxu0 0
        %1331 = vmatpush.bf16.msra.mxu0 0
        %1332 = vmatpush.bf16.msra.mxu0 0
        %1333 = vmatpush.bf16.msra.mxu0 0
        %1334 = vmatpush.bf16.msra.mxu0 0
        %1335 = vmatpush.bf16.msra.mxu0 0
        %1336 = vmatpush.bf16.msra.mxu0 %v1324
        %1337 = vmatpush.bf16.msra.mxu0 %v1323
        %1338 = vmatmul.bf16.gmra.mxu0 %v1328
        %v1339 = vpop.f32.mrf.mxu0
        %v1340 = vadd.f32 0.0, %v1339
        %v1341 = vpop.f32.mrf.mxu0
        %v1342 = vadd.f32 0.0, %v1341
        %1343 = vdwg.mxu0
        %v1348 = vunpack.c.l.b16 %v1298
        %v1349 = vunpack.c.l.b16 %v1299
        %v1350 = vunpack.c.l.b16 %v1300
        %v1351 = vunpack.c.l.b16 %v1301
        %v1352 = vpack.c.b16 %v1349, %v1348
        %v1353 = vpack.c.b16 %v1351, %v1350
        %1356 = vmatpush.bf16.msra.mxu0 0
        %1357 = vmatpush.bf16.msra.mxu0 0
        %1358 = vmatpush.bf16.msra.mxu0 0
        %1359 = vmatpush.bf16.msra.mxu0 0
        %1360 = vmatpush.bf16.msra.mxu0 0
        %1361 = vmatpush.bf16.msra.mxu0 0
        %1362 = vmatpush.bf16.msra.mxu0 %v1353
        %1363 = vmatpush.bf16.msra.mxu0 %v1352
        %1364 = vmatmul.bf16.gmra.mxu0 %v1328
        %v1365 = vpop.f32.mrf.mxu0
        %v1366 = vadd.f32 0.0, %v1365
        %v1367 = vpop.f32.mrf.mxu0
        %v1368 = vadd.f32 0.0, %v1367
        %1369 = vdwg.mxu0
        %v1374 = vunpack.c.l.b16 %v1302
        %v1375 = vunpack.c.l.b16 %v1303
        %v1376 = vunpack.c.l.b16 %v1304
        %v1377 = vunpack.c.l.b16 %v1305
        %v1378 = vpack.c.b16 %v1375, %v1374
        %v1379 = vpack.c.b16 %v1377, %v1376
        %1382 = vmatpush.bf16.msra.mxu0 0
        %1383 = vmatpush.bf16.msra.mxu0 0
        %1384 = vmatpush.bf16.msra.mxu0 0
        %1385 = vmatpush.bf16.msra.mxu0 0
        %1386 = vmatpush.bf16.msra.mxu0 0
        %1387 = vmatpush.bf16.msra.mxu0 0
        %1388 = vmatpush.bf16.msra.mxu0 %v1379
        %1389 = vmatpush.bf16.msra.mxu0 %v1378
        %1390 = vmatmul.bf16.gmra.mxu0 %v1328
        %v1391 = vpop.f32.mrf.mxu0
        %v1392 = vadd.f32 0.0, %v1391
        %v1393 = vpop.f32.mrf.mxu0
        %v1394 = vadd.f32 0.0, %v1393
        %1395 = vdwg.mxu0
        %v1400 = vunpack.c.l.b16 %v1306
        %v1401 = vunpack.c.l.b16 %v1307
        %v1402 = vunpack.c.l.b16 %v1308
        %v1403 = vunpack.c.l.b16 %v1309
        %v1404 = vpack.c.b16 %v1401, %v1400
        %v1405 = vpack.c.b16 %v1403, %v1402
        %1408 = vmatpush.bf16.msra.mxu0 0
        %1409 = vmatpush.bf16.msra.mxu0 0
        %1410 = vmatpush.bf16.msra.mxu0 0
        %1411 = vmatpush.bf16.msra.mxu0 0
        %1412 = vmatpush.bf16.msra.mxu0 0
        %1413 = vmatpush.bf16.msra.mxu0 0
        %1414 = vmatpush.bf16.msra.mxu0 %v1405
        %1415 = vmatpush.bf16.msra.mxu0 %v1404
        %1416 = vmatmul.bf16.gmra.mxu0 %v1328
        %v1417 = vpop.f32.mrf.mxu0
        %v1418 = vadd.f32 0.0, %v1417
        %v1419 = vpop.f32.mrf.mxu0
        %v1420 = vadd.f32 0.0, %v1419
        %1421 = vdwg.mxu0
        %v1422 = vld [vmem:[%s19] sm:$0xf]
        %v1423 = vld [vmem:[%s19 + $0x4] sm:$0xf]
        %v1424 = vld [vmem:[%s19 + $0x8] sm:$0xf]
        %v1425 = vld [vmem:[%s19 + $0xc] sm:$0xf]
        %v1426 = vld [vmem:[%s19 + $0x10] sm:$0xf]
        %v1427 = vld [vmem:[%s19 + $0x14] sm:$0xf]
        %v1428 = vld [vmem:[%s19 + $0x18] sm:$0xf]
        %v1429 = vld [vmem:[%s19 + $0x1c] sm:$0xf]
        %v1430 = vld [vmem:[%s19 + $0x20] sm:$0xf]
        %v1431 = vld [vmem:[%s19 + $0x24] sm:$0xf]
        %v1432 = vld [vmem:[%s19 + $0x28] sm:$0xf]
        %v1433 = vld [vmem:[%s19 + $0x2c] sm:$0xf]
        %v1434 = vld [vmem:[%s19 + $0x30] sm:$0xf]
        %v1435 = vld [vmem:[%s19 + $0x34] sm:$0xf]
        %v1436 = vld [vmem:[%s19 + $0x38] sm:$0xf]
        %v1437 = vld [vmem:[%s19 + $0x3c] sm:$0xf]
        %v1442 = vunpack.c.l.b16 %v1422
        %v1443 = vunpack.c.l.b16 %v1423
        %v1444 = vunpack.c.l.b16 %v1424
        %v1445 = vunpack.c.l.b16 %v1425
        %v1446 = vpack.c.b16 %v1443, %v1442
        %v1447 = vpack.c.b16 %v1445, %v1444
        %1450 = vmatpush.bf16.msra.mxu0 0
        %1451 = vmatpush.bf16.msra.mxu0 0
        %1452 = vmatpush.bf16.msra.mxu0 0
        %1453 = vmatpush.bf16.msra.mxu0 0
        %1454 = vmatpush.bf16.msra.mxu0 0
        %1455 = vmatpush.bf16.msra.mxu0 0
        %1456 = vmatpush.bf16.msra.mxu0 %v1447
        %1457 = vmatpush.bf16.msra.mxu0 %v1446
        %1458 = vmatmul.bf16.gmra.mxu0 %v1328
        %v1459 = vpop.f32.mrf.mxu0
        %v1460 = vadd.f32 0.0, %v1459
        %v1461 = vpop.f32.mrf.mxu0
        %v1462 = vadd.f32 0.0, %v1461
        %1463 = vdwg.mxu0
        %v1468 = vunpack.c.l.b16 %v1426
        %v1469 = vunpack.c.l.b16 %v1427
        %v1470 = vunpack.c.l.b16 %v1428
        %v1471 = vunpack.c.l.b16 %v1429
        %v1472 = vpack.c.b16 %v1469, %v1468
        %v1473 = vpack.c.b16 %v1471, %v1470
        %1476 = vmatpush.bf16.msra.mxu0 0
        %1477 = vmatpush.bf16.msra.mxu0 0
        %1478 = vmatpush.bf16.msra.mxu0 0
        %1479 = vmatpush.bf16.msra.mxu0 0
        %1480 = vmatpush.bf16.msra.mxu0 0
        %1481 = vmatpush.bf16.msra.mxu0 0
        %1482 = vmatpush.bf16.msra.mxu0 %v1473
        %1483 = vmatpush.bf16.msra.mxu0 %v1472
        %1484 = vmatmul.bf16.gmra.mxu0 %v1328
        %v1485 = vpop.f32.mrf.mxu0
        %v1486 = vadd.f32 0.0, %v1485
        %v1487 = vpop.f32.mrf.mxu0
        %v1488 = vadd.f32 0.0, %v1487
        %1489 = vdwg.mxu0
        %v1494 = vunpack.c.l.b16 %v1430
        %v1495 = vunpack.c.l.b16 %v1431
        %v1496 = vunpack.c.l.b16 %v1432
        %v1497 = vunpack.c.l.b16 %v1433
        %v1498 = vpack.c.b16 %v1495, %v1494
        %v1499 = vpack.c.b16 %v1497, %v1496
        %1502 = vmatpush.bf16.msra.mxu0 0
        %1503 = vmatpush.bf16.msra.mxu0 0
        %1504 = vmatpush.bf16.msra.mxu0 0
        %1505 = vmatpush.bf16.msra.mxu0 0
        %1506 = vmatpush.bf16.msra.mxu0 0
        %1507 = vmatpush.bf16.msra.mxu0 0
        %1508 = vmatpush.bf16.msra.mxu0 %v1499
        %1509 = vmatpush.bf16.msra.mxu0 %v1498
        %1510 = vmatmul.bf16.gmra.mxu0 %v1328
        %v1511 = vpop.f32.mrf.mxu0
        %v1512 = vadd.f32 0.0, %v1511
        %v1513 = vpop.f32.mrf.mxu0
        %v1514 = vadd.f32 0.0, %v1513
        %1515 = vdwg.mxu0
        %v1520 = vunpack.c.l.b16 %v1434
        %v1521 = vunpack.c.l.b16 %v1435
        %v1522 = vunpack.c.l.b16 %v1436
        %v1523 = vunpack.c.l.b16 %v1437
        %v1524 = vpack.c.b16 %v1521, %v1520
        %v1525 = vpack.c.b16 %v1523, %v1522
        %1528 = vmatpush.bf16.msra.mxu0 0
        %1529 = vmatpush.bf16.msra.mxu0 0
        %1530 = vmatpush.bf16.msra.mxu0 0
        %1531 = vmatpush.bf16.msra.mxu0 0
        %1532 = vmatpush.bf16.msra.mxu0 0
        %1533 = vmatpush.bf16.msra.mxu0 0
        %1534 = vmatpush.bf16.msra.mxu0 %v1525
        %1535 = vmatpush.bf16.msra.mxu0 %v1524
        %1536 = vmatmul.bf16.gmra.mxu0 %v1328
        %v1537 = vpop.f32.mrf.mxu0
        %v1538 = vadd.f32 0.0, %v1537
        %v1539 = vpop.f32.mrf.mxu0
        %v1540 = vadd.f32 0.0, %v1539
        %1541 = vdwg.mxu0
        %v1542 = vpack.c.bf16 %v1100, %v1100
        %v1543 = vpack.c.bf16 %v1125, %v1125
        %v1544 = vpack.c.bf16 %v1150, %v1150
        %v1545 = vpack.c.bf16 %v1175, %v1175
        %v1546 = vpack.c.bf16 %v1216, %v1216
        %v1547 = vpack.c.bf16 %v1241, %v1241
        %v1548 = vpack.c.bf16 %v1266, %v1266
        %v1549 = vpack.c.bf16 %v1291, %v1291
        %v1550 = vpack.c.bf16 %v1340, %v1340
        %v1551 = vpack.c.bf16 %v1342, %v1342
        %v1552 = vpack.c.bf16 %v1366, %v1366
        %v1553 = vpack.c.bf16 %v1368, %v1368
        %v1554 = vpack.c.bf16 %v1392, %v1392
        %v1555 = vpack.c.bf16 %v1394, %v1394
        %v1556 = vpack.c.bf16 %v1418, %v1418
        %v1557 = vpack.c.bf16 %v1420, %v1420
        %v1558 = vpack.c.bf16 %v1460, %v1460
        %v1559 = vpack.c.bf16 %v1462, %v1462
        %v1560 = vpack.c.bf16 %v1486, %v1486
        %v1561 = vpack.c.bf16 %v1488, %v1488
        %v1562 = vpack.c.bf16 %v1512, %v1512
        %v1563 = vpack.c.bf16 %v1514, %v1514
        %v1564 = vpack.c.bf16 %v1538, %v1538
        %v1565 = vpack.c.bf16 %v1540, %v1540
        %v1568 = vunpack.c.l.b16 %v1550
        %v1569 = vunpack.c.l.b16 %v1551
        %v1570 = vpack.c.b16 %v1569, %v1568
        %vm1571 = vcmask 130048
        %v1573 = vsel %vm1571, %v1542, 0
        %v1576 = vsel %vm1571, %v1570, 0
        %1578 = vmatpush.bf16.xpose.msra.mxu0 0
        %1579 = vmatpush.bf16.xpose.msra.mxu0 0
        %1580 = vmatpush.bf16.xpose.msra.mxu0 0
        %1581 = vmatpush.bf16.xpose.msra.mxu0 0
        %1582 = vmatpush.bf16.xpose.msra.mxu0 0
        %1583 = vmatpush.bf16.xpose.msra.mxu0 0
        %1584 = vmatpush.bf16.xpose.msra.mxu0 0
        %1585 = vmatpush.bf16.xpose.msra.mxu0 %v1576
        %1586 = vmatmul.bf16.gmra.mxu0 %v1573
        %v1587 = vpop.f32.mrf.mxu0
        %v1588 = vadd.f32 0.0, %v1587
        %v1589 = vpop.f32.mrf.mxu0
        %1590 = vdwg.mxu0
        %v1593 = vunpack.c.l.b16 %v1552
        %v1594 = vunpack.c.l.b16 %v1553
        %v1595 = vpack.c.b16 %v1594, %v1593
        %v1597 = vsel %vm1571, %v1543, 0
        %v1600 = vsel %vm1571, %v1595, 0
        %1602 = vmatpush.bf16.xpose.msra.mxu0 0
        %1603 = vmatpush.bf16.xpose.msra.mxu0 0
        %1604 = vmatpush.bf16.xpose.msra.mxu0 0
        %1605 = vmatpush.bf16.xpose.msra.mxu0 0
        %1606 = vmatpush.bf16.xpose.msra.mxu0 0
        %1607 = vmatpush.bf16.xpose.msra.mxu0 0
        %1608 = vmatpush.bf16.xpose.msra.mxu0 0
        %1609 = vmatpush.bf16.xpose.msra.mxu0 %v1600
        %1610 = vmatmul.bf16.gmra.mxu0 %v1597
        %v1611 = vpop.f32.mrf.mxu0
        %v1612 = vadd.f32 0.0, %v1611
        %v1613 = vpop.f32.mrf.mxu0
        %1614 = vdwg.mxu0
        %v1617 = vunpack.c.l.b16 %v1554
        %v1618 = vunpack.c.l.b16 %v1555
        %v1619 = vpack.c.b16 %v1618, %v1617
        %v1621 = vsel %vm1571, %v1544, 0
        %v1624 = vsel %vm1571, %v1619, 0
        %1626 = vmatpush.bf16.xpose.msra.mxu0 0
        %1627 = vmatpush.bf16.xpose.msra.mxu0 0
        %1628 = vmatpush.bf16.xpose.msra.mxu0 0
        %1629 = vmatpush.bf16.xpose.msra.mxu0 0
        %1630 = vmatpush.bf16.xpose.msra.mxu0 0
        %1631 = vmatpush.bf16.xpose.msra.mxu0 0
        %1632 = vmatpush.bf16.xpose.msra.mxu0 0
        %1633 = vmatpush.bf16.xpose.msra.mxu0 %v1624
        %1634 = vmatmul.bf16.gmra.mxu0 %v1621
        %v1635 = vpop.f32.mrf.mxu0
        %v1636 = vadd.f32 0.0, %v1635
        %v1637 = vpop.f32.mrf.mxu0
        %1638 = vdwg.mxu0
        %v1641 = vunpack.c.l.b16 %v1556
        %v1642 = vunpack.c.l.b16 %v1557
        %v1643 = vpack.c.b16 %v1642, %v1641
        %v1645 = vsel %vm1571, %v1545, 0
        %v1648 = vsel %vm1571, %v1643, 0
        %1650 = vmatpush.bf16.xpose.msra.mxu0 0
        %1651 = vmatpush.bf16.xpose.msra.mxu0 0
        %1652 = vmatpush.bf16.xpose.msra.mxu0 0
        %1653 = vmatpush.bf16.xpose.msra.mxu0 0
        %1654 = vmatpush.bf16.xpose.msra.mxu0 0
        %1655 = vmatpush.bf16.xpose.msra.mxu0 0
        %1656 = vmatpush.bf16.xpose.msra.mxu0 0
        %1657 = vmatpush.bf16.xpose.msra.mxu0 %v1648
        %1658 = vmatmul.bf16.gmra.mxu0 %v1645
        %v1659 = vpop.f32.mrf.mxu0
        %v1660 = vadd.f32 0.0, %v1659
        %v1661 = vpop.f32.mrf.mxu0
        %1662 = vdwg.mxu0
        %v1663 = vmul.f32 %v1588, 0.25
        %v1664 = vmul.f32 %v1612, 0.25
        %v1665 = vmul.f32 %v1636, 0.25
        %v1666 = vmul.f32 %v1660, 0.25
        %v1667 = vsel %vm1571, %v1663, -inf
        %1668 = vmax.xlane.f32.xlu0 %v1667
        %v1669 = vpop.xlane.xlu0 %1668
        %v1670 = vsel %vm1571, %v1664, -inf
        %1671 = vmax.xlane.f32.xlu0 %v1670
        %v1672 = vpop.xlane.xlu0 %1671
        %v1673 = vsel %vm1571, %v1665, -inf
        %1674 = vmax.xlane.f32.xlu0 %v1673
        %v1675 = vpop.xlane.xlu0 %1674
        %v1676 = vsel %vm1571, %v1666, -inf
        %1677 = vmax.xlane.f32.xlu0 %v1676
        %v1678 = vpop.xlane.xlu0 %1677
        %v1679 = vsub.f32 %v1663, %v1669
        %v1680 = vsub.f32 %v1664, %v1672
        %v1681 = vsub.f32 %v1665, %v1675
        %v1682 = vsub.f32 %v1666, %v1678
        %v1683 = vmul.f32 %v1679, 1.442695
        %v1684 = vpow.pop %v1683
        %v1685 = vmul.f32 %v1680, 1.442695
        %v1686 = vpow.pop %v1685
        %v1687 = vmul.f32 %v1681, 1.442695
        %v1688 = vpow.pop %v1687
        %v1689 = vmul.f32 %v1682, 1.442695
        %v1690 = vpow.pop %v1689
        %v1691 = vsel %vm1571, %v1684, 0.0
        %1692 = vadd.xlane.f32.xlu0 %v1691
        %v1693 = vpop.xlane.xlu0 %1692
        %v1694 = vsel %vm1571, %v1686, 0.0
        %1695 = vadd.xlane.f32.xlu0 %v1694
        %v1696 = vpop.xlane.xlu0 %1695
        %v1697 = vsel %vm1571, %v1688, 0.0
        %1698 = vadd.xlane.f32.xlu0 %v1697
        %v1699 = vpop.xlane.xlu0 %1698
        %v1700 = vsel %vm1571, %v1690, 0.0
        %1701 = vadd.xlane.f32.xlu0 %v1700
        %v1702 = vpop.xlane.xlu0 %1701
        %v1703 = vrcp.pop %v1693
        %v1704 = vrcp.pop %v1696
        %v1705 = vrcp.pop %v1699
        %v1706 = vrcp.pop %v1702
        %v1707 = vmul.f32 %v1684, %v1703
        %v1708 = vmul.f32 %v1686, %v1704
        %v1709 = vmul.f32 %v1688, %v1705
        %v1710 = vmul.f32 %v1690, %v1706
        %v1711 = vrot.slane %v1667, 4
        %v1712 = vmax.f32 %v1667, %v1711
        %v1713 = vrot.slane %v1712, 2
        %v1714 = vmax.f32 %v1712, %v1713
        %v1715 = vrot.slane %v1714, 1
        %v1716 = vmax.f32 %v1714, %v1715
        %v1717 = vrot.slane %v1670, 4
        %v1718 = vmax.f32 %v1670, %v1717
        %v1719 = vrot.slane %v1718, 2
        %v1720 = vmax.f32 %v1718, %v1719
        %v1721 = vrot.slane %v1720, 1
        %v1722 = vmax.f32 %v1720, %v1721
        %v1723 = vrot.slane %v1673, 4
        %v1724 = vmax.f32 %v1673, %v1723
        %v1725 = vrot.slane %v1724, 2
        %v1726 = vmax.f32 %v1724, %v1725
        %v1727 = vrot.slane %v1726, 1
        %v1728 = vmax.f32 %v1726, %v1727
        %v1729 = vrot.slane %v1676, 4
        %v1730 = vmax.f32 %v1676, %v1729
        %v1731 = vrot.slane %v1730, 2
        %v1732 = vmax.f32 %v1730, %v1731
        %v1733 = vrot.slane %v1732, 1
        %v1734 = vmax.f32 %v1732, %v1733
        %v1735 = vsub.f32 %v1663, %v1716
        %v1736 = vsub.f32 %v1664, %v1722
        %v1737 = vsub.f32 %v1665, %v1728
        %v1738 = vsub.f32 %v1666, %v1734
        %v1739 = vmul.f32 %v1735, 1.442695
        %v1740 = vpow.pop %v1739
        %v1741 = vmul.f32 %v1736, 1.442695
        %v1742 = vpow.pop %v1741
        %v1743 = vmul.f32 %v1737, 1.442695
        %v1744 = vpow.pop %v1743
        %v1745 = vmul.f32 %v1738, 1.442695
        %v1746 = vpow.pop %v1745
        %v1747 = vsel %vm1571, %v1740, 0.0
        %v1748 = vrot.slane %v1747, 4
        %v1749 = vadd.f32 %v1747, %v1748
        %v1750 = vrot.slane %v1749, 2
        %v1751 = vadd.f32 %v1749, %v1750
        %v1752 = vrot.slane %v1751, 1
        %v1753 = vadd.f32 %v1751, %v1752
        %v1754 = vsel %vm1571, %v1742, 0.0
        %v1755 = vrot.slane %v1754, 4
        %v1756 = vadd.f32 %v1754, %v1755
        %v1757 = vrot.slane %v1756, 2
        %v1758 = vadd.f32 %v1756, %v1757
        %v1759 = vrot.slane %v1758, 1
        %v1760 = vadd.f32 %v1758, %v1759
        %v1761 = vsel %vm1571, %v1744, 0.0
        %v1762 = vrot.slane %v1761, 4
        %v1763 = vadd.f32 %v1761, %v1762
        %v1764 = vrot.slane %v1763, 2
        %v1765 = vadd.f32 %v1763, %v1764
        %v1766 = vrot.slane %v1765, 1
        %v1767 = vadd.f32 %v1765, %v1766
        %v1768 = vsel %vm1571, %v1746, 0.0
        %v1769 = vrot.slane %v1768, 4
        %v1770 = vadd.f32 %v1768, %v1769
        %v1771 = vrot.slane %v1770, 2
        %v1772 = vadd.f32 %v1770, %v1771
        %v1773 = vrot.slane %v1772, 1
        %v1774 = vadd.f32 %v1772, %v1773
        %v1775 = vrcp.pop %v1753
        %v1776 = vrcp.pop %v1760
        %v1777 = vrcp.pop %v1767
        %v1778 = vrcp.pop %v1774
        %v1779 = vmul.f32 %v1740, %v1775
        %v1780 = vmul.f32 %v1742, %v1776
        %v1781 = vmul.f32 %v1744, %v1777
        %v1782 = vmul.f32 %v1746, %v1778
        %s1783 = sld [smem:[#allocation2]]
        %v1784 = vstv %s1783
        %v1785 = vmul.f32 %v1784, %v1707
        %s1786 = sld [smem:[#allocation5]]
        %v1787 = vstv %s1786
        %v1788 = vmul.f32 %v1787, %v1779
        %s1789 = sld [smem:[#allocation2 + $0x1]]
        %v1790 = vstv %s1789
        %v1791 = vmul.f32 %v1790, %v1708
        %v1792 = vadd.f32 %v1785, %v1791
        %s1793 = sld [smem:[#allocation5 + $0x1]]
        %v1794 = vstv %s1793
        %v1795 = vmul.f32 %v1794, %v1780
        %v1796 = vadd.f32 %v1788, %v1795
        %s1797 = sld [smem:[#allocation2 + $0x2]]
        %v1798 = vstv %s1797
        %v1799 = vmul.f32 %v1798, %v1709
        %v1800 = vadd.f32 %v1792, %v1799
        %s1801 = sld [smem:[#allocation5 + $0x2]]
        %v1802 = vstv %s1801
        %v1803 = vmul.f32 %v1802, %v1781
        %v1804 = vadd.f32 %v1796, %v1803
        %s1805 = sld [smem:[#allocation2 + $0x3]]
        %v1806 = vstv %s1805
        %v1807 = vmul.f32 %v1806, %v1710
        %v1808 = vadd.f32 %v1800, %v1807
        %s1809 = sld [smem:[#allocation5 + $0x3]]
        %v1810 = vstv %s1809
        %v1811 = vmul.f32 %v1810, %v1782
        %v1812 = vadd.f32 %v1804, %v1811
        %s1813 = sld [smem:[#allocation2 + $0x80]]
        %v1814 = vstv %s1813
        %v1815 = vmul.f32 %v1814, %v1707
        %s1816 = sld [smem:[#allocation5 + $0x80]]
        %v1817 = vstv %s1816
        %v1818 = vmul.f32 %v1817, %v1779
        %s1819 = sld [smem:[#allocation2 + $0x81]]
        %v1820 = vstv %s1819
        %v1821 = vmul.f32 %v1820, %v1708
        %v1822 = vadd.f32 %v1815, %v1821
        %s1823 = sld [smem:[#allocation5 + $0x81]]
        %v1824 = vstv %s1823
        %v1825 = vmul.f32 %v1824, %v1780
        %v1826 = vadd.f32 %v1818, %v1825
        %s1827 = sld [smem:[#allocation2 + $0x82]]
        %v1828 = vstv %s1827
        %v1829 = vmul.f32 %v1828, %v1709
        %v1830 = vadd.f32 %v1822, %v1829
        %s1831 = sld [smem:[#allocation5 + $0x82]]
        %v1832 = vstv %s1831
        %v1833 = vmul.f32 %v1832, %v1781
        %v1834 = vadd.f32 %v1826, %v1833
        %s1835 = sld [smem:[#allocation2 + $0x83]]
        %v1836 = vstv %s1835
        %v1837 = vmul.f32 %v1836, %v1710
        %v1838 = vadd.f32 %v1830, %v1837
        %s1839 = sld [smem:[#allocation5 + $0x83]]
        %v1840 = vstv %s1839
        %v1841 = vmul.f32 %v1840, %v1782
        %v1842 = vadd.f32 %v1834, %v1841
        %s1843 = sld [smem:[#allocation2 + $0x100]]
        %v1844 = vstv %s1843
        %v1845 = vmul.f32 %v1844, %v1707
        %s1846 = sld [smem:[#allocation5 + $0x100]]
        %v1847 = vstv %s1846
        %v1848 = vmul.f32 %v1847, %v1779
        %s1849 = sld [smem:[#allocation2 + $0x101]]
        %v1850 = vstv %s1849
        %v1851 = vmul.f32 %v1850, %v1708
        %v1852 = vadd.f32 %v1845, %v1851
        %s1853 = sld [smem:[#allocation5 + $0x101]]
        %v1854 = vstv %s1853
        %v1855 = vmul.f32 %v1854, %v1780
        %v1856 = vadd.f32 %v1848, %v1855
        %s1857 = sld [smem:[#allocation2 + $0x102]]
        %v1858 = vstv %s1857
        %v1859 = vmul.f32 %v1858, %v1709
        %v1860 = vadd.f32 %v1852, %v1859
        %s1861 = sld [smem:[#allocation5 + $0x102]]
        %v1862 = vstv %s1861
        %v1863 = vmul.f32 %v1862, %v1781
        %v1864 = vadd.f32 %v1856, %v1863
        %s1865 = sld [smem:[#allocation2 + $0x103]]
        %v1866 = vstv %s1865
        %v1867 = vmul.f32 %v1866, %v1710
        %v1868 = vadd.f32 %v1860, %v1867
        %s1869 = sld [smem:[#allocation5 + $0x103]]
        %v1870 = vstv %s1869
        %v1871 = vmul.f32 %v1870, %v1782
        %v1872 = vadd.f32 %v1864, %v1871
        %s1873 = sld [smem:[#allocation2 + $0x180]]
        %v1874 = vstv %s1873
        %v1875 = vmul.f32 %v1874, %v1707
        %s1876 = sld [smem:[#allocation5 + $0x180]]
        %v1877 = vstv %s1876
        %v1878 = vmul.f32 %v1877, %v1779
        %s1879 = sld [smem:[#allocation2 + $0x181]]
        %v1880 = vstv %s1879
        %v1881 = vmul.f32 %v1880, %v1708
        %v1882 = vadd.f32 %v1875, %v1881
        %s1883 = sld [smem:[#allocation5 + $0x181]]
        %v1884 = vstv %s1883
        %v1885 = vmul.f32 %v1884, %v1780
        %v1886 = vadd.f32 %v1878, %v1885
        %s1887 = sld [smem:[#allocation2 + $0x182]]
        %v1888 = vstv %s1887
        %v1889 = vmul.f32 %v1888, %v1709
        %v1890 = vadd.f32 %v1882, %v1889
        %s1891 = sld [smem:[#allocation5 + $0x182]]
        %v1892 = vstv %s1891
        %v1893 = vmul.f32 %v1892, %v1781
        %v1894 = vadd.f32 %v1886, %v1893
        %s1895 = sld [smem:[#allocation2 + $0x183]]
        %v1896 = vstv %s1895
        %v1897 = vmul.f32 %v1896, %v1710
        %v1898 = vadd.f32 %v1890, %v1897
        %s1899 = sld [smem:[#allocation5 + $0x183]]
        %v1900 = vstv %s1899
        %v1901 = vmul.f32 %v1900, %v1782
        %v1902 = vadd.f32 %v1894, %v1901
        %v1903 = vpack.c.bf16 %v1808, %v1808
        %v1904 = vpack.c.bf16 %v1838, %v1838
        %v1905 = vpack.c.bf16 %v1868, %v1868
        %v1906 = vpack.c.bf16 %v1898, %v1898
        %v1907 = vpack.c.bf16 %v1812, %v1812
        %v1908 = vpack.c.bf16 %v1842, %v1842
        %v1909 = vpack.c.bf16 %v1872, %v1872
        %v1910 = vpack.c.bf16 %v1902, %v1902
        %v1913 = vunpack.c.l.b16 %v1558
        %v1914 = vunpack.c.l.b16 %v1559
        %v1915 = vpack.c.b16 %v1914, %v1913
        %v1918 = vsel %vm1571, %v1903, 0
        %1920 = vmatpush.bf16.msra.mxu0 0
        %1921 = vmatpush.bf16.msra.mxu0 0
        %1922 = vmatpush.bf16.msra.mxu0 0
        %1923 = vmatpush.bf16.msra.mxu0 0
        %1924 = vmatpush.bf16.msra.mxu0 0
        %1925 = vmatpush.bf16.msra.mxu0 0
        %1926 = vmatpush.bf16.msra.mxu0 0
        %1927 = vmatpush.bf16.msra.mxu0 %v1915
        %1928 = vmatmul.bf16.gmra.mxu0 %v1918
        %v1929 = vpop.f32.mrf.mxu0
        %v1930 = vadd.f32 0.0, %v1929
        %v1931 = vpop.f32.mrf.mxu0
        %1932 = vdwg.mxu0
        %v1935 = vunpack.c.l.b16 %v1560
        %v1936 = vunpack.c.l.b16 %v1561
        %v1937 = vpack.c.b16 %v1936, %v1935
        %v1940 = vsel %vm1571, %v1904, 0
        %1942 = vmatpush.bf16.msra.mxu0 0
        %1943 = vmatpush.bf16.msra.mxu0 0
        %1944 = vmatpush.bf16.msra.mxu0 0
        %1945 = vmatpush.bf16.msra.mxu0 0
        %1946 = vmatpush.bf16.msra.mxu0 0
        %1947 = vmatpush.bf16.msra.mxu0 0
        %1948 = vmatpush.bf16.msra.mxu0 0
        %1949 = vmatpush.bf16.msra.mxu0 %v1937
        %1950 = vmatmul.bf16.gmra.mxu0 %v1940
        %v1951 = vpop.f32.mrf.mxu0
        %v1952 = vadd.f32 0.0, %v1951
        %v1953 = vpop.f32.mrf.mxu0
        %1954 = vdwg.mxu0
        %v1957 = vunpack.c.l.b16 %v1562
        %v1958 = vunpack.c.l.b16 %v1563
        %v1959 = vpack.c.b16 %v1958, %v1957
        %v1962 = vsel %vm1571, %v1905, 0
        %1964 = vmatpush.bf16.msra.mxu0 0
        %1965 = vmatpush.bf16.msra.mxu0 0
        %1966 = vmatpush.bf16.msra.mxu0 0
        %1967 = vmatpush.bf16.msra.mxu0 0
        %1968 = vmatpush.bf16.msra.mxu0 0
        %1969 = vmatpush.bf16.msra.mxu0 0
        %1970 = vmatpush.bf16.msra.mxu0 0
        %1971 = vmatpush.bf16.msra.mxu0 %v1959
        %1972 = vmatmul.bf16.gmra.mxu0 %v1962
        %v1973 = vpop.f32.mrf.mxu0
        %v1974 = vadd.f32 0.0, %v1973
        %v1975 = vpop.f32.mrf.mxu0
        %1976 = vdwg.mxu0
        %v1979 = vunpack.c.l.b16 %v1564
        %v1980 = vunpack.c.l.b16 %v1565
        %v1981 = vpack.c.b16 %v1980, %v1979
        %v1984 = vsel %vm1571, %v1906, 0
        %1986 = vmatpush.bf16.msra.mxu0 0
        %1987 = vmatpush.bf16.msra.mxu0 0
        %1988 = vmatpush.bf16.msra.mxu0 0
        %1989 = vmatpush.bf16.msra.mxu0 0
        %1990 = vmatpush.bf16.msra.mxu0 0
        %1991 = vmatpush.bf16.msra.mxu0 0
        %1992 = vmatpush.bf16.msra.mxu0 0
        %1993 = vmatpush.bf16.msra.mxu0 %v1981
        %1994 = vmatmul.bf16.gmra.mxu0 %v1984
        %v1995 = vpop.f32.mrf.mxu0
        %v1996 = vadd.f32 0.0, %v1995
        %v1997 = vpop.f32.mrf.mxu0
        %1998 = vdwg.mxu0
        %1999 = vxpose.xlu0.c.b16.start [1/8] %v1907, 128
        %2000 = vxpose.xlu0.c.b16.cont [2/8] 0, 128
        %2001 = vxpose.xlu0.c.b16.cont [3/8] 0, 128
        %2002 = vxpose.xlu0.c.b16.cont [4/8] 0, 128
        %2003 = vxpose.xlu0.c.b16.cont [5/8] 0, 128
        %2004 = vxpose.xlu0.c.b16.cont [6/8] 0, 128
        %2005 = vxpose.xlu0.c.b16.cont [7/8] 0, 128
        %2006 = vxpose.xlu0.c.b16.end [8/8] 0, 128
        %v2007 = vpop.trf.xlu0
        %v2008 = vpop.trf.xlu0
        %v2009 = vpop.trf.xlu0
        %v2010 = vpop.trf.xlu0
        %v2011 = vpop.trf.xlu0
        %v2012 = vpop.trf.xlu0
        %v2013 = vpop.trf.xlu0
        %v2014 = vpop.trf.xlu0
        %vm2015 = vcmask 64512
        %v2017 = vsel %vm2015, %v2007, 0
        %vm2019 = vcmask 1043456
        %v2021 = vsel %vm2019, %v1546, 0
        %2023 = vmatpush.bf16.msra.mxu0 0
        %2024 = vmatpush.bf16.msra.mxu0 0
        %2025 = vmatpush.bf16.msra.mxu0 0
        %2026 = vmatpush.bf16.msra.mxu0 0
        %2027 = vmatpush.bf16.msra.mxu0 0
        %2028 = vmatpush.bf16.msra.mxu0 0
        %2029 = vmatpush.bf16.msra.mxu0 0
        %2030 = vmatpush.bf16.msra.mxu0 %v2021
        %2031 = vmatmul.bf16.gmra.mxu0 %v2017
        %v2032 = vpop.f32.mrf.mxu0
        %v2033 = vadd.f32 0.0, %v2032
        %v2034 = vpop.f32.mrf.mxu0
        %v2035 = vadd.f32 0.0, %v2034
        %2036 = vdwg.mxu0
        %2037 = vxpose.xlu0.c.b16.start [1/8] %v1908, 128
        %2038 = vxpose.xlu0.c.b16.cont [2/8] 0, 128
        %2039 = vxpose.xlu0.c.b16.cont [3/8] 0, 128
        %2040 = vxpose.xlu0.c.b16.cont [4/8] 0, 128
        %2041 = vxpose.xlu0.c.b16.cont [5/8] 0, 128
        %2042 = vxpose.xlu0.c.b16.cont [6/8] 0, 128
        %2043 = vxpose.xlu0.c.b16.cont [7/8] 0, 128
        %2044 = vxpose.xlu0.c.b16.end [8/8] 0, 128
        %v2045 = vpop.trf.xlu0
        %v2046 = vpop.trf.xlu0
        %v2047 = vpop.trf.xlu0
        %v2048 = vpop.trf.xlu0
        %v2049 = vpop.trf.xlu0
        %v2050 = vpop.trf.xlu0
        %v2051 = vpop.trf.xlu0
        %v2052 = vpop.trf.xlu0
        %v2054 = vsel %vm2015, %v2045, 0
        %v2057 = vsel %vm2019, %v1547, 0
        %2059 = vmatpush.bf16.msra.mxu0 0
        %2060 = vmatpush.bf16.msra.mxu0 0
        %2061 = vmatpush.bf16.msra.mxu0 0
        %2062 = vmatpush.bf16.msra.mxu0 0
        %2063 = vmatpush.bf16.msra.mxu0 0
        %2064 = vmatpush.bf16.msra.mxu0 0
        %2065 = vmatpush.bf16.msra.mxu0 0
        %2066 = vmatpush.bf16.msra.mxu0 %v2057
        %2067 = vmatmul.bf16.gmra.mxu0 %v2054
        %v2068 = vpop.f32.mrf.mxu0
        %v2069 = vadd.f32 0.0, %v2068
        %v2070 = vpop.f32.mrf.mxu0
        %v2071 = vadd.f32 0.0, %v2070
        %2072 = vdwg.mxu0
        %2073 = vxpose.xlu0.c.b16.start [1/8] %v1909, 128
        %2074 = vxpose.xlu0.c.b16.cont [2/8] 0, 128
        %2075 = vxpose.xlu0.c.b16.cont [3/8] 0, 128
        %2076 = vxpose.xlu0.c.b16.cont [4/8] 0, 128
        %2077 = vxpose.xlu0.c.b16.cont [5/8] 0, 128
        %2078 = vxpose.xlu0.c.b16.cont [6/8] 0, 128
        %2079 = vxpose.xlu0.c.b16.cont [7/8] 0, 128
        %2080 = vxpose.xlu0.c.b16.end [8/8] 0, 128
        %v2081 = vpop.trf.xlu0
        %v2082 = vpop.trf.xlu0
        %v2083 = vpop.trf.xlu0
        %v2084 = vpop.trf.xlu0
        %v2085 = vpop.trf.xlu0
        %v2086 = vpop.trf.xlu0
        %v2087 = vpop.trf.xlu0
        %v2088 = vpop.trf.xlu0
        %v2090 = vsel %vm2015, %v2081, 0
        %v2093 = vsel %vm2019, %v1548, 0
        %2095 = vmatpush.bf16.msra.mxu0 0
        %2096 = vmatpush.bf16.msra.mxu0 0
        %2097 = vmatpush.bf16.msra.mxu0 0
        %2098 = vmatpush.bf16.msra.mxu0 0
        %2099 = vmatpush.bf16.msra.mxu0 0
        %2100 = vmatpush.bf16.msra.mxu0 0
        %2101 = vmatpush.bf16.msra.mxu0 0
        %2102 = vmatpush.bf16.msra.mxu0 %v2093
        %2103 = vmatmul.bf16.gmra.mxu0 %v2090
        %v2104 = vpop.f32.mrf.mxu0
        %v2105 = vadd.f32 0.0, %v2104
        %v2106 = vpop.f32.mrf.mxu0
        %v2107 = vadd.f32 0.0, %v2106
        %2108 = vdwg.mxu0
        %2109 = vxpose.xlu0.c.b16.start [1/8] %v1910, 128
        %2110 = vxpose.xlu0.c.b16.cont [2/8] 0, 128
        %2111 = vxpose.xlu0.c.b16.cont [3/8] 0, 128
        %2112 = vxpose.xlu0.c.b16.cont [4/8] 0, 128
        %2113 = vxpose.xlu0.c.b16.cont [5/8] 0, 128
        %2114 = vxpose.xlu0.c.b16.cont [6/8] 0, 128
        %2115 = vxpose.xlu0.c.b16.cont [7/8] 0, 128
        %2116 = vxpose.xlu0.c.b16.end [8/8] 0, 128
        %v2117 = vpop.trf.xlu0
        %v2118 = vpop.trf.xlu0
        %v2119 = vpop.trf.xlu0
        %v2120 = vpop.trf.xlu0
        %v2121 = vpop.trf.xlu0
        %v2122 = vpop.trf.xlu0
        %v2123 = vpop.trf.xlu0
        %v2124 = vpop.trf.xlu0
        %v2126 = vsel %vm2015, %v2117, 0
        %v2129 = vsel %vm2019, %v1549, 0
        %2131 = vmatpush.bf16.msra.mxu0 0
        %2132 = vmatpush.bf16.msra.mxu0 0
        %2133 = vmatpush.bf16.msra.mxu0 0
        %2134 = vmatpush.bf16.msra.mxu0 0
        %2135 = vmatpush.bf16.msra.mxu0 0
        %2136 = vmatpush.bf16.msra.mxu0 0
        %2137 = vmatpush.bf16.msra.mxu0 0
        %2138 = vmatpush.bf16.msra.mxu0 %v2129
        %2139 = vmatmul.bf16.gmra.mxu0 %v2126
        %v2140 = vpop.f32.mrf.mxu0
        %v2141 = vadd.f32 0.0, %v2140
        %v2142 = vpop.f32.mrf.mxu0
        %v2143 = vadd.f32 0.0, %v2142
        %2144 = vdwg.mxu0
        %v2145 = vpack.c.bf16 %v1930, %v1930
        %v2146 = vpack.c.bf16 %v1952, %v1952
        %v2147 = vpack.c.bf16 %v1974, %v1974
        %v2148 = vpack.c.bf16 %v1996, %v1996
        %v2149 = vld [vmem:[%s21] sm:$0xf]
        %v2150 = vld [vmem:[%s21 + $0x4] sm:$0xf]
        %v2151 = vld [vmem:[%s21 + $0x8] sm:$0xf]
        %v2152 = vld [vmem:[%s21 + $0xc] sm:$0xf]
        %v2153 = vld [vmem:[%s21 + $0x10] sm:$0xf]
        %v2154 = vld [vmem:[%s21 + $0x14] sm:$0xf]
        %v2155 = vld [vmem:[%s21 + $0x18] sm:$0xf]
        %v2156 = vld [vmem:[%s21 + $0x1c] sm:$0xf]
        %v2159 = vunpack.c.l.b16 %v2149
        %v2160 = vunpack.c.l.b16 %v2150
        %v2161 = vpack.c.b16 %v2160, %v2159
        %v2164 = vsel %vm1571, %v2145, 0
        %2166 = vmatpush.bf16.msra.mxu0 0
        %2167 = vmatpush.bf16.msra.mxu0 0
        %2168 = vmatpush.bf16.msra.mxu0 0
        %2169 = vmatpush.bf16.msra.mxu0 0
        %2170 = vmatpush.bf16.msra.mxu0 0
        %2171 = vmatpush.bf16.msra.mxu0 0
        %2172 = vmatpush.bf16.msra.mxu0 0
        %2173 = vmatpush.bf16.msra.mxu0 %v2161
        %2174 = vmatmul.bf16.gmra.mxu0 %v2164
        %v2175 = vpop.f32.mrf.mxu0
        %v2176 = vadd.f32 0.0, %v2175
        %v2177 = vpop.f32.mrf.mxu0
        %2178 = vdwg.mxu0
        %v2181 = vunpack.c.l.b16 %v2151
        %v2182 = vunpack.c.l.b16 %v2152
        %v2183 = vpack.c.b16 %v2182, %v2181
        %v2186 = vsel %vm1571, %v2146, 0
        %2188 = vmatpush.bf16.msra.mxu0 0
        %2189 = vmatpush.bf16.msra.mxu0 0
        %2190 = vmatpush.bf16.msra.mxu0 0
        %2191 = vmatpush.bf16.msra.mxu0 0
        %2192 = vmatpush.bf16.msra.mxu0 0
        %2193 = vmatpush.bf16.msra.mxu0 0
        %2194 = vmatpush.bf16.msra.mxu0 0
        %2195 = vmatpush.bf16.msra.mxu0 %v2183
        %2196 = vmatmul.bf16.gmra.mxu0 %v2186
        %v2197 = vpop.f32.mrf.mxu0
        %v2198 = vadd.f32 0.0, %v2197
        %v2199 = vpop.f32.mrf.mxu0
        %2200 = vdwg.mxu0
        %v2203 = vunpack.c.l.b16 %v2153
        %v2204 = vunpack.c.l.b16 %v2154
        %v2205 = vpack.c.b16 %v2204, %v2203
        %v2208 = vsel %vm1571, %v2147, 0
        %2210 = vmatpush.bf16.msra.mxu0 0
        %2211 = vmatpush.bf16.msra.mxu0 0
        %2212 = vmatpush.bf16.msra.mxu0 0
        %2213 = vmatpush.bf16.msra.mxu0 0
        %2214 = vmatpush.bf16.msra.mxu0 0
        %2215 = vmatpush.bf16.msra.mxu0 0
        %2216 = vmatpush.bf16.msra.mxu0 0
        %2217 = vmatpush.bf16.msra.mxu0 %v2205
        %2218 = vmatmul.bf16.gmra.mxu0 %v2208
        %v2219 = vpop.f32.mrf.mxu0
        %v2220 = vadd.f32 0.0, %v2219
        %v2221 = vpop.f32.mrf.mxu0
        %2222 = vdwg.mxu0
        %v2225 = vunpack.c.l.b16 %v2155
        %v2226 = vunpack.c.l.b16 %v2156
        %v2227 = vpack.c.b16 %v2226, %v2225
        %v2230 = vsel %vm1571, %v2148, 0
        %2232 = vmatpush.bf16.msra.mxu0 0
        %2233 = vmatpush.bf16.msra.mxu0 0
        %2234 = vmatpush.bf16.msra.mxu0 0
        %2235 = vmatpush.bf16.msra.mxu0 0
        %2236 = vmatpush.bf16.msra.mxu0 0
        %2237 = vmatpush.bf16.msra.mxu0 0
        %2238 = vmatpush.bf16.msra.mxu0 0
        %2239 = vmatpush.bf16.msra.mxu0 %v2227
        %2240 = vmatmul.bf16.gmra.mxu0 %v2230
        %v2241 = vpop.f32.mrf.mxu0
        %v2242 = vadd.f32 0.0, %v2241
        %v2243 = vpop.f32.mrf.mxu0
        %2244 = vdwg.mxu0
        %v2245 = vpack.c.bf16 %v2033, %v2033
        %v2246 = vpack.c.bf16 %v2035, %v2035
        %v2247 = vpack.c.bf16 %v2069, %v2069
        %v2248 = vpack.c.bf16 %v2071, %v2071
        %v2249 = vpack.c.bf16 %v2105, %v2105
        %v2250 = vpack.c.bf16 %v2107, %v2107
        %v2251 = vpack.c.bf16 %v2141, %v2141
        %v2252 = vpack.c.bf16 %v2143, %v2143
        %v2253 = vld [vmem:[%s25] sm:$0xf]
        %v2254 = vld [vmem:[%s25 + $0x4] sm:$0xf]
        %v2255 = vld [vmem:[%s25 + $0x8] sm:$0xf]
        %v2256 = vld [vmem:[%s25 + $0xc] sm:$0xf]
        %v2257 = vld [vmem:[%s25 + $0x10] sm:$0xf]
        %v2258 = vld [vmem:[%s25 + $0x14] sm:$0xf]
        %v2259 = vld [vmem:[%s25 + $0x18] sm:$0xf]
        %v2260 = vld [vmem:[%s25 + $0x1c] sm:$0xf]
        %v2263 = vunpack.c.l.b16 %v2245
        %v2264 = vunpack.c.l.b16 %v2246
        %v2265 = vpack.c.b16 %v2264, %v2263
        %v2268 = vunpack.c.l.b16 %v2253
        %v2269 = vunpack.c.l.b16 %v2254
        %v2270 = vpack.c.b16 %v2269, %v2268
        %v2273 = vsel %vm1571, %v2265, 0
        %2275 = vmatpush.bf16.msra.mxu0 0
        %2276 = vmatpush.bf16.msra.mxu0 0
        %2277 = vmatpush.bf16.msra.mxu0 0
        %2278 = vmatpush.bf16.msra.mxu0 0
        %2279 = vmatpush.bf16.msra.mxu0 0
        %2280 = vmatpush.bf16.msra.mxu0 0
        %2281 = vmatpush.bf16.msra.mxu0 0
        %2282 = vmatpush.bf16.msra.mxu0 %v2270
        %2283 = vmatmul.bf16.gmra.mxu0 %v2273
        %v2284 = vpop.f32.mrf.mxu0
        %v2285 = vadd.f32 0.0, %v2284
        %v2286 = vpop.f32.mrf.mxu0
        %v2287 = vadd.f32 0.0, %v2286
        %2288 = vdwg.mxu0
        %v2291 = vunpack.c.l.b16 %v2247
        %v2292 = vunpack.c.l.b16 %v2248
        %v2293 = vpack.c.b16 %v2292, %v2291
        %v2296 = vunpack.c.l.b16 %v2255
        %v2297 = vunpack.c.l.b16 %v2256
        %v2298 = vpack.c.b16 %v2297, %v2296
        %v2301 = vsel %vm1571, %v2293, 0
        %2303 = vmatpush.bf16.msra.mxu0 0
        %2304 = vmatpush.bf16.msra.mxu0 0
        %2305 = vmatpush.bf16.msra.mxu0 0
        %2306 = vmatpush.bf16.msra.mxu0 0
        %2307 = vmatpush.bf16.msra.mxu0 0
        %2308 = vmatpush.bf16.msra.mxu0 0
        %2309 = vmatpush.bf16.msra.mxu0 0
        %2310 = vmatpush.bf16.msra.mxu0 %v2298
        %2311 = vmatmul.bf16.gmra.mxu0 %v2301
        %v2312 = vpop.f32.mrf.mxu0
        %v2313 = vadd.f32 0.0, %v2312
        %v2314 = vpop.f32.mrf.mxu0
        %v2315 = vadd.f32 0.0, %v2314
        %2316 = vdwg.mxu0
        %v2319 = vunpack.c.l.b16 %v2249
        %v2320 = vunpack.c.l.b16 %v2250
        %v2321 = vpack.c.b16 %v2320, %v2319
        %v2324 = vunpack.c.l.b16 %v2257
        %v2325 = vunpack.c.l.b16 %v2258
        %v2326 = vpack.c.b16 %v2325, %v2324
        %v2329 = vsel %vm1571, %v2321, 0
        %2331 = vmatpush.bf16.msra.mxu0 0
        %2332 = vmatpush.bf16.msra.mxu0 0
        %2333 = vmatpush.bf16.msra.mxu0 0
        %2334 = vmatpush.bf16.msra.mxu0 0
        %2335 = vmatpush.bf16.msra.mxu0 0
        %2336 = vmatpush.bf16.msra.mxu0 0
        %2337 = vmatpush.bf16.msra.mxu0 0
        %2338 = vmatpush.bf16.msra.mxu0 %v2326
        %2339 = vmatmul.bf16.gmra.mxu0 %v2329
        %v2340 = vpop.f32.mrf.mxu0
        %v2341 = vadd.f32 0.0, %v2340
        %v2342 = vpop.f32.mrf.mxu0
        %v2343 = vadd.f32 0.0, %v2342
        %2344 = vdwg.mxu0
        %v2347 = vunpack.c.l.b16 %v2251
        %v2348 = vunpack.c.l.b16 %v2252
        %v2349 = vpack.c.b16 %v2348, %v2347
        %v2352 = vunpack.c.l.b16 %v2259
        %v2353 = vunpack.c.l.b16 %v2260
        %v2354 = vpack.c.b16 %v2353, %v2352
        %v2357 = vsel %vm1571, %v2349, 0
        %2359 = vmatpush.bf16.msra.mxu0 0
        %2360 = vmatpush.bf16.msra.mxu0 0
        %2361 = vmatpush.bf16.msra.mxu0 0
        %2362 = vmatpush.bf16.msra.mxu0 0
        %2363 = vmatpush.bf16.msra.mxu0 0
        %2364 = vmatpush.bf16.msra.mxu0 0
        %2365 = vmatpush.bf16.msra.mxu0 0
        %2366 = vmatpush.bf16.msra.mxu0 %v2354
        %2367 = vmatmul.bf16.gmra.mxu0 %v2357
        %v2368 = vpop.f32.mrf.mxu0
        %v2369 = vadd.f32 0.0, %v2368
        %v2370 = vpop.f32.mrf.mxu0
        %v2371 = vadd.f32 0.0, %v2370
        %2372 = vdwg.mxu0
        %v2373 = vsel %vm962, %v2176, 0.0
        %v2374 = vsel %vm962, %v2198, 0.0
        %v2375 = vadd.f32 %v2373, %v2374
        %v2376 = vsel %vm962, %v2220, 0.0
        %v2377 = vadd.f32 %v2375, %v2376
        %v2378 = vsel %vm962, %v2242, 0.0
        %v2379 = vadd.f32 %v2377, %v2378
        %v2380 = vld [vmem:[%s23] sm:$0x1]
        %v2382 = vperm.slane %v2380, 0
        %v2384 = vadd.f32 %v2379, %v2382
        %v2385 = vsel %vm962, %v2285, 0.0
        %v2386 = vsel %vm962, %v2313, 0.0
        %v2387 = vadd.f32 %v2385, %v2386
        %v2388 = vsel %vm962, %v2341, 0.0
        %v2389 = vadd.f32 %v2387, %v2388
        %v2390 = vsel %vm962, %v2369, 0.0
        %v2391 = vadd.f32 %v2389, %v2390
        %v2392 = vsel %vm962, %v2287, 0.0
        %v2393 = vsel %vm962, %v2315, 0.0
        %v2394 = vadd.f32 %v2392, %v2393
        %v2395 = vsel %vm962, %v2343, 0.0
        %v2396 = vadd.f32 %v2394, %v2395
        %v2397 = vsel %vm962, %v2371, 0.0
        %v2398 = vadd.f32 %v2396, %v2397
        %v2399 = vld [vmem:[%s27] sm:$0x1]
        %v2401 = vperm.slane %v2399, 0
        %v2403 = vadd.f32 %v2391, %v2401
        %v2404 = vadd.f32 %v2398, %v2401
        %v2405 = vadd.f32 %v957, %v2384
        %v2406 = vadd.f32 %v958, %v2403
        %v2407 = vadd.f32 %v959, %v2404
        %v2408 = vld [vmem:[%s33] sm:$0x1]
        %v2409 = vld [vmem:[%s35] sm:$0x1]
        %v2410 = vld [vmem:[%s37] sm:$0xff]
        %v2411 = vld [vmem:[%s37 + $0x8] sm:$0xff]
        %v2412 = vld [vmem:[%s37 + $0x10] sm:$0xff]
        %v2413 = vld [vmem:[%s37 + $0x18] sm:$0xff]
        %v2414 = vld [vmem:[%s39] sm:$0x3]
        %v2415 = vld [vmem:[%s41] sm:$0xf]
        %v2416 = vld [vmem:[%s41 + $0x4] sm:$0xf]
        %v2417 = vld [vmem:[%s41 + $0x8] sm:$0xf]
        %v2418 = vld [vmem:[%s41 + $0xc] sm:$0xf]
        %v2419 = vld [vmem:[%s41 + $0x10] sm:$0xf]
        %v2420 = vld [vmem:[%s41 + $0x14] sm:$0xf]
        %v2421 = vld [vmem:[%s41 + $0x18] sm:$0xf]
        %v2422 = vld [vmem:[%s41 + $0x1c] sm:$0xf]
        %v2423 = vld [vmem:[%s41 + $0x20] sm:$0xf]
        %v2424 = vld [vmem:[%s41 + $0x24] sm:$0xf]
        %v2425 = vld [vmem:[%s41 + $0x28] sm:$0xf]
        %v2426 = vld [vmem:[%s41 + $0x2c] sm:$0xf]
        %v2427 = vld [vmem:[%s41 + $0x30] sm:$0xf]
        %v2428 = vld [vmem:[%s41 + $0x34] sm:$0xf]
        %v2429 = vld [vmem:[%s41 + $0x38] sm:$0xf]
        %v2430 = vld [vmem:[%s41 + $0x3c] sm:$0xf]
        %v2431 = vld [vmem:[%s41 + $0x40] sm:$0xf]
        %v2432 = vld [vmem:[%s41 + $0x44] sm:$0xf]
        %v2433 = vld [vmem:[%s41 + $0x48] sm:$0xf]
        %v2434 = vld [vmem:[%s41 + $0x4c] sm:$0xf]
        %v2435 = vld [vmem:[%s41 + $0x50] sm:$0xf]
        %v2436 = vld [vmem:[%s41 + $0x54] sm:$0xf]
        %v2437 = vld [vmem:[%s41 + $0x58] sm:$0xf]
        %v2438 = vld [vmem:[%s41 + $0x5c] sm:$0xf]
        %v2439 = vld [vmem:[%s41 + $0x60] sm:$0xf]
        %v2440 = vld [vmem:[%s41 + $0x64] sm:$0xf]
        %v2441 = vld [vmem:[%s41 + $0x68] sm:$0xf]
        %v2442 = vld [vmem:[%s41 + $0x6c] sm:$0xf]
        %v2443 = vld [vmem:[%s41 + $0x70] sm:$0xf]
        %v2444 = vld [vmem:[%s41 + $0x74] sm:$0xf]
        %v2445 = vld [vmem:[%s41 + $0x78] sm:$0xf]
        %v2446 = vld [vmem:[%s41 + $0x7c] sm:$0xf]
        %v2447 = vld [vmem:[%s43] sm:$0x1]
        %v2448 = vsel %vm962, %v2405, 0.0
        %2449 = vadd.xlane.f32.xlu0 %v2448
        %v2450 = vpop.xlane.xlu0 %2449
        %v2451 = vmul.f32 %v2450, %v972
        %v2452 = vsub.f32 %v2405, %v2451
        %v2453 = vmul.f32 %v2452, %v2452
        %v2454 = vsel %vm962, %v2453, 0.0
        %2455 = vadd.xlane.f32.xlu0 %v2454
        %v2456 = vpop.xlane.xlu0 %2455
        %v2457 = vmul.f32 %v2456, %v972
        %v2458 = vadd.f32 %v2457, 1e-05
        %v2459 = vrsqrt.pop %v2458
        %v2460 = vmul.f32 %v2459, %v2458
        %v2461 = vmul.f32 %v2460, %v2459
        %v2462 = vmul.f32 0.5, %v2461
        %v2463 = vsub.f32 1.5, %v2462
        %v2464 = vmul.f32 %v2459, %v2463
        %vm2465 = vweird.f32 %v2458
        %vm2466 = vweird.f32 %v2459
        %vm2467 = vmor %vm2465, %vm2466
        %v2468 = vsel %vm2467, %v2459, %v2464
        %v2469 = vmul.f32 %v2452, %v2468
        %v2471 = vperm.slane %v2408, 0
        %v2473 = vmul.f32 %v2469, %v2471
        %v2475 = vperm.slane %v2409, 0
        %v2477 = vadd.f32 %v2473, %v2475
        %v2478 = vpack.c.bf16 %v2477, %v2477
        %v2480 = vperm.slane %v2414, 0
        %v2481 = vperm.slane %v2414, 1
        %v2488 = vunpack.c.l.b16 %v2410
        %v2489 = vunpack.c.h.b16 %v2410
        %v2490 = vunpack.c.l.b16 %v2411
        %v2491 = vunpack.c.h.b16 %v2411
        %v2492 = vunpack.c.l.b16 %v2412
        %v2493 = vunpack.c.h.b16 %v2412
        %v2494 = vunpack.c.l.b16 %v2413
        %v2495 = vunpack.c.h.b16 %v2413
        %v2496 = vpack.c.b16 %v2490, %v2488
        %v2497 = vpack.c.b16 %v2491, %v2489
        %v2498 = vpack.c.b16 %v2494, %v2492
        %v2499 = vpack.c.b16 %v2495, %v2493
        %v2505 = vsel %vm962, %v2478, 0
        %2507 = vmatpush.bf16.msra.mxu0 0
        %2508 = vmatpush.bf16.msra.mxu0 0
        %2509 = vmatpush.bf16.msra.mxu0 0
        %2510 = vmatpush.bf16.msra.mxu0 0
        %2511 = vmatpush.bf16.msra.mxu0 0
        %2512 = vmatpush.bf16.msra.mxu0 0
        %2513 = vmatpush.bf16.msra.mxu0 %v2498
        %2514 = vmatpush.bf16.msra.mxu0 %v2496
        %2515 = vmatmul.bf16.gmra.mxu0 %v2505
        %v2516 = vpop.f32.mrf.mxu0
        %v2517 = vadd.f32 %v2480, %v2516
        %v2518 = vpop.f32.mrf.mxu0
        %2519 = vdwg.mxu0
        %2520 = vmatpush.bf16.msra.mxu0 0
        %2521 = vmatpush.bf16.msra.mxu0 0
        %2522 = vmatpush.bf16.msra.mxu0 0
        %2523 = vmatpush.bf16.msra.mxu0 0
        %2524 = vmatpush.bf16.msra.mxu0 0
        %2525 = vmatpush.bf16.msra.mxu0 0
        %2526 = vmatpush.bf16.msra.mxu0 %v2499
        %2527 = vmatpush.bf16.msra.mxu0 %v2497
        %2528 = vmatmul.bf16.gmra.mxu0 %v2505
        %v2529 = vpop.f32.mrf.mxu0
        %v2530 = vadd.f32 %v2481, %v2529
        %v2531 = vpop.f32.mrf.mxu0
        %2532 = vdwg.mxu0
        %v2533 = vmul.f32 %v2517, %v2517
        %v2534 = vmul.f32 %v2530, %v2530
        %v2535 = vmul.f32 %v2517, %v2533
        %v2536 = vmul.f32 %v2530, %v2534
        %v2537 = vmul.f32 %v2535, 0.044715
        %v2538 = vmul.f32 %v2536, 0.044715
        %v2539 = vadd.f32 %v2517, %v2537
        %v2540 = vadd.f32 %v2530, %v2538
        %v2541 = vmul.f32 %v2539, 0.7978846
        %v2542 = vmul.f32 %v2540, 0.7978846
        %v2543 = vtanh.pop %v2541
        %v2544 = vtanh.pop %v2542
        %v2545 = vadd.f32 %v2543, 1.0
        %v2546 = vadd.f32 %v2544, 1.0
        %v2547 = vmul.f32 %v2545, 0.5
        %v2548 = vmul.f32 %v2546, 0.5
        %v2549 = vmul.f32 %v2517, %v2547
        %v2550 = vmul.f32 %v2530, %v2548
        %v2551 = vpack.c.bf16 %v2549, %v2549
        %v2552 = vpack.c.bf16 %v2550, %v2550
        %v2554 = vperm.slane %v2447, 0
        %v2588 = vunpack.c.l.b16 %v2415
        %v2589 = vunpack.c.l.b16 %v2416
        %v2590 = vunpack.c.l.b16 %v2417
        %v2591 = vunpack.c.l.b16 %v2418
        %v2592 = vunpack.c.l.b16 %v2419
        %v2593 = vunpack.c.l.b16 %v2420
        %v2594 = vunpack.c.l.b16 %v2421
        %v2595 = vunpack.c.l.b16 %v2422
        %v2596 = vunpack.c.l.b16 %v2423
        %v2597 = vunpack.c.l.b16 %v2424
        %v2598 = vunpack.c.l.b16 %v2425
        %v2599 = vunpack.c.l.b16 %v2426
        %v2600 = vunpack.c.l.b16 %v2427
        %v2601 = vunpack.c.l.b16 %v2428
        %v2602 = vunpack.c.l.b16 %v2429
        %v2603 = vunpack.c.l.b16 %v2430
        %v2604 = vunpack.c.l.b16 %v2431
        %v2605 = vunpack.c.l.b16 %v2432
        %v2606 = vunpack.c.l.b16 %v2433
        %v2607 = vunpack.c.l.b16 %v2434
        %v2608 = vunpack.c.l.b16 %v2435
        %v2609 = vunpack.c.l.b16 %v2436
        %v2610 = vunpack.c.l.b16 %v2437
        %v2611 = vunpack.c.l.b16 %v2438
        %v2612 = vunpack.c.l.b16 %v2439
        %v2613 = vunpack.c.l.b16 %v2440
        %v2614 = vunpack.c.l.b16 %v2441
        %v2615 = vunpack.c.l.b16 %v2442
        %v2616 = vunpack.c.l.b16 %v2443
        %v2617 = vunpack.c.l.b16 %v2444
        %v2618 = vunpack.c.l.b16 %v2445
        %v2619 = vunpack.c.l.b16 %v2446
        %v2620 = vpack.c.b16 %v2589, %v2588
        %v2621 = vpack.c.b16 %v2591, %v2590
        %v2622 = vpack.c.b16 %v2593, %v2592
        %v2623 = vpack.c.b16 %v2595, %v2594
        %v2624 = vpack.c.b16 %v2597, %v2596
        %v2625 = vpack.c.b16 %v2599, %v2598
        %v2626 = vpack.c.b16 %v2601, %v2600
        %v2627 = vpack.c.b16 %v2603, %v2602
        %v2628 = vpack.c.b16 %v2605, %v2604
        %v2629 = vpack.c.b16 %v2607, %v2606
        %v2630 = vpack.c.b16 %v2609, %v2608
        %v2631 = vpack.c.b16 %v2611, %v2610
        %v2632 = vpack.c.b16 %v2613, %v2612
        %v2633 = vpack.c.b16 %v2615, %v2614
        %v2634 = vpack.c.b16 %v2617, %v2616
        %v2635 = vpack.c.b16 %v2619, %v2618
        %2652 = vmatpush.bf16.msra.mxu0 %v2627
        %2653 = vmatpush.bf16.msra.mxu0 %v2626
        %2654 = vmatpush.bf16.msra.mxu0 %v2625
        %2655 = vmatpush.bf16.msra.mxu0 %v2624
        %2656 = vmatpush.bf16.msra.mxu0 %v2623
        %2657 = vmatpush.bf16.msra.mxu0 %v2622
        %2658 = vmatpush.bf16.msra.mxu0 %v2621
        %2659 = vmatpush.bf16.msra.mxu0 %v2620
        %2660 = vmatmul.bf16.gmra.mxu0 %v2551
        %v2661 = vpop.f32.mrf.mxu0
        %v2662 = vadd.f32 %v2554, %v2661
        %v2663 = vpop.f32.mrf.mxu0
        %2664 = vdwg.mxu0
        %2665 = vmatpush.bf16.msra.mxu0 %v2635
        %2666 = vmatpush.bf16.msra.mxu0 %v2634
        %2667 = vmatpush.bf16.msra.mxu0 %v2633
        %2668 = vmatpush.bf16.msra.mxu0 %v2632
        %2669 = vmatpush.bf16.msra.mxu0 %v2631
        %2670 = vmatpush.bf16.msra.mxu0 %v2630
        %2671 = vmatpush.bf16.msra.mxu0 %v2629
        %2672 = vmatpush.bf16.msra.mxu0 %v2628
        %2673 = vmatmul.bf16.gmra.mxu0 %v2552
        %v2674 = vpop.f32.mrf.mxu0
        %v2675 = vadd.f32 %v2662, %v2674
        %v2676 = vpop.f32.mrf.mxu0
        %2677 = vdwg.mxu0
        %v2678 = vadd.f32 %v2405, %v2675
        %v2679 = vld [vmem:[%s45] sm:$0x1]
        %v2680 = vld [vmem:[%s47] sm:$0x1]
        %v2681 = vld [vmem:[%s49] sm:$0xff]
        %v2682 = vld [vmem:[%s49 + $0x8] sm:$0xff]
        %v2683 = vld [vmem:[%s49 + $0x10] sm:$0xff]
        %v2684 = vld [vmem:[%s49 + $0x18] sm:$0xff]
        %v2685 = vld [vmem:[%s51] sm:$0x3]
        %v2686 = vld [vmem:[%s53] sm:$0xf]
        %v2687 = vld [vmem:[%s53 + $0x4] sm:$0xf]
        %v2688 = vld [vmem:[%s53 + $0x8] sm:$0xf]
        %v2689 = vld [vmem:[%s53 + $0xc] sm:$0xf]
        %v2690 = vld [vmem:[%s53 + $0x10] sm:$0xf]
        %v2691 = vld [vmem:[%s53 + $0x14] sm:$0xf]
        %v2692 = vld [vmem:[%s53 + $0x18] sm:$0xf]
        %v2693 = vld [vmem:[%s53 + $0x1c] sm:$0xf]
        %v2694 = vld [vmem:[%s53 + $0x20] sm:$0xf]
        %v2695 = vld [vmem:[%s53 + $0x24] sm:$0xf]
        %v2696 = vld [vmem:[%s53 + $0x28] sm:$0xf]
        %v2697 = vld [vmem:[%s53 + $0x2c] sm:$0xf]
        %v2698 = vld [vmem:[%s53 + $0x30] sm:$0xf]
        %v2699 = vld [vmem:[%s53 + $0x34] sm:$0xf]
        %v2700 = vld [vmem:[%s53 + $0x38] sm:$0xf]
        %v2701 = vld [vmem:[%s53 + $0x3c] sm:$0xf]
        %v2702 = vld [vmem:[%s53 + $0x40] sm:$0xf]
        %v2703 = vld [vmem:[%s53 + $0x44] sm:$0xf]
        %v2704 = vld [vmem:[%s53 + $0x48] sm:$0xf]
        %v2705 = vld [vmem:[%s53 + $0x4c] sm:$0xf]
        %v2706 = vld [vmem:[%s53 + $0x50] sm:$0xf]
        %v2707 = vld [vmem:[%s53 + $0x54] sm:$0xf]
        %v2708 = vld [vmem:[%s53 + $0x58] sm:$0xf]
        %v2709 = vld [vmem:[%s53 + $0x5c] sm:$0xf]
        %v2710 = vld [vmem:[%s53 + $0x60] sm:$0xf]
        %v2711 = vld [vmem:[%s53 + $0x64] sm:$0xf]
        %v2712 = vld [vmem:[%s53 + $0x68] sm:$0xf]
        %v2713 = vld [vmem:[%s53 + $0x6c] sm:$0xf]
        %v2714 = vld [vmem:[%s53 + $0x70] sm:$0xf]
        %v2715 = vld [vmem:[%s53 + $0x74] sm:$0xf]
        %v2716 = vld [vmem:[%s53 + $0x78] sm:$0xf]
        %v2717 = vld [vmem:[%s53 + $0x7c] sm:$0xf]
        %v2718 = vld [vmem:[%s55] sm:$0x1]
        %v2719 = vsel %vm962, %v2406, 0.0
        %2720 = vadd.xlane.f32.xlu0 %v2719
        %v2721 = vpop.xlane.xlu0 %2720
        %v2722 = vsel %vm962, %v2407, 0.0
        %2723 = vadd.xlane.f32.xlu0 %v2722
        %v2724 = vpop.xlane.xlu0 %2723
        %v2725 = vmul.f32 %v2721, %v972
        %v2726 = vmul.f32 %v2724, %v972
        %v2727 = vsub.f32 %v2406, %v2725
        %v2728 = vsub.f32 %v2407, %v2726
        %v2729 = vmul.f32 %v2727, %v2727
        %v2730 = vmul.f32 %v2728, %v2728
        %v2731 = vsel %vm962, %v2729, 0.0
        %2732 = vadd.xlane.f32.xlu0 %v2731
        %v2733 = vpop.xlane.xlu0 %2732
        %v2734 = vsel %vm962, %v2730, 0.0
        %2735 = vadd.xlane.f32.xlu0 %v2734
        %v2736 = vpop.xlane.xlu0 %2735
        %v2737 = vmul.f32 %v2733, %v972
        %v2738 = vmul.f32 %v2736, %v972
        %v2739 = vadd.f32 %v2737, 1e-05
        %v2740 = vadd.f32 %v2738, 1e-05
        %v2741 = vrsqrt.pop %v2739
        %v2742 = vmul.f32 %v2741, %v2739
        %v2743 = vmul.f32 %v2742, %v2741
        %v2744 = vmul.f32 0.5, %v2743
        %v2745 = vsub.f32 1.5, %v2744
        %v2746 = vmul.f32 %v2741, %v2745
        %vm2747 = vweird.f32 %v2739
        %vm2748 = vweird.f32 %v2741
        %vm2749 = vmor %vm2747, %vm2748
        %v2750 = vsel %vm2749, %v2741, %v2746
        %v2751 = vrsqrt.pop %v2740
        %v2752 = vmul.f32 %v2751, %v2740
        %v2753 = vmul.f32 %v2752, %v2751
        %v2754 = vmul.f32 0.5, %v2753
        %v2755 = vsub.f32 1.5, %v2754
        %v2756 = vmul.f32 %v2751, %v2755
        %vm2757 = vweird.f32 %v2740
        %vm2758 = vweird.f32 %v2751
        %vm2759 = vmor %vm2757, %vm2758
        %v2760 = vsel %vm2759, %v2751, %v2756
        %v2761 = vmul.f32 %v2727, %v2750
        %v2762 = vmul.f32 %v2728, %v2760
        %v2764 = vperm.slane %v2679, 0
        %v2766 = vmul.f32 %v2761, %v2764
        %v2767 = vmul.f32 %v2762, %v2764
        %v2769 = vperm.slane %v2680, 0
        %v2771 = vadd.f32 %v2766, %v2769
        %v2772 = vadd.f32 %v2767, %v2769
        %v2773 = vpack.c.bf16 %v2772, %v2771
        %v2775 = vperm.slane %v2685, 0
        %v2776 = vperm.slane %v2685, 1
        %v2783 = vunpack.c.l.b16 %v2681
        %v2784 = vunpack.c.h.b16 %v2681
        %v2785 = vunpack.c.l.b16 %v2682
        %v2786 = vunpack.c.h.b16 %v2682
        %v2787 = vunpack.c.l.b16 %v2683
        %v2788 = vunpack.c.h.b16 %v2683
        %v2789 = vunpack.c.l.b16 %v2684
        %v2790 = vunpack.c.h.b16 %v2684
        %v2791 = vpack.c.b16 %v2785, %v2783
        %v2792 = vpack.c.b16 %v2786, %v2784
        %v2793 = vpack.c.b16 %v2789, %v2787
        %v2794 = vpack.c.b16 %v2790, %v2788
        %v2800 = vsel %vm962, %v2773, 0
        %2802 = vmatpush.bf16.msra.mxu0 0
        %2803 = vmatpush.bf16.msra.mxu0 0
        %2804 = vmatpush.bf16.msra.mxu0 0
        %2805 = vmatpush.bf16.msra.mxu0 0
        %2806 = vmatpush.bf16.msra.mxu0 0
        %2807 = vmatpush.bf16.msra.mxu0 0
        %2808 = vmatpush.bf16.msra.mxu0 %v2793
        %2809 = vmatpush.bf16.msra.mxu0 %v2791
        %2810 = vmatmul.bf16.gmra.mxu0 %v2800
        %v2811 = vpop.f32.mrf.mxu0
        %v2812 = vadd.f32 %v2775, %v2811
        %v2813 = vpop.f32.mrf.mxu0
        %v2814 = vadd.f32 %v2775, %v2813
        %2815 = vdwg.mxu0
        %2816 = vmatpush.bf16.msra.mxu0 0
        %2817 = vmatpush.bf16.msra.mxu0 0
        %2818 = vmatpush.bf16.msra.mxu0 0
        %2819 = vmatpush.bf16.msra.mxu0 0
        %2820 = vmatpush.bf16.msra.mxu0 0
        %2821 = vmatpush.bf16.msra.mxu0 0
        %2822 = vmatpush.bf16.msra.mxu0 %v2794
        %2823 = vmatpush.bf16.msra.mxu0 %v2792
        %2824 = vmatmul.bf16.gmra.mxu0 %v2800
        %v2825 = vpop.f32.mrf.mxu0
        %v2826 = vadd.f32 %v2776, %v2825
        %v2827 = vpop.f32.mrf.mxu0
        %v2828 = vadd.f32 %v2776, %v2827
        %2829 = vdwg.mxu0
        %v2830 = vmul.f32 %v2812, %v2812
        %v2831 = vmul.f32 %v2826, %v2826
        %v2832 = vmul.f32 %v2814, %v2814
        %v2833 = vmul.f32 %v2828, %v2828
        %v2834 = vmul.f32 %v2812, %v2830
        %v2835 = vmul.f32 %v2826, %v2831
        %v2836 = vmul.f32 %v2814, %v2832
        %v2837 = vmul.f32 %v2828, %v2833
        %v2838 = vmul.f32 %v2834, 0.044715
        %v2839 = vmul.f32 %v2835, 0.044715
        %v2840 = vmul.f32 %v2836, 0.044715
        %v2841 = vmul.f32 %v2837, 0.044715
        %v2842 = vadd.f32 %v2812, %v2838
        %v2843 = vadd.f32 %v2826, %v2839
        %v2844 = vadd.f32 %v2814, %v2840
        %v2845 = vadd.f32 %v2828, %v2841
        %v2846 = vmul.f32 %v2842, 0.7978846
        %v2847 = vmul.f32 %v2843, 0.7978846
        %v2848 = vmul.f32 %v2844, 0.7978846
        %v2849 = vmul.f32 %v2845, 0.7978846
        %v2850 = vtanh.pop %v2846
        %v2851 = vtanh.pop %v2847
        %v2852 = vtanh.pop %v2848
        %v2853 = vtanh.pop %v2849
        %v2854 = vadd.f32 %v2850, 1.0
        %v2855 = vadd.f32 %v2851, 1.0
        %v2856 = vadd.f32 %v2852, 1.0
        %v2857 = vadd.f32 %v2853, 1.0
        %v2858 = vmul.f32 %v2854, 0.5
        %v2859 = vmul.f32 %v2855, 0.5
        %v2860 = vmul.f32 %v2856, 0.5
        %v2861 = vmul.f32 %v2857, 0.5
        %v2862 = vmul.f32 %v2812, %v2858
        %v2863 = vmul.f32 %v2826, %v2859
        %v2864 = vmul.f32 %v2814, %v2860
        %v2865 = vmul.f32 %v2828, %v2861
        %v2866 = vpack.c.bf16 %v2864, %v2862
        %v2867 = vpack.c.bf16 %v2865, %v2863
        %v2869 = vperm.slane %v2718, 0
        %v2903 = vunpack.c.l.b16 %v2686
        %v2904 = vunpack.c.l.b16 %v2687
        %v2905 = vunpack.c.l.b16 %v2688
        %v2906 = vunpack.c.l.b16 %v2689
        %v2907 = vunpack.c.l.b16 %v2690
        %v2908 = vunpack.c.l.b16 %v2691
        %v2909 = vunpack.c.l.b16 %v2692
        %v2910 = vunpack.c.l.b16 %v2693
        %v2911 = vunpack.c.l.b16 %v2694
        %v2912 = vunpack.c.l.b16 %v2695
        %v2913 = vunpack.c.l.b16 %v2696
        %v2914 = vunpack.c.l.b16 %v2697
        %v2915 = vunpack.c.l.b16 %v2698
        %v2916 = vunpack.c.l.b16 %v2699
        %v2917 = vunpack.c.l.b16 %v2700
        %v2918 = vunpack.c.l.b16 %v2701
        %v2919 = vunpack.c.l.b16 %v2702
        %v2920 = vunpack.c.l.b16 %v2703
        %v2921 = vunpack.c.l.b16 %v2704
        %v2922 = vunpack.c.l.b16 %v2705
        %v2923 = vunpack.c.l.b16 %v2706
        %v2924 = vunpack.c.l.b16 %v2707
        %v2925 = vunpack.c.l.b16 %v2708
        %v2926 = vunpack.c.l.b16 %v2709
        %v2927 = vunpack.c.l.b16 %v2710
        %v2928 = vunpack.c.l.b16 %v2711
        %v2929 = vunpack.c.l.b16 %v2712
        %v2930 = vunpack.c.l.b16 %v2713
        %v2931 = vunpack.c.l.b16 %v2714
        %v2932 = vunpack.c.l.b16 %v2715
        %v2933 = vunpack.c.l.b16 %v2716
        %v2934 = vunpack.c.l.b16 %v2717
        %v2935 = vpack.c.b16 %v2904, %v2903
        %v2936 = vpack.c.b16 %v2906, %v2905
        %v2937 = vpack.c.b16 %v2908, %v2907
        %v2938 = vpack.c.b16 %v2910, %v2909
        %v2939 = vpack.c.b16 %v2912, %v2911
        %v2940 = vpack.c.b16 %v2914, %v2913
        %v2941 = vpack.c.b16 %v2916, %v2915
        %v2942 = vpack.c.b16 %v2918, %v2917
        %v2943 = vpack.c.b16 %v2920, %v2919
        %v2944 = vpack.c.b16 %v2922, %v2921
        %v2945 = vpack.c.b16 %v2924, %v2923
        %v2946 = vpack.c.b16 %v2926, %v2925
        %v2947 = vpack.c.b16 %v2928, %v2927
        %v2948 = vpack.c.b16 %v2930, %v2929
        %v2949 = vpack.c.b16 %v2932, %v2931
        %v2950 = vpack.c.b16 %v2934, %v2933
        %2967 = vmatpush.bf16.msra.mxu0 %v2942
        %2968 = vmatpush.bf16.msra.mxu0 %v2941
        %2969 = vmatpush.bf16.msra.mxu0 %v2940
        %2970 = vmatpush.bf16.msra.mxu0 %v2939
        %2971 = vmatpush.bf16.msra.mxu0 %v2938
        %2972 = vmatpush.bf16.msra.mxu0 %v2937
        %2973 = vmatpush.bf16.msra.mxu0 %v2936
        %2974 = vmatpush.bf16.msra.mxu0 %v2935
        %2975 = vmatmul.bf16.gmra.mxu0 %v2866
        %v2976 = vpop.f32.mrf.mxu0
        %v2977 = vadd.f32 %v2869, %v2976
        %v2978 = vpop.f32.mrf.mxu0
        %v2979 = vadd.f32 %v2869, %v2978
        %2980 = vdwg.mxu0
        %2981 = vmatpush.bf16.msra.mxu0 %v2950
        %2982 = vmatpush.bf16.msra.mxu0 %v2949
        %2983 = vmatpush.bf16.msra.mxu0 %v2948
        %2984 = vmatpush.bf16.msra.mxu0 %v2947
        %2985 = vmatpush.bf16.msra.mxu0 %v2946
        %2986 = vmatpush.bf16.msra.mxu0 %v2945
        %2987 = vmatpush.bf16.msra.mxu0 %v2944
        %2988 = vmatpush.bf16.msra.mxu0 %v2943
        %2989 = vmatmul.bf16.gmra.mxu0 %v2867
        %v2990 = vpop.f32.mrf.mxu0
        %v2991 = vadd.f32 %v2977, %v2990
        %v2992 = vpop.f32.mrf.mxu0
        %v2993 = vadd.f32 %v2979, %v2992
        %2994 = vdwg.mxu0
        %v2995 = vadd.f32 %v2406, %v2991
        %v2996 = vadd.f32 %v2407, %v2993
        %2997 = vst.msk [vmem:[%s939] sm:$0xff] %vm962, %v2678
        %2998 = vst.msk [vmem:[%s946] sm:$0xff] %vm962, %v2995
        %2999 = vst.msk [vmem:[%s946 + $0x8] sm:$0xff] %vm962, %v2996
        %s3000 = sand.u32 %s685, 1
        %s3001 = scalar_lea.sflag [#allocation3], %s3000
        %s3002 = sand.u32 %s685, 1
        %s3003 = smul.addr %s3002, 8
        %s3004 = scalar_lea.vmem [#allocation7], %s3003
        %s3005 = sand.u32 %s711, 1
        %s3006 = scalar_lea.sflag [#allocation9], %s3005
        %s3007 = sand.u32 %s711, 1
        %s3008 = smul.addr %s3007, 16
        %s3009 = scalar_lea.vmem [#allocation8], %s3008
        // Predicated region
        $region141: #{tpu_custom_call.1} parent=131 // pred_check
          %p3010 = pneg %p695
        $region142: #{tpu_custom_call.1} parent=131 // pred_check_branch
          %3012 = sbr.rel (%p3010) target = $region144
        $region143: #{tpu_custom_call.1} parent=131 // pred_region
          %3014 = vsyncadd %s3001, 0
          %s3015 = smul.addr %s79, 8
          %s3016 = scalar_lea.hbm %s57, %s3015
          %s3018 = sshll.u32 %s3004, 4
          %s3019 = int_to_ptr.vmem [resolvable:$true] %s3018
          %s3020 = sshll.u32 %s3016, 4
          %s3021 = int_to_ptr.hbm [resolvable:$true] %s3020
          %3023 = dma.vmem_to_hbm [thread:$0]  %s3019, 128, %s3021, %s3001
        $region144: #{tpu_custom_call.1} parent=131 // pred_fallthru
          _
        // Predicated region
        $region145: #{tpu_custom_call.1} parent=131 // pred_check
          %p3024 = pneg %p721
        $region146: #{tpu_custom_call.1} parent=131 // pred_check_branch
          %3026 = sbr.rel (%p3024) target = $region148
        $region147: #{tpu_custom_call.1} parent=131 // pred_region
          %3028 = vsyncadd %s3006, 0
          %s3029 = smul.addr %s79, 2
          %s3030 = smul.addr %s3029, 8
          %s3031 = scalar_lea.hbm %s59, %s3030
          %s3032 = sshll.u32 %s3009, 4
          %s3033 = int_to_ptr.vmem [resolvable:$true] %s3032
          %s3034 = sshll.u32 %s3031, 4
          %s3035 = int_to_ptr.hbm [resolvable:$true] %s3034
          %3040 = dma.vmem_to_hbm [thread:$0]  %s3033, 256, %s3035, %s3006, 128, 128, 8
        $region148: #{tpu_custom_call.1} parent=131 // pred_fallthru
          _
      $region132: #{tpu_custom_call.1} parent=5 // pred_fallthru
        _
      %p3041 = scmp.le.s32.totalorder 2, %s74
      // Predicated region
      $region149: #{tpu_custom_call.1} parent=5 // pred_check
        %p3042 = pneg %p3041
      $region150: #{tpu_custom_call.1} parent=5 // pred_check_branch
        %3044 = sbr.rel (%p3042) target = $region152
      $region151: #{tpu_custom_call.1} parent=5 // pred_region
        %s3045 = ssub.s32 %s74, 2
        // Predicated region
        $region153: #{tpu_custom_call.1} parent=151 // pred_check
          %p3046 = pneg %p701
        $region154: #{tpu_custom_call.1} parent=151 // pred_check_branch
          %3048 = sbr.rel (%p3046) target = $region156
        $region155: #{tpu_custom_call.1} parent=151 // pred_region
          %s3049 = sand.u32 %s686, 1
          %s3050 = scalar_lea.sflag [#allocation3], %s3049
          %s3051 = sand.u32 %s686, 1
          %s3052 = smul.addr %s3051, 8
          %s3053 = scalar_lea.vmem [#allocation7], %s3052
          %3055 = dma.done %s3050, 128
        $region156: #{tpu_custom_call.1} parent=151 // pred_fallthru
          _
        // Predicated region
        $region157: #{tpu_custom_call.1} parent=151 // pred_check
          %p3056 = pneg %p727
        $region158: #{tpu_custom_call.1} parent=151 // pred_check_branch
          %3058 = sbr.rel (%p3056) target = $region160
        $region159: #{tpu_custom_call.1} parent=151 // pred_region
          %s3059 = sand.u32 %s712, 1
          %s3060 = scalar_lea.sflag [#allocation9], %s3059
          %s3061 = sand.u32 %s712, 1
          %s3062 = smul.addr %s3061, 16
          %s3063 = scalar_lea.vmem [#allocation8], %s3062
          %3065 = dma.done %s3060, 256
        $region160: #{tpu_custom_call.1} parent=151 // pred_fallthru
          _
      $region152: #{tpu_custom_call.1} parent=5 // pred_fallthru
        _
    $region6: #{tpu_custom_call.1} parent=1 // loop_footer
      %s78 = sadd.s32 1, %s74
    $region7: #{tpu_custom_call.1} parent=1 // loop_footer_branch
      %73 = sbr.rel target = $region3
    $region8: #{tpu_custom_call.1} parent=1 // loop_exit
      _
    %3066 = vsyncpa [#allocation3], 1
    %s3067 = scalar_lea.sflag [#allocation3], 1
    %3068 = vsyncpa %s3067, 1
    %3069 = vsyncpa [#allocation9], 1
    %s3070 = scalar_lea.sflag [#allocation9], 1
    %3071 = vsyncpa %s3070, 1
    %3072 = vsyncpa [#allocation4], 1
    %s3073 = scalar_lea.sflag [#allocation4], 1
    %3074 = vsyncpa %s3073, 1
    %3075 = vsyncpa [#allocation6], 1

</llo_original>
